<compile_context>
chip_gen: v7x
topology: tpu7x:2x2x1
jax: 0.10.0
libtpu: 0.0.40
codegen_flags: <defaults>
</compile_context>

<pallas_src>
import jax
import jax.numpy as jnp
from jax.experimental import pallas as pl
from jax.experimental.pallas import tpu as pltpu

EMB = 64
LN_EPS = 1e-5                     # PyTorch nn.LayerNorm default


def _tpu_vmem_capacity_bytes():
    try:
        info = pltpu.get_tpu_info()
        for attr in ("vmem_capacity_bytes", "vmem_size_bytes", "vmem_bytes"):
            val = getattr(info, attr, None)
            if val:
                return int(val)
    except Exception:
        pass
    return 64 * 1024 * 1024       # conservative fallback (v7x physical VMEM)


_VMEM_PHYS = _tpu_vmem_capacity_bytes()
# v5e/v6e (128 MiB physical): 96 MiB scoped limit + 2048-row tiles.
# v7x (64 MiB physical):      48 MiB scoped limit + 1024-row tiles.
_VMEM_LIMIT = min(96 * 1024 * 1024, (_VMEM_PHYS * 3) // 4)
_MAX_ROW_TILE = 2048 if _VMEM_PHYS >= 96 * 1024 * 1024 else 1024
_MAX_EDGE_TILE = 512              # multiple of 128 (lane rule for the (1, TE) idx block)
_CONV_NODE_TILE = 512             # caps the one-hot height / scatter FLOPs per block


# ------------------------------ small helpers ------------------------------

def _round_up(x, m):
    return ((x + m - 1) // m) * m


def _node_tile(n):
    return min(_MAX_ROW_TILE, _round_up(max(n, 1), 8))


def _conv_node_tile(tm_row):
    return tm_row if tm_row <= _CONV_NODE_TILE else _CONV_NODE_TILE


def _pad_rows(x, n_pad):
    n = x.shape[0]
    if n == n_pad:
        return x
    return jnp.pad(x, ((0, n_pad - n), (0, 0)))


def _row_spec(tm, f):
    return pl.BlockSpec((tm, f), lambda i, *_: (i, 0))


def _const_spec(shape):
    return pl.BlockSpec(shape, lambda *_: (0,) * len(shape))


def _cparams(sem):
    return pltpu.CompilerParams(dimension_semantics=sem,
                                vmem_limit_bytes=_VMEM_LIMIT)


def _ln(x, g, b):
    """LayerNorm over the last axis; statistics kept in f32."""
    mean = jnp.mean(x, axis=-1, keepdims=True)
    xc = x - mean
    var = jnp.mean(xc * xc, axis=-1, keepdims=True)
    return xc * jax.lax.rsqrt(var + LN_EPS) * g + b


# ------------------------------ Pallas kernels ------------------------------

def _embed_cons_kernel(x_ref, g_ref, b_ref, w1_ref, b1_ref, w2_ref, b2_ref, o_ref):
    # cons_embedding: LN -> Linear(3,64)+ReLU -> Linear(64,64)+ReLU (fused).
    x = _ln(x_ref[...].astype(jnp.float32), g_ref[...], b_ref[...])
    h = jnp.dot(x, w1_ref[...], preferred_element_type=jnp.float32) + b1_ref[...]
    h = jnp.maximum(h, 0.0)
    h = jnp.dot(h.astype(jnp.bfloat16), w2_ref[...],
                preferred_element_type=jnp.float32) + b2_ref[...]
    o_ref[...] = jnp.maximum(h, 0.0)


def _embed_var_kernel(v_ref, g_ref,
                      vlg_ref, vlb_ref, vw1_ref, vb1_ref, vw2_ref, vb2_ref,
                      glg_ref, glb_ref, gw_ref, gb_ref, o_ref):
    # var_embedding (LN->Lin->ReLU->Lin->ReLU) + group_embedding (LN->Lin->ReLU) + add
    v = _ln(v_ref[...].astype(jnp.float32), vlg_ref[...], vlb_ref[...])
    h = jnp.maximum(jnp.dot(v, vw1_ref[...], preferred_element_type=jnp.float32)
                    + vb1_ref[...], 0.0)
    h = jnp.maximum(jnp.dot(h.astype(jnp.bfloat16), vw2_ref[...],
                            preferred_element_type=jnp.float32) + vb2_ref[...], 0.0)
    g = _ln(g_ref[...].astype(jnp.float32), glg_ref[...], glb_ref[...])
    ge = jnp.maximum(jnp.dot(g, gw_ref[...], preferred_element_type=jnp.float32)
                     + gb_ref[...], 0.0)
    o_ref[...] = h + ge


def _conv_kernel(bt_ref, bfirst_ref, blast_ref,               # scalar prefetch (SMEM)
                 tgt_ref, pre_ref, right_ref,                 # streamed blocks
                 bmsg_ref, mg_ref, mb_ref, wf_ref, bf_ref,    # message-MLP consts
                 pg_ref, pb_ref, w1a_ref, w1b_ref, b1_ref, w2_ref, b2_ref,  # post consts
                 o_ref):
    """One edge block of a BipartiteGraphConvolution.

    Messages (LN->ReLU->Linear on pre-projected node features + fused edge bias)
    are scatter-added into the node tile owning this block via a (TM, TE)
    one-hot MXU matmul, accumulated in f32 directly in the resident output
    block.  On the tile's last block, post_conv LayerNorm + output_module are
    applied in place (fused conv_post).
    """
    b = pl.program_id(0)
    tm = o_ref.shape[0]
    te = pre_ref.shape[0]
    tile = bt_ref[b]

    @pl.when(bfirst_ref[b] == 1)
    def _init():
        o_ref[...] = jnp.zeros_like(o_ref)

    # feature_module_final on pre-projected features; the edge Linear is the
    # constant bmsg (edge_embedding = LayerNorm(1 feature) == its beta).
    h = pre_ref[...] + bmsg_ref[...]                                   # (TE, 64) f32
    h = jnp.maximum(_ln(h, mg_ref[...], mb_ref[...]), 0.0)
    msg = jnp.dot(h.astype(jnp.bfloat16), wf_ref[...],
                  preferred_element_type=jnp.float32) + bf_ref[...]     # (TE, 64)

    # 'add' aggregation restricted to this node tile: 0/1 exact in bf16,
    # accumulation in f32 -> no degree drift.
    rows = jax.lax.broadcasted_iota(jnp.int32, (tm, te), 0) + tile * tm
    onehot = (rows == tgt_ref[...]).astype(jnp.bfloat16)                # (TM, TE)
    o_ref[...] += jnp.dot(onehot, msg.astype(jnp.bfloat16),
                          preferred_element_type=jnp.float32)

    # Fused post_conv LN + output_module on the last edge block of this tile.
    @pl.when(blast_ref[b] == 1)
    def _finalize():
        pc = _ln(o_ref[...], pg_ref[...], pb_ref[...])
        hh = (jnp.dot(pc.astype(jnp.bfloat16), w1a_ref[...],
                      preferred_element_type=jnp.float32)
              + jnp.dot(right_ref[...].astype(jnp.bfloat16), w1b_ref[...],
                        preferred_element_type=jnp.float32)
              + b1_ref[...])
        hh = jnp.maximum(hh, 0.0)
        o_ref[...] = jnp.dot(hh.astype(jnp.bfloat16), w2_ref[...],
                             preferred_element_type=jnp.float32) + b2_ref[...]


def _out_head_kernel(x_ref, w1_ref, b1_ref, w2_ref, o_ref):
    # output_module: Linear(64,64)+ReLU -> Linear(64,1, no bias) fused;
    # the 64->1 projection is a lane reduction (no 1-wide MXU matmul).
    h = jnp.dot(x_ref[...].astype(jnp.bfloat16), w1_ref[...],
                preferred_element_type=jnp.float32) + b1_ref[...]
    h = jnp.maximum(h, 0.0)
    o_ref[...] = jnp.sum(h * w2_ref[...], axis=-1, keepdims=True)


# ------------------------------- wrappers -----------------------------------

def embed_constraints(p, cons_feats, n_pad, tm):
    f = cons_feats.shape[1]
    x = _pad_rows(cons_feats.astype(jnp.float32), n_pad)
    args = [
        x,
        p["cons_ln_g"].reshape(1, f).astype(jnp.float32),
        p["cons_ln_b"].reshape(1, f).astype(jnp.float32),
        p["cons_W1"].astype(jnp.float32),
        p["cons_b1"].reshape(1, EMB).astype(jnp.float32),
        p["cons_W2"].astype(jnp.bfloat16),
        p["cons_b2"].reshape(1, EMB).astype(jnp.float32),
    ]
    in_specs = [_row_spec(tm, f)] + [_const_spec(a.shape) for a in args[1:]]
    return pl.pallas_call(
        _embed_cons_kernel,
        grid=(n_pad // tm,),
        in_specs=in_specs,
        out_specs=_row_spec(tm, EMB),
        out_shape=jax.ShapeDtypeStruct((n_pad, EMB), jnp.float32),
        compiler_params=_cparams(("parallel",)),
    )(*args)


def embed_variables(p, var_feats, group_feats, n_pad, tm):
    fv = var_feats.shape[1]
    fg = group_feats.shape[1]
    v = _pad_rows(var_feats.astype(jnp.float32), n_pad)
    g = _pad_rows(group_feats.astype(jnp.float32), n_pad)
    args = [
        v, g,
        p["var_ln_g"].reshape(1, fv).astype(jnp.float32),
        p["var_ln_b"].reshape(1, fv).astype(jnp.float32),
        p["var_W1"].astype(jnp.float32),
        p["var_b1"].reshape(1, EMB).astype(jnp.float32),
        p["var_W2"].astype(jnp.bfloat16),
        p["var_b2"].reshape(1, EMB).astype(jnp.float32),
        p["grp_ln_g"].reshape(1, fg).astype(jnp.float32),
        p["grp_ln_b"].reshape(1, fg).astype(jnp.float32),
        p["grp_W"].astype(jnp.float32),
        p["grp_b"].reshape(1, EMB).astype(jnp.float32),
    ]
    in_specs = ([_row_spec(tm, fv), _row_spec(tm, fg)]
                + [_const_spec(a.shape) for a in args[2:]])
    return pl.pallas_call(
        _embed_var_kernel,
        grid=(n_pad // tm,),
        in_specs=in_specs,
        out_specs=_row_spec(tm, EMB),
        out_shape=jax.ShapeDtypeStruct((n_pad, EMB), jnp.float32),
        compiler_params=_cparams(("parallel",)),
    )(*args)


def bipartite_conv(cp, edge_beta, left, right, src_idx, tgt_idx,
                   n_right_pad, tm_nodes, te):
    """One BipartiteGraphConvolution (message MLP + 'add' aggregation +
    post_conv LN + output_module) as a single edge-block-tiled pallas_call."""
    e = src_idx.shape[0]
    nt = n_right_pad // tm_nodes
    nb = -(-e // te) + nt                      # static bound on edge blocks
    e_cap = nb * te

    # Pre-project node features (gather and Linear commute): two per-node
    # (N,64)x(64,64) matmuls instead of a per-edge (TE,128)x(128,64) matmul.
    proj_r = jnp.dot(right, cp["Wl"], preferred_element_type=jnp.float32)
    proj_l = jnp.dot(left, cp["Wr"], preferred_element_type=jnp.float32)

    # Sort edges by target node, segment per node tile and pad each segment to a
    # multiple of te so every edge block belongs to exactly one node tile.
    order = jnp.argsort(tgt_idx)
    tgt_s = jnp.take(tgt_idx, order)
    src_s = jnp.take(src_idx, order)
    tile_e = tgt_s // tm_nodes
    cnt = jnp.bincount(tile_e, length=nt)
    pcnt = jnp.maximum((cnt + te - 1) // te, 1) * te
    pend = jnp.cumsum(pcnt)                    # inclusive padded offsets
    pstart = pend - pcnt                       # exclusive padded offsets
    cstart = jnp.cumsum(cnt) - cnt
    pos = pstart[tile_e] + jnp.arange(e, dtype=jnp.int32) - cstart[tile_e]

    # Padded slots get an out-of-range target -> zero one-hot -> no effect.
    tgt_pad = jnp.full((e_cap,), n_right_pad, jnp.int32).at[pos].set(tgt_s)
    src_pad = jnp.zeros((e_cap,), jnp.int32).at[pos].set(src_s)

    # Gather the pre-projected features at the padded edge layout (clip mode for
    # sentinel rows; their values are masked out by the one-hot anyway).
    pre = (jnp.take(proj_r, tgt_pad, axis=0, mode="clip")
           + jnp.take(proj_l, src_pad, axis=0, mode="clip")).astype(jnp.float32)

    # Per-edge-block node-tile id + first/last flags (scalar-prefetched to SMEM).
    bstart = jnp.arange(nb, dtype=jnp.int32) * te
    bt = jnp.clip(jnp.searchsorted(pend, bstart, side="right"),
                  0, nt - 1).astype(jnp.int32)
    change = (bt[1:] != bt[:-1]).astype(jnp.int32)
    one = jnp.ones((1,), jnp.int32)
    bfirst = jnp.concatenate([one, change])
    blast = jnp.concatenate([change, one])

    # edge_embedding = LayerNorm(1 feature) == its beta -> the whole edge path
    # folds into a constant message bias.
    bmsg = (cp["bl"].reshape(1, EMB)
            + edge_beta * cp["We"].reshape(1, EMB)).astype(jnp.float32)

    args = [
        tgt_pad.reshape(1, e_cap), pre, right,
        bmsg,
        cp["ln_g"].reshape(1, EMB).astype(jnp.float32),
        cp["ln_b"].reshape(1, EMB).astype(jnp.float32),
        cp["Wf"].astype(jnp.bfloat16),
        cp["bf"].reshape(1, EMB).astype(jnp.float32),
        cp["post_g"].reshape(1, EMB).astype(jnp.float32),
        cp["post_b"].reshape(1, EMB).astype(jnp.float32),
        cp["Wo1"][:EMB].astype(jnp.bfloat16),      # half acting on post_conv(agg)
        cp["Wo1"][EMB:].astype(jnp.bfloat16),      # half acting on right_features
        cp["bo1"].reshape(1, EMB).astype(jnp.float32),
        cp["Wo2"].astype(jnp.bfloat16),
        cp["bo2"].reshape(1, EMB).astype(jnp.float32),
    ]
    in_specs = [
        pl.BlockSpec((1, te), lambda b, t, f, l: (0, b)),
        pl.BlockSpec((te, EMB), lambda b, t, f, l: (b, 0)),
        pl.BlockSpec((tm_nodes, EMB), lambda b, t, f, l: (t[b], 0)),
    ] + [_const_spec(a.shape) for a in args[3:]]

    grid_spec = pltpu.PrefetchScalarGridSpec(
        num_scalar_prefetch=3,
        grid=(nb,),
        in_specs=in_specs,
        out_specs=pl.BlockSpec((tm_nodes, EMB), lambda b, t, f, l: (t[b], 0)),
    )
    return pl.pallas_call(
        _conv_kernel,
        grid_spec=grid_spec,
        out_shape=jax.ShapeDtypeStruct((n_right_pad, EMB), jnp.float32),
        compiler_params=_cparams(("arbitrary",)),
    )(bt, bfirst, blast, *args)


def output_head(p, v, n_pad, tm):
    args = [
        v,
        p["out_W1"].astype(jnp.bfloat16),
        p["out_b1"].reshape(1, EMB).astype(jnp.float32),
        p["out_W2"].reshape(1, EMB).astype(jnp.float32),   # (64,1) column -> (1,64) row
    ]
    in_specs = [_row_spec(tm, EMB)] + [_const_spec(a.shape) for a in args[1:]]
    return pl.pallas_call(
        _out_head_kernel,
        grid=(n_pad // tm,),
        in_specs=in_specs,
        out_specs=_row_spec(tm, 1),
        out_shape=jax.ShapeDtypeStruct((n_pad, 1), jnp.float32),
        compiler_params=_cparams(("parallel",)),
    )(*args)


# ------------------------------ parameters ---------------------------------

def _lin_init(key, fin, fout, bias=True):
    k1, k2 = jax.random.split(key)
    bound = float(fin) ** -0.5
    w = jax.random.uniform(k1, (fin, fout), jnp.float32, -bound, bound)
    b = (jax.random.uniform(k2, (fout,), jnp.float32, -bound, bound)
         if bias else None)
    return w, b


def _init_conv(key):
    ks = jax.random.split(key, 6)
    Wl, bl = _lin_init(ks[0], EMB, EMB, bias=True)
    We, _ = _lin_init(ks[1], 1, EMB, bias=False)
    Wr, _ = _lin_init(ks[2], EMB, EMB, bias=False)
    Wf, bf = _lin_init(ks[3], EMB, EMB, bias=True)
    Wo1, bo1 = _lin_init(ks[4], 2 * EMB, EMB, bias=True)
    Wo2, bo2 = _lin_init(ks[5], EMB, EMB, bias=True)
    return dict(
        Wl=Wl, bl=bl, We=We, Wr=Wr,
        ln_g=jnp.ones((EMB,), jnp.float32), ln_b=jnp.zeros((EMB,), jnp.float32),
        Wf=Wf, bf=bf,
        post_g=jnp.ones((EMB,), jnp.float32), post_b=jnp.zeros((EMB,), jnp.float32),
        Wo1=Wo1, bo1=bo1, Wo2=Wo2, bo2=bo2,
    )


def init_params(key, n_group):
    cons_nf, edge_nf, var_nf = 3, 1, 6
    ks = jax.random.split(key, 12)
    grp_W, grp_b = _lin_init(ks[0], n_group, EMB)
    cons_W1, cons_b1 = _lin_init(ks[1], cons_nf, EMB)
    cons_W2, cons_b2 = _lin_init(ks[2], EMB, EMB)
    var_W1, var_b1 = _lin_init(ks[3], var_nf, EMB)
    var_W2, var_b2 = _lin_init(ks[4], EMB, EMB)
    out_W1, out_b1 = _lin_init(ks[5], EMB, EMB)
    out_W2, _ = _lin_init(ks[6], EMB, 1, bias=False)
    return dict(
        grp_ln_g=jnp.ones((n_group,), jnp.float32),
        grp_ln_b=jnp.zeros((n_group,), jnp.float32),
        grp_W=grp_W, grp_b=grp_b,
        cons_ln_g=jnp.ones((cons_nf,), jnp.float32),
        cons_ln_b=jnp.zeros((cons_nf,), jnp.float32),
        cons_W1=cons_W1, cons_b1=cons_b1, cons_W2=cons_W2, cons_b2=cons_b2,
        edge_ln_g=jnp.ones((edge_nf,), jnp.float32),
        edge_ln_b=jnp.zeros((edge_nf,), jnp.float32),
        var_ln_g=jnp.ones((var_nf,), jnp.float32),
        var_ln_b=jnp.zeros((var_nf,), jnp.float32),
        var_W1=var_W1, var_b1=var_b1, var_W2=var_W2, var_b2=var_b2,
        conv_v_to_c=_init_conv(ks[7]), conv_c_to_v=_init_conv(ks[8]),
        conv_v_to_c2=_init_conv(ks[9]), conv_c_to_v2=_init_conv(ks[10]),
        out_W1=out_W1, out_b1=out_b1, out_W2=out_W2,
    )


# ------------------------------- forward -----------------------------------

def gnn_policy_forward(params, cons_feats, edge_indices, edge_feats, var_feats,
                       group_feats):
    del edge_feats  # LayerNorm(1 feature) == its beta -> folded into a constant bias
    n_cons = cons_feats.shape[0]
    n_vars = var_feats.shape[0]
    n_edges = edge_indices.shape[1]

    tm_c = _node_tile(n_cons)
    nc_pad = _round_up(n_cons, tm_c)
    tm_v = _node_tile(n_vars)
    nv_pad = _round_up(n_vars, tm_v)
    tmc_conv = _conv_node_tile(tm_c)
    tmv_conv = _conv_node_tile(tm_v)
    te = min(_MAX_EDGE_TILE, _round_up(max(n_edges, 1), 128))

    cons_idx = edge_indices[0].astype(jnp.int32)   # constraint side
    var_idx = edge_indices[1].astype(jnp.int32)    # variable side
    edge_beta = params["edge_ln_b"].reshape(1, 1).astype(jnp.float32)

    # Node rows stay padded (to a tile multiple) through the whole pipeline;
    # padded rows are never referenced by edge indices and are sliced at the end.
    c = embed_constraints(params, cons_feats, nc_pad, tm_c)               # (nc_pad, 64)
    v = embed_variables(params, var_feats, group_feats, nv_pad, tm_v)     # (nv_pad, 64)

    # conv_v_to_c: source = variable, target = constraint (reversed edges)
    c = bipartite_conv(params["conv_v_to_c"], edge_beta, v, c,
                       var_idx, cons_idx, nc_pad, tmc_conv, te)
    # conv_c_to_v: source = constraint, target = variable
    v = bipartite_conv(params["conv_c_to_v"], edge_beta, c, v,
                       cons_idx, var_idx, nv_pad, tmv_conv, te)
    c = bipartite_conv(params["conv_v_to_c2"], edge_beta, v, c,
                       var_idx, cons_idx, nc_pad, tmc_conv, te)
    v = bipartite_conv(params["conv_c_to_v2"], edge_beta, c, v,
                       cons_idx, var_idx, nv_pad, tmv_conv, te)

    out = output_head(params, v, nv_pad, tm_v)                            # (nv_pad, 1)
    return out[:n_vars, 0]                                                # squeeze(-1)


# --------------------------- pure-JAX reference -----------------------------

def _ln_ref(x, g, b):
    m = jnp.mean(x, axis=-1, keepdims=True)
    d = x - m
    v = jnp.mean(d * d, axis=-1, keepdims=True)
    return d * jax.lax.rsqrt(v + LN_EPS) * g + b


def _dot_hi(a, b):
    return jnp.dot(a, b, precision="highest")


def _conv_ref(p, left, right, src, tgt, ef_emb):
    h = (_dot_hi(right, p["Wl"])[tgt] + p["bl"]
         + _dot_hi(ef_emb, p["We"])
         + _dot_hi(left, p["Wr"])[src])
    h = jnp.maximum(_ln_ref(h, p["ln_g"], p["ln_b"]), 0.0)
    msg = _dot_hi(h, p["Wf"]) + p["bf"]
    agg = jnp.zeros((right.shape[0], EMB), jnp.float32).at[tgt].add(msg)
    pc = _ln_ref(agg, p["post_g"], p["post_b"])
    hh = jnp.maximum(
        _dot_hi(jnp.concatenate([pc, right], axis=-1), p["Wo1"]) + p["bo1"], 0.0)
    return _dot_hi(hh, p["Wo2"]) + p["bo2"]


def gnn_policy_reference(params, cons, edge_indices, ef, var, grp):
    cons_idx = edge_indices[0].astype(jnp.int32)
    var_idx = edge_indices[1].astype(jnp.int32)
    ge = jnp.maximum(_dot_hi(_ln_ref(grp, params["grp_ln_g"], params["grp_ln_b"]),
                             params["grp_W"]) + params["grp_b"], 0.0)
    c = _ln_ref(cons, params["cons_ln_g"], params["cons_ln_b"])
    c = jnp.maximum(_dot_hi(c, params["cons_W1"]) + params["cons_b1"], 0.0)
    c = jnp.maximum(_dot_hi(c, params["cons_W2"]) + params["cons_b2"], 0.0)
    v = _ln_ref(var, params["var_ln_g"], params["var_ln_b"])
    v = jnp.maximum(_dot_hi(v, params["var_W1"]) + params["var_b1"], 0.0)
    v = jnp.maximum(_dot_hi(v, params["var_W2"]) + params["var_b2"], 0.0) + ge
    ef_emb = _ln_ref(ef, params["edge_ln_g"], params["edge_ln_b"])
    c = _conv_ref(params["conv_v_to_c"], v, c, var_idx, cons_idx, ef_emb)
    v = _conv_ref(params["conv_c_to_v"], c, v, cons_idx, var_idx, ef_emb)
    c = _conv_ref(params["conv_v_to_c2"], v, c, var_idx, cons_idx, ef_emb)
    v = _conv_ref(params["conv_c_to_v2"], c, v, cons_idx, var_idx, ef_emb)
    out = jnp.maximum(_dot_hi(v, params["out_W1"]) + params["out_b1"], 0.0)
    return _dot_hi(out, params["out_W2"])[:, 0]


if __name__ == "__main__":
    n_cons, n_vars, n_edges, n_group = 12, 10, 24, 5

    key = jax.random.PRNGKey(0)
    kp, kc, kv, kg, ke, ki0, ki1 = jax.random.split(key, 7)

    params = init_params(kp, n_group)

    constraint_features = jax.random.normal(kc, (n_cons, 3), jnp.float32)
    variable_features = jax.random.normal(kv, (n_vars, 6), jnp.float32)
    group_features = jax.random.normal(kg, (n_vars, n_group), jnp.float32)
    edge_features = jax.random.normal(ke, (n_edges, 1), jnp.float32)
    edge_indices = jnp.stack([
        jax.random.randint(ki0, (n_edges,), 0, n_cons, jnp.int32),
        jax.random.randint(ki1, (n_edges,), 0, n_vars, jnp.int32),
    ], axis=0)

    fwd = jax.jit(gnn_policy_forward)
    out = fwd(params, constraint_features, edge_indices, edge_features,
              variable_features, group_features)
    out = jax.block_until_ready(out)

    ref = gnn_policy_reference(params, constraint_features, edge_indices,
                               edge_features, variable_features, group_features)

    assert out.shape == (n_vars,) and out.dtype == jnp.float32
    assert bool(jnp.all(jnp.isfinite(out)))
    assert bool(jnp.allclose(out, ref, rtol=1e-1, atol=5e-2)), \
        float(jnp.max(jnp.abs(out - ref)))
    print("KERNEL_OK")
</pallas_src>

<mosaic_0001>
module attributes {stable_mosaic.version = 11 : i64} {
  func.func @_embed_cons_kernel(%arg0: i32, %arg1: memref<16x3xf32, #tpu.memory_space<vmem>>, %arg2: memref<1x3xf32, #tpu.memory_space<vmem>>, %arg3: memref<1x3xf32, #tpu.memory_space<vmem>>, %arg4: memref<3x64xf32, #tpu.memory_space<vmem>>, %arg5: memref<1x64xf32, #tpu.memory_space<vmem>>, %arg6: memref<64x64xbf16, #tpu.memory_space<vmem>>, %arg7: memref<1x64xf32, #tpu.memory_space<vmem>>, %arg8: memref<16x64xf32, #tpu.memory_space<vmem>>) attributes {dimension_semantics = [#tpu.dimension_semantics<parallel>], iteration_bounds = array<i64: 1>, scalar_prefetch = 0 : i64, scratch_operands = 0 : i64, tpu.core_type = #tpu.core_type<tc>, window_params = [{transform_indices = @transform_0, window_bounds = array<i64: 16, 3>}, {pipeline_mode = #tpu.pipeline_mode<synchronous>, transform_indices = @transform_1, window_bounds = array<i64: 1, 3>}, {pipeline_mode = #tpu.pipeline_mode<synchronous>, transform_indices = @transform_2, window_bounds = array<i64: 1, 3>}, {pipeline_mode = #tpu.pipeline_mode<synchronous>, transform_indices = @transform_3, window_bounds = array<i64: 3, 64>}, {pipeline_mode = #tpu.pipeline_mode<synchronous>, transform_indices = @transform_4, window_bounds = array<i64: 1, 64>}, {pipeline_mode = #tpu.pipeline_mode<synchronous>, transform_indices = @transform_5, window_bounds = array<i64: 64, 64>}, {pipeline_mode = #tpu.pipeline_mode<synchronous>, transform_indices = @transform_6, window_bounds = array<i64: 1, 64>}, {transform_indices = @transform_7, window_bounds = array<i64: 16, 64>}]} {
    %c0 = arith.constant 0 : index
    %c0_0 = arith.constant 0 : index
    %0 = vector.load %arg1[%c0, %c0_0] : memref<16x3xf32, #tpu.memory_space<vmem>>, vector<16x3xf32>
    %c0_1 = arith.constant 0 : index
    %c0_2 = arith.constant 0 : index
    %1 = vector.load %arg2[%c0_1, %c0_2] : memref<1x3xf32, #tpu.memory_space<vmem>>, vector<1x3xf32>
    %c0_3 = arith.constant 0 : index
    %c0_4 = arith.constant 0 : index
    %2 = vector.load %arg3[%c0_3, %c0_4] : memref<1x3xf32, #tpu.memory_space<vmem>>, vector<1x3xf32>
    %cst = arith.constant dense<0.000000e+00> : vector<16xf32>
    %3 = vector.multi_reduction <add>, %0, %cst [1] : vector<16x3xf32> to vector<16xf32>
    %4 = vector.shape_cast %3 : vector<16xf32> to vector<16x1xf32>
    %cst_5 = arith.constant 3.000000e+00 : f32
    %5 = vector.broadcast %cst_5 : f32 to vector<16x1xf32>
    %6 = arith.divf %4, %5 : vector<16x1xf32>
    %7 = vector.broadcast %6 : vector<16x1xf32> to vector<16x3xf32>
    %8 = arith.subf %0, %7 : vector<16x3xf32>
    %9 = arith.mulf %8, %8 : vector<16x3xf32>
    %cst_6 = arith.constant dense<0.000000e+00> : vector<16xf32>
    %10 = vector.multi_reduction <add>, %9, %cst_6 [1] : vector<16x3xf32> to vector<16xf32>
    %11 = vector.shape_cast %10 : vector<16xf32> to vector<16x1xf32>
    %cst_7 = arith.constant 3.000000e+00 : f32
    %12 = vector.broadcast %cst_7 : f32 to vector<16x1xf32>
    %13 = arith.divf %11, %12 : vector<16x1xf32>
    %cst_8 = arith.constant 9.99999974E-6 : f32
    %14 = vector.broadcast %cst_8 : f32 to vector<16x1xf32>
    %15 = arith.addf %13, %14 : vector<16x1xf32>
    %16 = math.rsqrt %15 : vector<16x1xf32>
    %17 = vector.broadcast %16 : vector<16x1xf32> to vector<16x3xf32>
    %18 = arith.mulf %8, %17 : vector<16x3xf32>
    %19 = vector.broadcast %1 : vector<1x3xf32> to vector<16x3xf32>
    %20 = arith.mulf %18, %19 : vector<16x3xf32>
    %21 = vector.broadcast %2 : vector<1x3xf32> to vector<16x3xf32>
    %22 = arith.addf %20, %21 : vector<16x3xf32>
    %c0_9 = arith.constant 0 : index
    %c0_10 = arith.constant 0 : index
    %23 = vector.load %arg4[%c0_9, %c0_10] : memref<3x64xf32, #tpu.memory_space<vmem>>, vector<3x64xf32>
    %cst_11 = arith.constant dense<0.000000e+00> : vector<16x64xf32>
    %24 = tpu.matmul %22, %23, %cst_11 {dimension_numbers = #tpu.dot_dimension_numbers<[1], [0], [0], [1], [0, 0, 1, 1], [], []>} : vector<16x3xf32>, vector<3x64xf32>, vector<16x64xf32> -> vector<16x64xf32>
    %c0_12 = arith.constant 0 : index
    %c0_13 = arith.constant 0 : index
    %25 = vector.load %arg5[%c0_12, %c0_13] : memref<1x64xf32, #tpu.memory_space<vmem>>, vector<1x64xf32>
    %26 = vector.broadcast %25 : vector<1x64xf32> to vector<16x64xf32>
    %27 = arith.addf %24, %26 : vector<16x64xf32>
    %cst_14 = arith.constant 0.000000e+00 : f32
    %28 = vector.broadcast %cst_14 : f32 to vector<16x64xf32>
    %29 = arith.maximumf %27, %28 : vector<16x64xf32>
    %30 = arith.truncf %29 : vector<16x64xf32> to vector<16x64xbf16>
    %c0_15 = arith.constant 0 : index
    %c0_16 = arith.constant 0 : index
    %31 = vector.load %arg6[%c0_15, %c0_16] : memref<64x64xbf16, #tpu.memory_space<vmem>>, vector<64x64xbf16>
    %cst_17 = arith.constant dense<0.000000e+00> : vector<16x64xf32>
    %32 = tpu.matmul %30, %31, %cst_17 {dimension_numbers = #tpu.dot_dimension_numbers<[1], [0], [0], [1], [0, 0, 1, 1], [], []>} : vector<16x64xbf16>, vector<64x64xbf16>, vector<16x64xf32> -> vector<16x64xf32>
    %c0_18 = arith.constant 0 : index
    %c0_19 = arith.constant 0 : index
    %33 = vector.load %arg7[%c0_18, %c0_19] : memref<1x64xf32, #tpu.memory_space<vmem>>, vector<1x64xf32>
    %34 = vector.broadcast %33 : vector<1x64xf32> to vector<16x64xf32>
    %35 = arith.addf %32, %34 : vector<16x64xf32>
    %cst_20 = arith.constant 0.000000e+00 : f32
    %36 = vector.broadcast %cst_20 : f32 to vector<16x64xf32>
    %37 = arith.maximumf %35, %36 : vector<16x64xf32>
    %c0_21 = arith.constant 0 : index
    %c0_22 = arith.constant 0 : index
    %38 = vector.load %arg8[%c0_21, %c0_22] : memref<16x64xf32, #tpu.memory_space<vmem>>, vector<16x64xf32>
    tpu.vector_store %arg8[%c0_21, %c0_22], %37 {strides = array<i32>} : memref<16x64xf32, #tpu.memory_space<vmem>>, vector<16x64xf32>,
    return
  }
  func.func @transform_0(%arg0: i32) -> (i32, i32) {
    %c0_i32 = arith.constant 0 : i32
    %c0_i32_0 = arith.constant 0 : i32
    return %arg0, %c0_i32 : i32, i32
  }
  func.func @transform_1(%arg0: i32) -> (i32, i32) {
    %c0_i32 = arith.constant 0 : i32
    %c0_i32_0 = arith.constant 0 : i32
    %c0_i32_1 = arith.constant 0 : i32
    return %c0_i32, %c0_i32_0 : i32, i32
  }
  func.func @transform_2(%arg0: i32) -> (i32, i32) {
    %c0_i32 = arith.constant 0 : i32
    %c0_i32_0 = arith.constant 0 : i32
    %c0_i32_1 = arith.constant 0 : i32
    return %c0_i32, %c0_i32_0 : i32, i32
  }
  func.func @transform_3(%arg0: i32) -> (i32, i32) {
    %c0_i32 = arith.constant 0 : i32
    %c0_i32_0 = arith.constant 0 : i32
    %c0_i32_1 = arith.constant 0 : i32
    return %c0_i32, %c0_i32_0 : i32, i32
  }
  func.func @transform_4(%arg0: i32) -> (i32, i32) {
    %c0_i32 = arith.constant 0 : i32
    %c0_i32_0 = arith.constant 0 : i32
    %c0_i32_1 = arith.constant 0 : i32
    return %c0_i32, %c0_i32_0 : i32, i32
  }
  func.func @transform_5(%arg0: i32) -> (i32, i32) {
    %c0_i32 = arith.constant 0 : i32
    %c0_i32_0 = arith.constant 0 : i32
    %c0_i32_1 = arith.constant 0 : i32
    return %c0_i32, %c0_i32_0 : i32, i32
  }
  func.func @transform_6(%arg0: i32) -> (i32, i32) {
    %c0_i32 = arith.constant 0 : i32
    %c0_i32_0 = arith.constant 0 : i32
    %c0_i32_1 = arith.constant 0 : i32
    return %c0_i32, %c0_i32_0 : i32, i32
  }
  func.func @transform_7(%arg0: i32) -> (i32, i32) {
    %c0_i32 = arith.constant 0 : i32
    %c0_i32_0 = arith.constant 0 : i32
    return %arg0, %c0_i32 : i32, i32
  }
}

module attributes {stable_mosaic.version = 11 : i64} {
  func.func @_conv_kernel(%arg0: i32, %arg1: memref<2xi32, #tpu.memory_space<smem>>, %arg2: memref<2xi32, #tpu.memory_space<smem>>, %arg3: memref<2xi32, #tpu.memory_space<smem>>, %arg4: memref<1x128xi32, #tpu.memory_space<vmem>>, %arg5: memref<128x64xf32, #tpu.memory_space<vmem>>, %arg6: memref<16x64xf32, #tpu.memory_space<vmem>>, %arg7: memref<1x64xf32, #tpu.memory_space<vmem>>, %arg8: memref<1x64xf32, #tpu.memory_space<vmem>>, %arg9: memref<1x64xf32, #tpu.memory_space<vmem>>, %arg10: memref<64x64xbf16, #tpu.memory_space<vmem>>, %arg11: memref<1x64xf32, #tpu.memory_space<vmem>>, %arg12: memref<1x64xf32, #tpu.memory_space<vmem>>, %arg13: memref<1x64xf32, #tpu.memory_space<vmem>>, %arg14: memref<64x64xbf16, #tpu.memory_space<vmem>>, %arg15: memref<64x64xbf16, #tpu.memory_space<vmem>>, %arg16: memref<1x64xf32, #tpu.memory_space<vmem>>, %arg17: memref<64x64xbf16, #tpu.memory_space<vmem>>, %arg18: memref<1x64xf32, #tpu.memory_space<vmem>>, %arg19: memref<16x64xf32, #tpu.memory_space<vmem>>) attributes {dimension_semantics = [#tpu.dimension_semantics<arbitrary>], iteration_bounds = array<i64: 2>, scalar_prefetch = 3 : i64, scratch_operands = 0 : i64, tpu.core_type = #tpu.core_type<tc>, window_params = [{transform_indices = @transform_0, window_bounds = array<i64: 1, 128>}, {transform_indices = @transform_1, window_bounds = array<i64: 128, 64>}, {transform_indices = @transform_2, window_bounds = array<i64: 16, 64>}, {pipeline_mode = #tpu.pipeline_mode<synchronous>, transform_indices = @transform_3, window_bounds = array<i64: 1, 64>}, {pipeline_mode = #tpu.pipeline_mode<synchronous>, transform_indices = @transform_4, window_bounds = array<i64: 1, 64>}, {pipeline_mode = #tpu.pipeline_mode<synchronous>, transform_indices = @transform_5, window_bounds = array<i64: 1, 64>}, {pipeline_mode = #tpu.pipeline_mode<synchronous>, transform_indices = @transform_6, window_bounds = array<i64: 64, 64>}, {pipeline_mode = #tpu.pipeline_mode<synchronous>, transform_indices = @transform_7, window_bounds = array<i64: 1, 64>}, {pipeline_mode = #tpu.pipeline_mode<synchronous>, transform_indices = @transform_8, window_bounds = array<i64: 1, 64>}, {pipeline_mode = #tpu.pipeline_mode<synchronous>, transform_indices = @transform_9, window_bounds = array<i64: 1, 64>}, {pipeline_mode = #tpu.pipeline_mode<synchronous>, transform_indices = @transform_10, window_bounds = array<i64: 64, 64>}, {pipeline_mode = #tpu.pipeline_mode<synchronous>, transform_indices = @transform_11, window_bounds = array<i64: 64, 64>}, {pipeline_mode = #tpu.pipeline_mode<synchronous>, transform_indices = @transform_12, window_bounds = array<i64: 1, 64>}, {pipeline_mode = #tpu.pipeline_mode<synchronous>, transform_indices = @transform_13, window_bounds = array<i64: 64, 64>}, {pipeline_mode = #tpu.pipeline_mode<synchronous>, transform_indices = @transform_14, window_bounds = array<i64: 1, 64>}, {transform_indices = @transform_15, window_bounds = array<i64: 16, 64>}]} {
    %0 = arith.index_cast %arg0 : i32 to index
    %1 = memref.load %arg1[%0] : memref<2xi32, #tpu.memory_space<smem>>
    %2 = arith.index_cast %arg0 : i32 to index
    %3 = memref.load %arg2[%2] : memref<2xi32, #tpu.memory_space<smem>>
    %c1_i32 = arith.constant 1 : i32
    %4 = arith.cmpi eq, %3, %c1_i32 : i32
    %5 = arith.extui %4 : i1 to i32
    %c0_i32 = arith.constant 0 : i32
    %6 = arith.cmpi ne, %5, %c0_i32 : i32
    scf.if %6 {
      %cst_26 = arith.constant 0.000000e+00 : f32
      %61 = vector.broadcast %cst_26 : f32 to vector<16x64xf32>
      %c0_27 = arith.constant 0 : index
      %c0_28 = arith.constant 0 : index
      %62 = vector.load %arg19[%c0_27, %c0_28] : memref<16x64xf32, #tpu.memory_space<vmem>>, vector<16x64xf32>
      tpu.vector_store %arg19[%c0_27, %c0_28], %61 {strides = array<i32>} : memref<16x64xf32, #tpu.memory_space<vmem>>, vector<16x64xf32>,
    } else {
    }
    %c0 = arith.constant 0 : index
    %c0_0 = arith.constant 0 : index
    %7 = vector.load %arg5[%c0, %c0_0] : memref<128x64xf32, #tpu.memory_space<vmem>>, vector<128x64xf32>
    %c0_1 = arith.constant 0 : index
    %c0_2 = arith.constant 0 : index
    %8 = vector.load %arg7[%c0_1, %c0_2] : memref<1x64xf32, #tpu.memory_space<vmem>>, vector<1x64xf32>
    %9 = vector.broadcast %8 : vector<1x64xf32> to vector<128x64xf32>
    %10 = arith.addf %7, %9 : vector<128x64xf32>
    %c0_3 = arith.constant 0 : index
    %c0_4 = arith.constant 0 : index
    %11 = vector.load %arg8[%c0_3, %c0_4] : memref<1x64xf32, #tpu.memory_space<vmem>>, vector<1x64xf32>
    %c0_5 = arith.constant 0 : index
    %c0_6 = arith.constant 0 : index
    %12 = vector.load %arg9[%c0_5, %c0_6] : memref<1x64xf32, #tpu.memory_space<vmem>>, vector<1x64xf32>
    %cst = arith.constant dense<0.000000e+00> : vector<128xf32>
    %13 = vector.multi_reduction <add>, %10, %cst [1] : vector<128x64xf32> to vector<128xf32>
    %14 = vector.shape_cast %13 : vector<128xf32> to vector<128x1xf32>
    %cst_7 = arith.constant 6.400000e+01 : f32
    %15 = vector.broadcast %cst_7 : f32 to vector<128x1xf32>
    %16 = arith.divf %14, %15 : vector<128x1xf32>
    %17 = vector.broadcast %16 : vector<128x1xf32> to vector<128x64xf32>
    %18 = arith.subf %10, %17 : vector<128x64xf32>
    %19 = arith.mulf %18, %18 : vector<128x64xf32>
    %cst_8 = arith.constant dense<0.000000e+00> : vector<128xf32>
    %20 = vector.multi_reduction <add>, %19, %cst_8 [1] : vector<128x64xf32> to vector<128xf32>
    %21 = vector.shape_cast %20 : vector<128xf32> to vector<128x1xf32>
    %cst_9 = arith.constant 6.400000e+01 : f32
    %22 = vector.broadcast %cst_9 : f32 to vector<128x1xf32>
    %23 = arith.divf %21, %22 : vector<128x1xf32>
    %cst_10 = arith.constant 9.99999974E-6 : f32
    %24 = vector.broadcast %cst_10 : f32 to vector<128x1xf32>
    %25 = arith.addf %23, %24 : vector<128x1xf32>
    %26 = math.rsqrt %25 : vector<128x1xf32>
    %27 = vector.broadcast %26 : vector<128x1xf32> to vector<128x64xf32>
    %28 = arith.mulf %18, %27 : vector<128x64xf32>
    %29 = vector.broadcast %11 : vector<1x64xf32> to vector<128x64xf32>
    %30 = arith.mulf %28, %29 : vector<128x64xf32>
    %31 = vector.broadcast %12 : vector<1x64xf32> to vector<128x64xf32>
    %32 = arith.addf %30, %31 : vector<128x64xf32>
    %cst_11 = arith.constant 0.000000e+00 : f32
    %33 = vector.broadcast %cst_11 : f32 to vector<128x64xf32>
    %34 = arith.maximumf %32, %33 : vector<128x64xf32>
    %35 = arith.truncf %34 : vector<128x64xf32> to vector<128x64xbf16>
    %c0_12 = arith.constant 0 : index
    %c0_13 = arith.constant 0 : index
    %36 = vector.load %arg10[%c0_12, %c0_13] : memref<64x64xbf16, #tpu.memory_space<vmem>>, vector<64x64xbf16>
    %cst_14 = arith.constant dense<0.000000e+00> : vector<128x64xf32>
    %37 = tpu.matmul %35, %36, %cst_14 {dimension_numbers = #tpu.dot_dimension_numbers<[1], [0], [0], [1], [0, 0, 1, 1], [], []>} : vector<128x64xbf16>, vector<64x64xbf16>, vector<128x64xf32> -> vector<128x64xf32>
    %c0_15 = arith.constant 0 : index
    %c0_16 = arith.constant 0 : index
    %38 = vector.load %arg11[%c0_15, %c0_16] : memref<1x64xf32, #tpu.memory_space<vmem>>, vector<1x64xf32>
    %39 = vector.broadcast %38 : vector<1x64xf32> to vector<128x64xf32>
    %40 = arith.addf %37, %39 : vector<128x64xf32>
    %41 = tpu.iota {dimensions = array<i32: 0>} : vector<16x128xi32>
    %c16_i32 = arith.constant 16 : i32
    %42 = arith.muli %1, %c16_i32 : i32
    %43 = vector.broadcast %42 : i32 to vector<16x128xi32>
    %44 = arith.addi %41, %43 : vector<16x128xi32>
    %c0_17 = arith.constant 0 : index
    %c0_18 = arith.constant 0 : index
    %45 = vector.load %arg4[%c0_17, %c0_18] : memref<1x128xi32, #tpu.memory_space<vmem>>, vector<1x128xi32>
    %46 = vector.broadcast %45 : vector<1x128xi32> to vector<16x128xi32>
    %47 = arith.cmpi eq, %44, %46 : vector<16x128xi32>
    %48 = arith.extui %47 : vector<16x128xi1> to vector<16x128xi32>
    %49 = arith.sitofp %48 : vector<16x128xi32> to vector<16x128xf32>
    %50 = arith.truncf %49 : vector<16x128xf32> to vector<16x128xbf16>
    %c0_19 = arith.constant 0 : index
    %c0_20 = arith.constant 0 : index
    %51 = vector.load %arg19[%c0_19, %c0_20] : memref<16x64xf32, #tpu.memory_space<vmem>>, vector<16x64xf32>
    %52 = arith.truncf %40 : vector<128x64xf32> to vector<128x64xbf16>
    %cst_21 = arith.constant dense<0.000000e+00> : vector<16x64xf32>
    %53 = tpu.matmul %50, %52, %cst_21 {dimension_numbers = #tpu.dot_dimension_numbers<[1], [0], [0], [1], [0, 0, 1, 1], [], []>} : vector<16x128xbf16>, vector<128x64xbf16>, vector<16x64xf32> -> vector<16x64xf32>
    %54 = arith.addf %51, %53 : vector<16x64xf32>
    %c0_22 = arith.constant 0 : index
    %c0_23 = arith.constant 0 : index
    %55 = vector.load %arg19[%c0_22, %c0_23] : memref<16x64xf32, #tpu.memory_space<vmem>>, vector<16x64xf32>
    tpu.vector_store %arg19[%c0_22, %c0_23], %54 {strides = array<i32>} : memref<16x64xf32, #tpu.memory_space<vmem>>, vector<16x64xf32>,
    %56 = arith.index_cast %arg0 : i32 to index
    %57 = memref.load %arg3[%56] : memref<2xi32, #tpu.memory_space<smem>>
    %c1_i32_24 = arith.constant 1 : i32
    %58 = arith.cmpi eq, %57, %c1_i32_24 : i32
    %59 = arith.extui %58 : i1 to i32
    %c0_i32_25 = arith.constant 0 : i32
    %60 = arith.cmpi ne, %59, %c0_i32_25 : i32
    scf.if %60 {
      %c0_26 = arith.constant 0 : index
      %c0_27 = arith.constant 0 : index
      %61 = vector.load %arg19[%c0_26, %c0_27] : memref<16x64xf32, #tpu.memory_space<vmem>>, vector<16x64xf32>
      %c0_28 = arith.constant 0 : index
      %c0_29 = arith.constant 0 : index
      %62 = vector.load %arg12[%c0_28, %c0_29] : memref<1x64xf32, #tpu.memory_space<vmem>>, vector<1x64xf32>
      %c0_30 = arith.constant 0 : index
      %c0_31 = arith.constant 0 : index
      %63 = vector.load %arg13[%c0_30, %c0_31] : memref<1x64xf32, #tpu.memory_space<vmem>>, vector<1x64xf32>
      %cst_32 = arith.constant dense<0.000000e+00> : vector<16xf32>
      %64 = vector.multi_reduction <add>, %61, %cst_32 [1] : vector<16x64xf32> to vector<16xf32>
      %65 = vector.shape_cast %64 : vector<16xf32> to vector<16x1xf32>
      %cst_33 = arith.constant 6.400000e+01 : f32
      %66 = vector.broadcast %cst_33 : f32 to vector<16x1xf32>
      %67 = arith.divf %65, %66 : vector<16x1xf32>
      %68 = vector.broadcast %67 : vector<16x1xf32> to vector<16x64xf32>
      %69 = arith.subf %61, %68 : vector<16x64xf32>
      %70 = arith.mulf %69, %69 : vector<16x64xf32>
      %cst_34 = arith.constant dense<0.000000e+00> : vector<16xf32>
      %71 = vector.multi_reduction <add>, %70, %cst_34 [1] : vector<16x64xf32> to vector<16xf32>
      %72 = vector.shape_cast %71 : vector<16xf32> to vector<16x1xf32>
      %cst_35 = arith.constant 6.400000e+01 : f32
      %73 = vector.broadcast %cst_35 : f32 to vector<16x1xf32>
      %74 = arith.divf %72, %73 : vector<16x1xf32>
      %cst_36 = arith.constant 9.99999974E-6 : f32
      %75 = vector.broadcast %cst_36 : f32 to vector<16x1xf32>
      %76 = arith.addf %74, %75 : vector<16x1xf32>
      %77 = math.rsqrt %76 : vector<16x1xf32>
      %78 = vector.broadcast %77 : vector<16x1xf32> to vector<16x64xf32>
      %79 = arith.mulf %69, %78 : vector<16x64xf32>
      %80 = vector.broadcast %62 : vector<1x64xf32> to vector<16x64xf32>
      %81 = arith.mulf %79, %80 : vector<16x64xf32>
      %82 = vector.broadcast %63 : vector<1x64xf32> to vector<16x64xf32>
      %83 = arith.addf %81, %82 : vector<16x64xf32>
      %84 = arith.truncf %83 : vector<16x64xf32> to vector<16x64xbf16>
      %c0_37 = arith.constant 0 : index
      %c0_38 = arith.constant 0 : index
      %85 = vector.load %arg14[%c0_37, %c0_38] : memref<64x64xbf16, #tpu.memory_space<vmem>>, vector<64x64xbf16>
      %cst_39 = arith.constant dense<0.000000e+00> : vector<16x64xf32>
      %86 = tpu.matmul %84, %85, %cst_39 {dimension_numbers = #tpu.dot_dimension_numbers<[1], [0], [0], [1], [0, 0, 1, 1], [], []>} : vector<16x64xbf16>, vector<64x64xbf16>, vector<16x64xf32> -> vector<16x64xf32>
      %c0_40 = arith.constant 0 : index
      %c0_41 = arith.constant 0 : index
      %87 = vector.load %arg6[%c0_40, %c0_41] : memref<16x64xf32, #tpu.memory_space<vmem>>, vector<16x64xf32>
      %88 = arith.truncf %87 : vector<16x64xf32> to vector<16x64xbf16>
      %c0_42 = arith.constant 0 : index
      %c0_43 = arith.constant 0 : index
      %89 = vector.load %arg15[%c0_42, %c0_43] : memref<64x64xbf16, #tpu.memory_space<vmem>>, vector<64x64xbf16>
      %cst_44 = arith.constant dense<0.000000e+00> : vector<16x64xf32>
      %90 = tpu.matmul %88, %89, %cst_44 {dimension_numbers = #tpu.dot_dimension_numbers<[1], [0], [0], [1], [0, 0, 1, 1], [], []>} : vector<16x64xbf16>, vector<64x64xbf16>, vector<16x64xf32> -> vector<16x64xf32>
      %91 = arith.addf %86, %90 : vector<16x64xf32>
      %c0_45 = arith.constant 0 : index
      %c0_46 = arith.constant 0 : index
      %92 = vector.load %arg16[%c0_45, %c0_46] : memref<1x64xf32, #tpu.memory_space<vmem>>, vector<1x64xf32>
      %93 = vector.broadcast %92 : vector<1x64xf32> to vector<16x64xf32>
      %94 = arith.addf %91, %93 : vector<16x64xf32>
      %cst_47 = arith.constant 0.000000e+00 : f32
      %95 = vector.broadcast %cst_47 : f32 to vector<16x64xf32>
      %96 = arith.maximumf %94, %95 : vector<16x64xf32>
      %97 = arith.truncf %96 : vector<16x64xf32> to vector<16x64xbf16>
      %c0_48 = arith.constant 0 : index
      %c0_49 = arith.constant 0 : index
      %98 = vector.load %arg17[%c0_48, %c0_49] : memref<64x64xbf16, #tpu.memory_space<vmem>>, vector<64x64xbf16>
      %cst_50 = arith.constant dense<0.000000e+00> : vector<16x64xf32>
      %99 = tpu.matmul %97, %98, %cst_50 {dimension_numbers = #tpu.dot_dimension_numbers<[1], [0], [0], [1], [0, 0, 1, 1], [], []>} : vector<16x64xbf16>, vector<64x64xbf16>, vector<16x64xf32> -> vector<16x64xf32>
      %c0_51 = arith.constant 0 : index
      %c0_52 = arith.constant 0 : index
      %100 = vector.load %arg18[%c0_51, %c0_52] : memref<1x64xf32, #tpu.memory_space<vmem>>, vector<1x64xf32>
      %101 = vector.broadcast %100 : vector<1x64xf32> to vector<16x64xf32>
      %102 = arith.addf %99, %101 : vector<16x64xf32>
      %c0_53 = arith.constant 0 : index
      %c0_54 = arith.constant 0 : index
      %103 = vector.load %arg19[%c0_53, %c0_54] : memref<16x64xf32, #tpu.memory_space<vmem>>, vector<16x64xf32>
      tpu.vector_store %arg19[%c0_53, %c0_54], %102 {strides = array<i32>} : memref<16x64xf32, #tpu.memory_space<vmem>>, vector<16x64xf32>,
    } else {
    }
    return
  }
  func.func @transform_0(%arg0: i32, %arg1: memref<2xi32, #tpu.memory_space<smem>>, %arg2: memref<2xi32, #tpu.memory_space<smem>>, %arg3: memref<2xi32, #tpu.memory_space<smem>>) -> (i32, i32) {
    %c0_i32 = arith.constant 0 : i32
    %c0_i32_0 = arith.constant 0 : i32
    return %c0_i32, %arg0 : i32, i32
  }
  func.func @transform_1(%arg0: i32, %arg1: memref<2xi32, #tpu.memory_space<smem>>, %arg2: memref<2xi32, #tpu.memory_space<smem>>, %arg3: memref<2xi32, #tpu.memory_space<smem>>) -> (i32, i32) {
    %c0_i32 = arith.constant 0 : i32
    %c0_i32_0 = arith.constant 0 : i32
    return %arg0, %c0_i32 : i32, i32
  }
  func.func @transform_2(%arg0: i32, %arg1: memref<2xi32, #tpu.memory_space<smem>>, %arg2: memref<2xi32, #tpu.memory_space<smem>>, %arg3: memref<2xi32, #tpu.memory_space<smem>>) -> (i32, i32) {
    %0 = arith.index_cast %arg0 : i32 to index
    %1 = memref.load %arg1[%0] : memref<2xi32, #tpu.memory_space<smem>>
    %c0_i32 = arith.constant 0 : i32
    %c0_i32_0 = arith.constant 0 : i32
    return %1, %c0_i32 : i32, i32
  }
  func.func @transform_3(%arg0: i32, %arg1: memref<2xi32, #tpu.memory_space<smem>>, %arg2: memref<2xi32, #tpu.memory_space<smem>>, %arg3: memref<2xi32, #tpu.memory_space<smem>>) -> (i32, i32) {
    %c0_i32 = arith.constant 0 : i32
    %c0_i32_0 = arith.constant 0 : i32
    %c0_i32_1 = arith.constant 0 : i32
    return %c0_i32, %c0_i32_0 : i32, i32
  }
  func.func @transform_4(%arg0: i32, %arg1: memref<2xi32, #tpu.memory_space<smem>>, %arg2: memref<2xi32, #tpu.memory_space<smem>>, %arg3: memref<2xi32, #tpu.memory_space<smem>>) -> (i32, i32) {
    %c0_i32 = arith.constant 0 : i32
    %c0_i32_0 = arith.constant 0 : i32
    %c0_i32_1 = arith.constant 0 : i32
    return %c0_i32, %c0_i32_0 : i32, i32
  }
  func.func @transform_5(%arg0: i32, %arg1: memref<2xi32, #tpu.memory_space<smem>>, %arg2: memref<2xi32, #tpu.memory_space<smem>>, %arg3: memref<2xi32, #tpu.memory_space<smem>>) -> (i32, i32) {
    %c0_i32 = arith.constant 0 : i32
    %c0_i32_0 = arith.constant 0 : i32
    %c0_i32_1 = arith.constant 0 : i32
    return %c0_i32, %c0_i32_0 : i32, i32
  }
  func.func @transform_6(%arg0: i32, %arg1: memref<2xi32, #tpu.memory_space<smem>>, %arg2: memref<2xi32, #tpu.memory_space<smem>>, %arg3: memref<2xi32, #tpu.memory_space<smem>>) -> (i32, i32) {
    %c0_i32 = arith.constant 0 : i32
    %c0_i32_0 = arith.constant 0 : i32
    %c0_i32_1 = arith.constant 0 : i32
    return %c0_i32, %c0_i32_0 : i32, i32
  }
  func.func @transform_7(%arg0: i32, %arg1: memref<2xi32, #tpu.memory_space<smem>>, %arg2: memref<2xi32, #tpu.memory_space<smem>>, %arg3: memref<2xi32, #tpu.memory_space<smem>>) -> (i32, i32) {
    %c0_i32 = arith.constant 0 : i32
    %c0_i32_0 = arith.constant 0 : i32
    %c0_i32_1 = arith.constant 0 : i32
    return %c0_i32, %c0_i32_0 : i32, i32
  }
  func.func @transform_8(%arg0: i32, %arg1: memref<2xi32, #tpu.memory_space<smem>>, %arg2: memref<2xi32, #tpu.memory_space<smem>>, %arg3: memref<2xi32, #tpu.memory_space<smem>>) -> (i32, i32) {
    %c0_i32 = arith.constant 0 : i32
    %c0_i32_0 = arith.constant 0 : i32
    %c0_i32_1 = arith.constant 0 : i32
    return %c0_i32, %c0_i32_0 : i32, i32
  }
  func.func @transform_9(%arg0: i32, %arg1: memref<2xi32, #tpu.memory_space<smem>>, %arg2: memref<2xi32, #tpu.memory_space<smem>>, %arg3: memref<2xi32, #tpu.memory_space<smem>>) -> (i32, i32) {
    %c0_i32 = arith.constant 0 : i32
    %c0_i32_0 = arith.constant 0 : i32
    %c0_i32_1 = arith.constant 0 : i32
    return %c0_i32, %c0_i32_0 : i32, i32
  }
  func.func @transform_10(%arg0: i32, %arg1: memref<2xi32, #tpu.memory_space<smem>>, %arg2: memref<2xi32, #tpu.memory_space<smem>>, %arg3: memref<2xi32, #tpu.memory_space<smem>>) -> (i32, i32) {
    %c0_i32 = arith.constant 0 : i32
    %c0_i32_0 = arith.constant 0 : i32
    %c0_i32_1 = arith.constant 0 : i32
    return %c0_i32, %c0_i32_0 : i32, i32
  }
  func.func @transform_11(%arg0: i32, %arg1: memref<2xi32, #tpu.memory_space<smem>>, %arg2: memref<2xi32, #tpu.memory_space<smem>>, %arg3: memref<2xi32, #tpu.memory_space<smem>>) -> (i32, i32) {
    %c0_i32 = arith.constant 0 : i32
    %c0_i32_0 = arith.constant 0 : i32
    %c0_i32_1 = arith.constant 0 : i32
    return %c0_i32, %c0_i32_0 : i32, i32
  }
  func.func @transform_12(%arg0: i32, %arg1: memref<2xi32, #tpu.memory_space<smem>>, %arg2: memref<2xi32, #tpu.memory_space<smem>>, %arg3: memref<2xi32, #tpu.memory_space<smem>>) -> (i32, i32) {
    %c0_i32 = arith.constant 0 : i32
    %c0_i32_0 = arith.constant 0 : i32
    %c0_i32_1 = arith.constant 0 : i32
    return %c0_i32, %c0_i32_0 : i32, i32
  }
  func.func @transform_13(%arg0: i32, %arg1: memref<2xi32, #tpu.memory_space<smem>>, %arg2: memref<2xi32, #tpu.memory_space<smem>>, %arg3: memref<2xi32, #tpu.memory_space<smem>>) -> (i32, i32) {
    %c0_i32 = arith.constant 0 : i32
    %c0_i32_0 = arith.constant 0 : i32
    %c0_i32_1 = arith.constant 0 : i32
    return %c0_i32, %c0_i32_0 : i32, i32
  }
  func.func @transform_14(%arg0: i32, %arg1: memref<2xi32, #tpu.memory_space<smem>>, %arg2: memref<2xi32, #tpu.memory_space<smem>>, %arg3: memref<2xi32, #tpu.memory_space<smem>>) -> (i32, i32) {
    %c0_i32 = arith.constant 0 : i32
    %c0_i32_0 = arith.constant 0 : i32
    %c0_i32_1 = arith.constant 0 : i32
    return %c0_i32, %c0_i32_0 : i32, i32
  }
  func.func @transform_15(%arg0: i32, %arg1: memref<2xi32, #tpu.memory_space<smem>>, %arg2: memref<2xi32, #tpu.memory_space<smem>>, %arg3: memref<2xi32, #tpu.memory_space<smem>>) -> (i32, i32) {
    %0 = arith.index_cast %arg0 : i32 to index
    %1 = memref.load %arg1[%0] : memref<2xi32, #tpu.memory_space<smem>>
    %c0_i32 = arith.constant 0 : i32
    %c0_i32_0 = arith.constant 0 : i32
    return %1, %c0_i32 : i32, i32
  }
}

module attributes {stable_mosaic.version = 11 : i64} {
  func.func @_embed_var_kernel(%arg0: i32, %arg1: memref<16x6xf32, #tpu.memory_space<vmem>>, %arg2: memref<16x5xf32, #tpu.memory_space<vmem>>, %arg3: memref<1x6xf32, #tpu.memory_space<vmem>>, %arg4: memref<1x6xf32, #tpu.memory_space<vmem>>, %arg5: memref<6x64xf32, #tpu.memory_space<vmem>>, %arg6: memref<1x64xf32, #tpu.memory_space<vmem>>, %arg7: memref<64x64xbf16, #tpu.memory_space<vmem>>, %arg8: memref<1x64xf32, #tpu.memory_space<vmem>>, %arg9: memref<1x5xf32, #tpu.memory_space<vmem>>, %arg10: memref<1x5xf32, #tpu.memory_space<vmem>>, %arg11: memref<5x64xf32, #tpu.memory_space<vmem>>, %arg12: memref<1x64xf32, #tpu.memory_space<vmem>>, %arg13: memref<16x64xf32, #tpu.memory_space<vmem>>) attributes {dimension_semantics = [#tpu.dimension_semantics<parallel>], iteration_bounds = array<i64: 1>, scalar_prefetch = 0 : i64, scratch_operands = 0 : i64, tpu.core_type = #tpu.core_type<tc>, window_params = [{transform_indices = @transform_0, window_bounds = array<i64: 16, 6>}, {transform_indices = @transform_1, window_bounds = array<i64: 16, 5>}, {pipeline_mode = #tpu.pipeline_mode<synchronous>, transform_indices = @transform_2, window_bounds = array<i64: 1, 6>}, {pipeline_mode = #tpu.pipeline_mode<synchronous>, transform_indices = @transform_3, window_bounds = array<i64: 1, 6>}, {pipeline_mode = #tpu.pipeline_mode<synchronous>, transform_indices = @transform_4, window_bounds = array<i64: 6, 64>}, {pipeline_mode = #tpu.pipeline_mode<synchronous>, transform_indices = @transform_5, window_bounds = array<i64: 1, 64>}, {pipeline_mode = #tpu.pipeline_mode<synchronous>, transform_indices = @transform_6, window_bounds = array<i64: 64, 64>}, {pipeline_mode = #tpu.pipeline_mode<synchronous>, transform_indices = @transform_7, window_bounds = array<i64: 1, 64>}, {pipeline_mode = #tpu.pipeline_mode<synchronous>, transform_indices = @transform_8, window_bounds = array<i64: 1, 5>}, {pipeline_mode = #tpu.pipeline_mode<synchronous>, transform_indices = @transform_9, window_bounds = array<i64: 1, 5>}, {pipeline_mode = #tpu.pipeline_mode<synchronous>, transform_indices = @transform_10, window_bounds = array<i64: 5, 64>}, {pipeline_mode = #tpu.pipeline_mode<synchronous>, transform_indices = @transform_11, window_bounds = array<i64: 1, 64>}, {transform_indices = @transform_12, window_bounds = array<i64: 16, 64>}]} {
    %c0 = arith.constant 0 : index
    %c0_0 = arith.constant 0 : index
    %0 = vector.load %arg1[%c0, %c0_0] : memref<16x6xf32, #tpu.memory_space<vmem>>, vector<16x6xf32>
    %c0_1 = arith.constant 0 : index
    %c0_2 = arith.constant 0 : index
    %1 = vector.load %arg3[%c0_1, %c0_2] : memref<1x6xf32, #tpu.memory_space<vmem>>, vector<1x6xf32>
    %c0_3 = arith.constant 0 : index
    %c0_4 = arith.constant 0 : index
    %2 = vector.load %arg4[%c0_3, %c0_4] : memref<1x6xf32, #tpu.memory_space<vmem>>, vector<1x6xf32>
    %cst = arith.constant dense<0.000000e+00> : vector<16xf32>
    %3 = vector.multi_reduction <add>, %0, %cst [1] : vector<16x6xf32> to vector<16xf32>
    %4 = vector.shape_cast %3 : vector<16xf32> to vector<16x1xf32>
    %cst_5 = arith.constant 6.000000e+00 : f32
    %5 = vector.broadcast %cst_5 : f32 to vector<16x1xf32>
    %6 = arith.divf %4, %5 : vector<16x1xf32>
    %7 = vector.broadcast %6 : vector<16x1xf32> to vector<16x6xf32>
    %8 = arith.subf %0, %7 : vector<16x6xf32>
    %9 = arith.mulf %8, %8 : vector<16x6xf32>
    %cst_6 = arith.constant dense<0.000000e+00> : vector<16xf32>
    %10 = vector.multi_reduction <add>, %9, %cst_6 [1] : vector<16x6xf32> to vector<16xf32>
    %11 = vector.shape_cast %10 : vector<16xf32> to vector<16x1xf32>
    %cst_7 = arith.constant 6.000000e+00 : f32
    %12 = vector.broadcast %cst_7 : f32 to vector<16x1xf32>
    %13 = arith.divf %11, %12 : vector<16x1xf32>
    %cst_8 = arith.constant 9.99999974E-6 : f32
    %14 = vector.broadcast %cst_8 : f32 to vector<16x1xf32>
    %15 = arith.addf %13, %14 : vector<16x1xf32>
    %16 = math.rsqrt %15 : vector<16x1xf32>
    %17 = vector.broadcast %16 : vector<16x1xf32> to vector<16x6xf32>
    %18 = arith.mulf %8, %17 : vector<16x6xf32>
    %19 = vector.broadcast %1 : vector<1x6xf32> to vector<16x6xf32>
    %20 = arith.mulf %18, %19 : vector<16x6xf32>
    %21 = vector.broadcast %2 : vector<1x6xf32> to vector<16x6xf32>
    %22 = arith.addf %20, %21 : vector<16x6xf32>
    %c0_9 = arith.constant 0 : index
    %c0_10 = arith.constant 0 : index
    %23 = vector.load %arg5[%c0_9, %c0_10] : memref<6x64xf32, #tpu.memory_space<vmem>>, vector<6x64xf32>
    %cst_11 = arith.constant dense<0.000000e+00> : vector<16x64xf32>
    %24 = tpu.matmul %22, %23, %cst_11 {dimension_numbers = #tpu.dot_dimension_numbers<[1], [0], [0], [1], [0, 0, 1, 1], [], []>} : vector<16x6xf32>, vector<6x64xf32>, vector<16x64xf32> -> vector<16x64xf32>
    %c0_12 = arith.constant 0 : index
    %c0_13 = arith.constant 0 : index
    %25 = vector.load %arg6[%c0_12, %c0_13] : memref<1x64xf32, #tpu.memory_space<vmem>>, vector<1x64xf32>
    %26 = vector.broadcast %25 : vector<1x64xf32> to vector<16x64xf32>
    %27 = arith.addf %24, %26 : vector<16x64xf32>
    %cst_14 = arith.constant 0.000000e+00 : f32
    %28 = vector.broadcast %cst_14 : f32 to vector<16x64xf32>
    %29 = arith.maximumf %27, %28 : vector<16x64xf32>
    %30 = arith.truncf %29 : vector<16x64xf32> to vector<16x64xbf16>
    %c0_15 = arith.constant 0 : index
    %c0_16 = arith.constant 0 : index
    %31 = vector.load %arg7[%c0_15, %c0_16] : memref<64x64xbf16, #tpu.memory_space<vmem>>, vector<64x64xbf16>
    %cst_17 = arith.constant dense<0.000000e+00> : vector<16x64xf32>
    %32 = tpu.matmul %30, %31, %cst_17 {dimension_numbers = #tpu.dot_dimension_numbers<[1], [0], [0], [1], [0, 0, 1, 1], [], []>} : vector<16x64xbf16>, vector<64x64xbf16>, vector<16x64xf32> -> vector<16x64xf32>
    %c0_18 = arith.constant 0 : index
    %c0_19 = arith.constant 0 : index
    %33 = vector.load %arg8[%c0_18, %c0_19] : memref<1x64xf32, #tpu.memory_space<vmem>>, vector<1x64xf32>
    %34 = vector.broadcast %33 : vector<1x64xf32> to vector<16x64xf32>
    %35 = arith.addf %32, %34 : vector<16x64xf32>
    %cst_20 = arith.constant 0.000000e+00 : f32
    %36 = vector.broadcast %cst_20 : f32 to vector<16x64xf32>
    %37 = arith.maximumf %35, %36 : vector<16x64xf32>
    %c0_21 = arith.constant 0 : index
    %c0_22 = arith.constant 0 : index
    %38 = vector.load %arg2[%c0_21, %c0_22] : memref<16x5xf32, #tpu.memory_space<vmem>>, vector<16x5xf32>
    %c0_23 = arith.constant 0 : index
    %c0_24 = arith.constant 0 : index
    %39 = vector.load %arg9[%c0_23, %c0_24] : memref<1x5xf32, #tpu.memory_space<vmem>>, vector<1x5xf32>
    %c0_25 = arith.constant 0 : index
    %c0_26 = arith.constant 0 : index
    %40 = vector.load %arg10[%c0_25, %c0_26] : memref<1x5xf32, #tpu.memory_space<vmem>>, vector<1x5xf32>
    %cst_27 = arith.constant dense<0.000000e+00> : vector<16xf32>
    %41 = vector.multi_reduction <add>, %38, %cst_27 [1] : vector<16x5xf32> to vector<16xf32>
    %42 = vector.shape_cast %41 : vector<16xf32> to vector<16x1xf32>
    %cst_28 = arith.constant 5.000000e+00 : f32
    %43 = vector.broadcast %cst_28 : f32 to vector<16x1xf32>
    %44 = arith.divf %42, %43 : vector<16x1xf32>
    %45 = vector.broadcast %44 : vector<16x1xf32> to vector<16x5xf32>
    %46 = arith.subf %38, %45 : vector<16x5xf32>
    %47 = arith.mulf %46, %46 : vector<16x5xf32>
    %cst_29 = arith.constant dense<0.000000e+00> : vector<16xf32>
    %48 = vector.multi_reduction <add>, %47, %cst_29 [1] : vector<16x5xf32> to vector<16xf32>
    %49 = vector.shape_cast %48 : vector<16xf32> to vector<16x1xf32>
    %cst_30 = arith.constant 5.000000e+00 : f32
    %50 = vector.broadcast %cst_30 : f32 to vector<16x1xf32>
    %51 = arith.divf %49, %50 : vector<16x1xf32>
    %cst_31 = arith.constant 9.99999974E-6 : f32
    %52 = vector.broadcast %cst_31 : f32 to vector<16x1xf32>
    %53 = arith.addf %51, %52 : vector<16x1xf32>
    %54 = math.rsqrt %53 : vector<16x1xf32>
    %55 = vector.broadcast %54 : vector<16x1xf32> to vector<16x5xf32>
    %56 = arith.mulf %46, %55 : vector<16x5xf32>
    %57 = vector.broadcast %39 : vector<1x5xf32> to vector<16x5xf32>
    %58 = arith.mulf %56, %57 : vector<16x5xf32>
    %59 = vector.broadcast %40 : vector<1x5xf32> to vector<16x5xf32>
    %60 = arith.addf %58, %59 : vector<16x5xf32>
    %c0_32 = arith.constant 0 : index
    %c0_33 = arith.constant 0 : index
    %61 = vector.load %arg11[%c0_32, %c0_33] : memref<5x64xf32, #tpu.memory_space<vmem>>, vector<5x64xf32>
    %cst_34 = arith.constant dense<0.000000e+00> : vector<16x64xf32>
    %62 = tpu.matmul %60, %61, %cst_34 {dimension_numbers = #tpu.dot_dimension_numbers<[1], [0], [0], [1], [0, 0, 1, 1], [], []>} : vector<16x5xf32>, vector<5x64xf32>, vector<16x64xf32> -> vector<16x64xf32>
    %c0_35 = arith.constant 0 : index
    %c0_36 = arith.constant 0 : index
    %63 = vector.load %arg12[%c0_35, %c0_36] : memref<1x64xf32, #tpu.memory_space<vmem>>, vector<1x64xf32>
    %64 = vector.broadcast %63 : vector<1x64xf32> to vector<16x64xf32>
    %65 = arith.addf %62, %64 : vector<16x64xf32>
    %cst_37 = arith.constant 0.000000e+00 : f32
    %66 = vector.broadcast %cst_37 : f32 to vector<16x64xf32>
    %67 = arith.maximumf %65, %66 : vector<16x64xf32>
    %68 = arith.addf %37, %67 : vector<16x64xf32>
    %c0_38 = arith.constant 0 : index
    %c0_39 = arith.constant 0 : index
    %69 = vector.load %arg13[%c0_38, %c0_39] : memref<16x64xf32, #tpu.memory_space<vmem>>, vector<16x64xf32>
    tpu.vector_store %arg13[%c0_38, %c0_39], %68 {strides = array<i32>} : memref<16x64xf32, #tpu.memory_space<vmem>>, vector<16x64xf32>,
    return
  }
  func.func @transform_0(%arg0: i32) -> (i32, i32) {
    %c0_i32 = arith.constant 0 : i32
    %c0_i32_0 = arith.constant 0 : i32
    return %arg0, %c0_i32 : i32, i32
  }
  func.func @transform_1(%arg0: i32) -> (i32, i32) {
    %c0_i32 = arith.constant 0 : i32
    %c0_i32_0 = arith.constant 0 : i32
    return %arg0, %c0_i32 : i32, i32
  }
  func.func @transform_2(%arg0: i32) -> (i32, i32) {
    %c0_i32 = arith.constant 0 : i32
    %c0_i32_0 = arith.constant 0 : i32
    %c0_i32_1 = arith.constant 0 : i32
    return %c0_i32, %c0_i32_0 : i32, i32
  }
  func.func @transform_3(%arg0: i32) -> (i32, i32) {
    %c0_i32 = arith.constant 0 : i32
    %c0_i32_0 = arith.constant 0 : i32
    %c0_i32_1 = arith.constant 0 : i32
    return %c0_i32, %c0_i32_0 : i32, i32
  }
  func.func @transform_4(%arg0: i32) -> (i32, i32) {
    %c0_i32 = arith.constant 0 : i32
    %c0_i32_0 = arith.constant 0 : i32
    %c0_i32_1 = arith.constant 0 : i32
    return %c0_i32, %c0_i32_0 : i32, i32
  }
  func.func @transform_5(%arg0: i32) -> (i32, i32) {
    %c0_i32 = arith.constant 0 : i32
    %c0_i32_0 = arith.constant 0 : i32
    %c0_i32_1 = arith.constant 0 : i32
    return %c0_i32, %c0_i32_0 : i32, i32
  }
  func.func @transform_6(%arg0: i32) -> (i32, i32) {
    %c0_i32 = arith.constant 0 : i32
    %c0_i32_0 = arith.constant 0 : i32
    %c0_i32_1 = arith.constant 0 : i32
    return %c0_i32, %c0_i32_0 : i32, i32
  }
  func.func @transform_7(%arg0: i32) -> (i32, i32) {
    %c0_i32 = arith.constant 0 : i32
    %c0_i32_0 = arith.constant 0 : i32
    %c0_i32_1 = arith.constant 0 : i32
    return %c0_i32, %c0_i32_0 : i32, i32
  }
  func.func @transform_8(%arg0: i32) -> (i32, i32) {
    %c0_i32 = arith.constant 0 : i32
    %c0_i32_0 = arith.constant 0 : i32
    %c0_i32_1 = arith.constant 0 : i32
    return %c0_i32, %c0_i32_0 : i32, i32
  }
  func.func @transform_9(%arg0: i32) -> (i32, i32) {
    %c0_i32 = arith.constant 0 : i32
    %c0_i32_0 = arith.constant 0 : i32
    %c0_i32_1 = arith.constant 0 : i32
    return %c0_i32, %c0_i32_0 : i32, i32
  }
  func.func @transform_10(%arg0: i32) -> (i32, i32) {
    %c0_i32 = arith.constant 0 : i32
    %c0_i32_0 = arith.constant 0 : i32
    %c0_i32_1 = arith.constant 0 : i32
    return %c0_i32, %c0_i32_0 : i32, i32
  }
  func.func @transform_11(%arg0: i32) -> (i32, i32) {
    %c0_i32 = arith.constant 0 : i32
    %c0_i32_0 = arith.constant 0 : i32
    %c0_i32_1 = arith.constant 0 : i32
    return %c0_i32, %c0_i32_0 : i32, i32
  }
  func.func @transform_12(%arg0: i32) -> (i32, i32) {
    %c0_i32 = arith.constant 0 : i32
    %c0_i32_0 = arith.constant 0 : i32
    return %arg0, %c0_i32 : i32, i32
  }
}

module attributes {stable_mosaic.version = 11 : i64} {
  func.func @_out_head_kernel(%arg0: i32, %arg1: memref<16x64xf32, #tpu.memory_space<vmem>>, %arg2: memref<64x64xbf16, #tpu.memory_space<vmem>>, %arg3: memref<1x64xf32, #tpu.memory_space<vmem>>, %arg4: memref<1x64xf32, #tpu.memory_space<vmem>>, %arg5: memref<16x1xf32, #tpu.memory_space<vmem>>) attributes {dimension_semantics = [#tpu.dimension_semantics<parallel>], iteration_bounds = array<i64: 1>, scalar_prefetch = 0 : i64, scratch_operands = 0 : i64, tpu.core_type = #tpu.core_type<tc>, window_params = [{transform_indices = @transform_0, window_bounds = array<i64: 16, 64>}, {pipeline_mode = #tpu.pipeline_mode<synchronous>, transform_indices = @transform_1, window_bounds = array<i64: 64, 64>}, {pipeline_mode = #tpu.pipeline_mode<synchronous>, transform_indices = @transform_2, window_bounds = array<i64: 1, 64>}, {pipeline_mode = #tpu.pipeline_mode<synchronous>, transform_indices = @transform_3, window_bounds = array<i64: 1, 64>}, {transform_indices = @transform_4, window_bounds = array<i64: 16, 1>}]} {
    %c0 = arith.constant 0 : index
    %c0_0 = arith.constant 0 : index
    %0 = vector.load %arg1[%c0, %c0_0] : memref<16x64xf32, #tpu.memory_space<vmem>>, vector<16x64xf32>
    %1 = arith.truncf %0 : vector<16x64xf32> to vector<16x64xbf16>
    %c0_1 = arith.constant 0 : index
    %c0_2 = arith.constant 0 : index
    %2 = vector.load %arg2[%c0_1, %c0_2] : memref<64x64xbf16, #tpu.memory_space<vmem>>, vector<64x64xbf16>
    %cst = arith.constant dense<0.000000e+00> : vector<16x64xf32>
    %3 = tpu.matmul %1, %2, %cst {dimension_numbers = #tpu.dot_dimension_numbers<[1], [0], [0], [1], [0, 0, 1, 1], [], []>} : vector<16x64xbf16>, vector<64x64xbf16>, vector<16x64xf32> -> vector<16x64xf32>
    %c0_3 = arith.constant 0 : index
    %c0_4 = arith.constant 0 : index
    %4 = vector.load %arg3[%c0_3, %c0_4] : memref<1x64xf32, #tpu.memory_space<vmem>>, vector<1x64xf32>
    %5 = vector.broadcast %4 : vector<1x64xf32> to vector<16x64xf32>
    %6 = arith.addf %3, %5 : vector<16x64xf32>
    %cst_5 = arith.constant 0.000000e+00 : f32
    %7 = vector.broadcast %cst_5 : f32 to vector<16x64xf32>
    %8 = arith.maximumf %6, %7 : vector<16x64xf32>
    %c0_6 = arith.constant 0 : index
    %c0_7 = arith.constant 0 : index
    %9 = vector.load %arg4[%c0_6, %c0_7] : memref<1x64xf32, #tpu.memory_space<vmem>>, vector<1x64xf32>
    %10 = vector.broadcast %9 : vector<1x64xf32> to vector<16x64xf32>
    %11 = arith.mulf %8, %10 : vector<16x64xf32>
    %cst_8 = arith.constant dense<0.000000e+00> : vector<16xf32>
    %12 = vector.multi_reduction <add>, %11, %cst_8 [1] : vector<16x64xf32> to vector<16xf32>
    %13 = vector.shape_cast %12 : vector<16xf32> to vector<16x1xf32>
    %c0_9 = arith.constant 0 : index
    %c0_10 = arith.constant 0 : index
    %14 = vector.load %arg5[%c0_9, %c0_10] : memref<16x1xf32, #tpu.memory_space<vmem>>, vector<16x1xf32>
    tpu.vector_store %arg5[%c0_9, %c0_10], %13 {strides = array<i32>} : memref<16x1xf32, #tpu.memory_space<vmem>>, vector<16x1xf32>,
    return
  }
  func.func @transform_0(%arg0: i32) -> (i32, i32) {
    %c0_i32 = arith.constant 0 : i32
    %c0_i32_0 = arith.constant 0 : i32
    return %arg0, %c0_i32 : i32, i32
  }
  func.func @transform_1(%arg0: i32) -> (i32, i32) {
    %c0_i32 = arith.constant 0 : i32
    %c0_i32_0 = arith.constant 0 : i32
    %c0_i32_1 = arith.constant 0 : i32
    return %c0_i32, %c0_i32_0 : i32, i32
  }
  func.func @transform_2(%arg0: i32) -> (i32, i32) {
    %c0_i32 = arith.constant 0 : i32
    %c0_i32_0 = arith.constant 0 : i32
    %c0_i32_1 = arith.constant 0 : i32
    return %c0_i32, %c0_i32_0 : i32, i32
  }
  func.func @transform_3(%arg0: i32) -> (i32, i32) {
    %c0_i32 = arith.constant 0 : i32
    %c0_i32_0 = arith.constant 0 : i32
    %c0_i32_1 = arith.constant 0 : i32
    return %c0_i32, %c0_i32_0 : i32, i32
  }
  func.func @transform_4(%arg0: i32) -> (i32, i32) {
    %c0_i32 = arith.constant 0 : i32
    %c0_i32_0 = arith.constant 0 : i32
    return %arg0, %c0_i32 : i32, i32
  }
}

</mosaic_0001>

<llo_original>
// kernel: ne.0
$region0: #{ne.0}
  #allocation0 [shape = 's32[1]{0}', space=sflag, size = 0x4, scoped, tag = 'scoped memory for ne.0']
  %s0 = inlined_call_operand.<no memory space> [shape: s32[], index: 0, kind: input, shape index: {}]
  %s1 = inlined_call_operand.vmem [shape: s32[24], index: 1, kind: output, shape index: {}]
  %v2 = vstv %s0
  %3 = vst [vmem:[%s1] sm:$0x1] %v2

// kernel: gnn_policy_forward.7
$region0: #{gnn_policy_forward.7}
  #allocation0 [shape = 'u32[]', space=smem, size = 0x4, offset = 0x4, fixed_abs, tag = 'smem constant byte address 0x4 - core index']
  #allocation1 [shape = 'u32[144,128]{1,0:T(1,128)}', space=vmem, size = 0x12000, scoped, tag = 'internal scratch']
  %s0 = inlined_call_operand.vmem [shape: f32[16,3], index: 0, kind: input, shape index: {}]
  %s1 = inlined_call_operand.vmem [shape: f32[1,3], index: 1, kind: input, shape index: {}]
  %s2 = inlined_call_operand.vmem [shape: f32[1,3], index: 2, kind: input, shape index: {}]
  %s3 = inlined_call_operand.vmem [shape: f32[3,64], index: 3, kind: input, shape index: {}]
  %s4 = inlined_call_operand.vmem [shape: f32[1,64], index: 4, kind: input, shape index: {}]
  %s5 = inlined_call_operand.vmem [shape: bf16[64,64], index: 5, kind: input, shape index: {}]
  %s6 = inlined_call_operand.vmem [shape: f32[1,64], index: 6, kind: input, shape index: {}]
  %s7 = inlined_call_operand.vmem [shape: f32[16,64], index: 7, kind: output, shape index: {}]
  %s8 = sld [smem:[#allocation0]]
  $region38: #{gnn_policy_forward.7} parent=0
    _
  %s10 = ssub.s32 1, %s8
  %s11 = scalar_select 0, %s10, %s8
  // Predicated region
  $region2: #{gnn_policy_forward.7} parent=0 // pred_check
    _
  $region3: #{gnn_policy_forward.7} parent=0 // pred_check_branch
    %13 = sbr.rel (0) target = $region5
  $region4: #{gnn_policy_forward.7} parent=0 // pred_region
    _
  $region5: #{gnn_policy_forward.7} parent=0 // pred_fallthru
    _
  // Predicated region
  $region6: #{gnn_policy_forward.7} parent=0 // pred_check
    _
  $region7: #{gnn_policy_forward.7} parent=0 // pred_check_branch
    %15 = sbr.rel (0) target = $region9
  $region8: #{gnn_policy_forward.7} parent=0 // pred_region
    _
  $region9: #{gnn_policy_forward.7} parent=0 // pred_fallthru
    _
  // Predicated region
  $region10: #{gnn_policy_forward.7} parent=0 // pred_check
    _
  $region11: #{gnn_policy_forward.7} parent=0 // pred_check_branch
    %17 = sbr.rel (0) target = $region13
  $region12: #{gnn_policy_forward.7} parent=0 // pred_region
    _
  $region13: #{gnn_policy_forward.7} parent=0 // pred_fallthru
    _
  // Predicated region
  $region14: #{gnn_policy_forward.7} parent=0 // pred_check
    _
  $region15: #{gnn_policy_forward.7} parent=0 // pred_check_branch
    %19 = sbr.rel (0) target = $region17
  $region16: #{gnn_policy_forward.7} parent=0 // pred_region
    _
  $region17: #{gnn_policy_forward.7} parent=0 // pred_fallthru
    _
  // Predicated region
  $region18: #{gnn_policy_forward.7} parent=0 // pred_check
    _
  $region19: #{gnn_policy_forward.7} parent=0 // pred_check_branch
    %21 = sbr.rel (0) target = $region21
  $region20: #{gnn_policy_forward.7} parent=0 // pred_region
    _
  $region21: #{gnn_policy_forward.7} parent=0 // pred_fallthru
    _
  // Predicated region
  $region22: #{gnn_policy_forward.7} parent=0 // pred_check
    _
  $region23: #{gnn_policy_forward.7} parent=0 // pred_check_branch
    %23 = sbr.rel (0) target = $region25
  $region24: #{gnn_policy_forward.7} parent=0 // pred_region
    _
  $region25: #{gnn_policy_forward.7} parent=0 // pred_fallthru
    _
  // Predicated region
  $region26: #{gnn_policy_forward.7} parent=0 // pred_check
    _
  $region27: #{gnn_policy_forward.7} parent=0 // pred_check_branch
    %25 = sbr.rel (0) target = $region29
  $region28: #{gnn_policy_forward.7} parent=0 // pred_region
    _
  $region29: #{gnn_policy_forward.7} parent=0 // pred_fallthru
    _
  %v27 = vld [vmem:[%s0] sm:$0xff]
  %v28 = vld [vmem:[%s0 + $0x8] sm:$0xff]
  %v29 = vld [vmem:[%s1] sm:$0x1]
  %v30 = vld [vmem:[%s2] sm:$0x1]
  %vm31 = vcmask 23552
  %v32 = vsel %vm31, %v27, 0.0
  %33 = vadd.xlane.f32.xlu0 %v32
  %v34 = vpop.xlane.xlu0 %33
  %v35 = vsel %vm31, %v28, 0.0
  %36 = vadd.xlane.f32.xlu0 %v35
  %v37 = vpop.xlane.xlu0 %36
  %v38 = vrcp.pop 3.0
  %v39 = vmul.f32 %v34, %v38
  %v40 = vmul.f32 %v37, %v38
  %v41 = vsub.f32 %v27, %v39
  %v42 = vsub.f32 %v28, %v40
  %v43 = vmul.f32 %v41, %v41
  %v44 = vmul.f32 %v42, %v42
  %v45 = vsel %vm31, %v43, 0.0
  %46 = vadd.xlane.f32.xlu0 %v45
  %v47 = vpop.xlane.xlu0 %46
  %v48 = vsel %vm31, %v44, 0.0
  %49 = vadd.xlane.f32.xlu0 %v48
  %v50 = vpop.xlane.xlu0 %49
  %v51 = vmul.f32 %v47, %v38
  %v52 = vmul.f32 %v50, %v38
  %v53 = vadd.f32 %v51, 1e-05
  %v54 = vadd.f32 %v52, 1e-05
  %v55 = vrsqrt.pop %v53
  %v56 = vrsqrt.pop %v54
  %v57 = vmul.f32 %v41, %v55
  %v58 = vmul.f32 %v42, %v56
  %v60 = vlaneseq
  %v61 = vshrl.u32 %v60, 7
  %v62 = vsub.s32 0, %v61
  %v63 = vrot.slane %v29, %v62
  %v65 = vmul.f32 %v57, %v63
  %v66 = vmul.f32 %v58, %v63
  %v68 = vlaneseq
  %v69 = vshrl.u32 %v68, 7
  %v70 = vsub.s32 0, %v69
  %v71 = vrot.slane %v30, %v70
  %v73 = vadd.f32 %v65, %v71
  %v74 = vadd.f32 %v66, %v71
  %v75 = vld [vmem:[%s3] sm:$0x7]
  %v76 = vld [vmem:[%s4] sm:$0x1]
  %v78 = vlaneseq
  %v79 = vshrl.u32 %v78, 7
  %v80 = vsub.s32 0, %v79
  %v81 = vrot.slane %v76, %v80
  %v84 = vsel %vm31, %v73, 0
  %v87 = vsel %vm31, %v74, 0
  %vm89 = vcmask 1042432
  %v91 = vsel %vm89, %v75, 0
  %93 = vmatprep.subr.mxu0 0.0
  %94 = vmatpush1.msra.mxu0 %v91
  %95 = vmatprep.subr.mxu0 0.0
  %96 = vmatpush1.msra.mxu0 0.0
  %97 = vmatprep.subr.mxu0 0.0
  %98 = vmatpush1.msra.mxu0 0.0
  %99 = vmatprep.subr.mxu0 0.0
  %100 = vmatpush1.msra.mxu0 0.0
  %101 = vmatprep.subr.mxu0 0.0
  %102 = vmatpush1.msra.mxu0 0.0
  %103 = vmatprep.subr.mxu0 0.0
  %104 = vmatpush1.msra.mxu0 0.0
  %105 = vmatprep.subr.mxu0 0.0
  %106 = vmatpush1.msra.mxu0 0.0
  %107 = vmatprep.subr.mxu0 0.0
  %108 = vmatpush1.msra.mxu0 0.0
  %109 = vmatprep.subr.mxu0 0.0
  %110 = vmatpush1.msra.mxu0 0.0
  %111 = vmatprep.subr.mxu0 0.0
  %112 = vmatpush1.msra.mxu0 0.0
  %113 = vmatprep.subr.mxu0 0.0
  %114 = vmatpush1.msra.mxu0 0.0
  %115 = vmatprep.subr.mxu0 0.0
  %116 = vmatpush1.msra.mxu0 0.0
  %117 = vmatprep.subr.mxu0 0.0
  %118 = vmatpush1.msra.mxu0 0.0
  %119 = vmatprep.subr.mxu0 0.0
  %120 = vmatpush1.msra.mxu0 0.0
  %121 = vmatprep.subr.mxu0 0.0
  %122 = vmatpush1.msra.mxu0 0.0
  %123 = vmatprep.subr.mxu0 0.0
  %124 = vmatpush1.msra.mxu0 0.0
  %125 = vmatprep.subr.mxu0 0.0
  %126 = vmatpush1.msra.mxu0 0.0
  %127 = vmatprep.subr.mxu0 0.0
  %128 = vmatpush1.msra.mxu0 0.0
  %129 = vmatprep.subr.mxu0 0.0
  %130 = vmatpush1.msra.mxu0 0.0
  %131 = vmatprep.subr.mxu0 0.0
  %132 = vmatpush1.msra.mxu0 0.0
  %133 = vmatprep.subr.mxu0 0.0
  %134 = vmatpush1.msra.mxu0 0.0
  %135 = vmatprep.subr.mxu0 0.0
  %136 = vmatpush1.msra.mxu0 0.0
  %137 = vmatprep.subr.mxu0 0.0
  %138 = vmatpush1.msra.mxu0 0.0
  %139 = vmatprep.subr.mxu0 0.0
  %140 = vmatpush1.msra.mxu0 0.0
  %141 = vmatprep.subr.mxu0 0.0
  %142 = vmatpush1.msra.mxu0 0.0
  %143 = vmatprep.subr.mxu0 0.0
  %144 = vmatpush1.msra.mxu0 0.0
  %145 = vmatprep.subr.mxu0 0.0
  %146 = vmatpush1.msra.mxu0 0.0
  %147 = vmatprep.subr.mxu0 0.0
  %148 = vmatpush1.msra.mxu0 0.0
  %149 = vmatprep.subr.mxu0 0.0
  %150 = vmatpush1.msra.mxu0 0.0
  %151 = vmatprep.subr.mxu0 0.0
  %152 = vmatpush1.msra.mxu0 0.0
  %153 = vmatprep.subr.mxu0 0.0
  %154 = vmatpush1.msra.mxu0 0.0
  %155 = vmatprep.subr.mxu0 0.0
  %156 = vmatpush1.msra.mxu0 0.0
  %157 = vmatprep.mubr.f32.mxu0 0.0
  %158 = vmatmul.mubr.f32.gmra.mrb[0].mxu0 %v84
  %v159 = vpop.f32.mrb[0].mxu0
  %v160 = vadd.f32 %v81, %v159
  %v161 = vpop.f32.mrb[0].mxu0
  %162 = vmatprep.mubr.f32.mxu0 0.0
  %163 = vmatmul.mubr.f32.gmra.mrb[0].mxu0 %v87
  %v164 = vpop.f32.mrb[0].mxu0
  %v165 = vadd.f32 %v81, %v164
  %v166 = vpop.f32.mrb[0].mxu0
  %167 = vdwg.mxu0
  %v168 = vmax.f32 %v160, 0.0
  %v169 = vmax.f32 %v165, 0.0
  %v170 = vpack.c.bf16 %v169, %v168
  %v171 = vld [vmem:[%s5] sm:$0xf]
  %v172 = vld [vmem:[%s5 + $0x4] sm:$0xf]
  %v173 = vld [vmem:[%s5 + $0x8] sm:$0xf]
  %v174 = vld [vmem:[%s5 + $0xc] sm:$0xf]
  %v175 = vld [vmem:[%s5 + $0x10] sm:$0xf]
  %v176 = vld [vmem:[%s5 + $0x14] sm:$0xf]
  %v177 = vld [vmem:[%s5 + $0x18] sm:$0xf]
  %v178 = vld [vmem:[%s5 + $0x1c] sm:$0xf]
  %v179 = vld [vmem:[%s6] sm:$0x1]
  %v181 = vlaneseq
  %v182 = vshrl.u32 %v181, 7
  %v183 = vsub.s32 0, %v182
  %v184 = vrot.slane %v179, %v183
  %v194 = vunpack.c.l.b16 %v171
  %v195 = vunpack.c.l.b16 %v172
  %v196 = vunpack.c.l.b16 %v173
  %v197 = vunpack.c.l.b16 %v174
  %v198 = vunpack.c.l.b16 %v175
  %v199 = vunpack.c.l.b16 %v176
  %v200 = vunpack.c.l.b16 %v177
  %v201 = vunpack.c.l.b16 %v178
  %v202 = vpack.c.b16 %v195, %v194
  %v203 = vpack.c.b16 %v197, %v196
  %v204 = vpack.c.b16 %v199, %v198
  %v205 = vpack.c.b16 %v201, %v200
  %vm210 = vcmask 523264
  %v212 = vsel %vm210, %v170, 0
  %214 = vmatprep.subr.bf16.mxu0 0
  %215 = vmatpush1.bf16.msra.mxu0 %v202
  %216 = vmatprep.subr.bf16.mxu0 0
  %217 = vmatpush1.bf16.msra.mxu0 %v203
  %218 = vmatprep.subr.bf16.mxu0 0
  %219 = vmatpush1.bf16.msra.mxu0 %v204
  %220 = vmatprep.subr.bf16.mxu0 0
  %221 = vmatpush1.bf16.msra.mxu0 %v205
  %222 = vmatprep.subr.bf16.mxu0 0
  %223 = vmatpush1.bf16.msra.mxu0 0
  %224 = vmatprep.subr.bf16.mxu0 0
  %225 = vmatpush1.bf16.msra.mxu0 0
  %226 = vmatprep.subr.bf16.mxu0 0
  %227 = vmatpush1.bf16.msra.mxu0 0
  %228 = vmatprep.subr.bf16.mxu0 0
  %229 = vmatpush1.bf16.msra.mxu0 0
  %230 = vmatprep.subr.bf16.mxu0 0
  %231 = vmatpush1.bf16.msra.mxu0 0
  %232 = vmatprep.subr.bf16.mxu0 0
  %233 = vmatpush1.bf16.msra.mxu0 0
  %234 = vmatprep.subr.bf16.mxu0 0
  %235 = vmatpush1.bf16.msra.mxu0 0
  %236 = vmatprep.subr.bf16.mxu0 0
  %237 = vmatpush1.bf16.msra.mxu0 0
  %238 = vmatprep.subr.bf16.mxu0 0
  %239 = vmatpush1.bf16.msra.mxu0 0
  %240 = vmatprep.subr.bf16.mxu0 0
  %241 = vmatpush1.bf16.msra.mxu0 0
  %242 = vmatprep.subr.bf16.mxu0 0
  %243 = vmatpush1.bf16.msra.mxu0 0
  %244 = vmatprep.subr.bf16.mxu0 0
  %245 = vmatpush1.bf16.msra.mxu0 0
  %246 = vmatprep.mubr.bf16.mxu0 0
  %247 = vmatmul.mubr.bf16.gmra.mrb[0].mxu0 %v212
  %v248 = vpop.f32.mrb[0].mxu0
  %v249 = vadd.f32 %v184, %v248
  %v250 = vpop.f32.mrb[0].mxu0
  %v251 = vpop.f32.mrb[0].mxu0
  %v252 = vadd.f32 %v184, %v251
  %v253 = vpop.f32.mrb[0].mxu0
  %254 = vdwg.mxu0
  %v255 = vmax.f32 %v249, 0.0
  %v256 = vmax.f32 %v252, 0.0
  %257 = vst.msk [vmem:[%s7] sm:$0xff] %vm210, %v255
  %258 = vst.msk [vmem:[%s7 + $0x8] sm:$0xff] %vm210, %v256
  // Predicated region
  $region30: #{gnn_policy_forward.7} parent=0 // pred_check
    _
  $region31: #{gnn_policy_forward.7} parent=0 // pred_check_branch
    %260 = sbr.rel (0) target = $region33
  $region32: #{gnn_policy_forward.7} parent=0 // pred_region
    _
  $region33: #{gnn_policy_forward.7} parent=0 // pred_fallthru
    _
  // Predicated region
  $region34: #{gnn_policy_forward.7} parent=0 // pred_check
    _
  $region35: #{gnn_policy_forward.7} parent=0 // pred_check_branch
    %262 = sbr.rel (0) target = $region37
  $region36: #{gnn_policy_forward.7} parent=0 // pred_region
    _
  $region37: #{gnn_policy_forward.7} parent=0 // pred_fallthru
    _

// kernel: gnn_policy_forward.8
$region0: #{gnn_policy_forward.8}
  #allocation0 [shape = 'u32[]', space=smem, size = 0x4, offset = 0x4, fixed_abs, tag = 'smem constant byte address 0x4 - core index']
  #allocation1 [shape = 'u32[144,128]{1,0:T(1,128)}', space=vmem, size = 0x12000, scoped, tag = 'internal scratch']
  %s0 = inlined_call_operand.vmem [shape: f32[16,6], index: 0, kind: input, shape index: {}]
  %s1 = inlined_call_operand.vmem [shape: f32[16,5], index: 1, kind: input, shape index: {}]
  %s2 = inlined_call_operand.vmem [shape: f32[1,6], index: 2, kind: input, shape index: {}]
  %s3 = inlined_call_operand.vmem [shape: f32[1,6], index: 3, kind: input, shape index: {}]
  %s4 = inlined_call_operand.vmem [shape: f32[6,64], index: 4, kind: input, shape index: {}]
  %s5 = inlined_call_operand.vmem [shape: f32[1,64], index: 5, kind: input, shape index: {}]
  %s6 = inlined_call_operand.vmem [shape: bf16[64,64], index: 6, kind: input, shape index: {}]
  %s7 = inlined_call_operand.vmem [shape: f32[1,64], index: 7, kind: input, shape index: {}]
  %s8 = inlined_call_operand.vmem [shape: f32[1,5], index: 8, kind: input, shape index: {}]
  %s9 = inlined_call_operand.vmem [shape: f32[1,5], index: 9, kind: input, shape index: {}]
  %s10 = inlined_call_operand.vmem [shape: f32[5,64], index: 10, kind: input, shape index: {}]
  %s11 = inlined_call_operand.vmem [shape: f32[1,64], index: 11, kind: input, shape index: {}]
  %s12 = inlined_call_operand.vmem [shape: f32[16,64], index: 12, kind: output, shape index: {}]
  %s13 = sld [smem:[#allocation0]]
  $region58: #{gnn_policy_forward.8} parent=0
    _
  %s15 = ssub.s32 1, %s13
  %s16 = scalar_select 0, %s15, %s13
  // Predicated region
  $region2: #{gnn_policy_forward.8} parent=0 // pred_check
    _
  $region3: #{gnn_policy_forward.8} parent=0 // pred_check_branch
    %18 = sbr.rel (0) target = $region5
  $region4: #{gnn_policy_forward.8} parent=0 // pred_region
    _
  $region5: #{gnn_policy_forward.8} parent=0 // pred_fallthru
    _
  // Predicated region
  $region6: #{gnn_policy_forward.8} parent=0 // pred_check
    _
  $region7: #{gnn_policy_forward.8} parent=0 // pred_check_branch
    %20 = sbr.rel (0) target = $region9
  $region8: #{gnn_policy_forward.8} parent=0 // pred_region
    _
  $region9: #{gnn_policy_forward.8} parent=0 // pred_fallthru
    _
  // Predicated region
  $region10: #{gnn_policy_forward.8} parent=0 // pred_check
    _
  $region11: #{gnn_policy_forward.8} parent=0 // pred_check_branch
    %22 = sbr.rel (0) target = $region13
  $region12: #{gnn_policy_forward.8} parent=0 // pred_region
    _
  $region13: #{gnn_policy_forward.8} parent=0 // pred_fallthru
    _
  // Predicated region
  $region14: #{gnn_policy_forward.8} parent=0 // pred_check
    _
  $region15: #{gnn_policy_forward.8} parent=0 // pred_check_branch
    %24 = sbr.rel (0) target = $region17
  $region16: #{gnn_policy_forward.8} parent=0 // pred_region
    _
  $region17: #{gnn_policy_forward.8} parent=0 // pred_fallthru
    _
  // Predicated region
  $region18: #{gnn_policy_forward.8} parent=0 // pred_check
    _
  $region19: #{gnn_policy_forward.8} parent=0 // pred_check_branch
    %26 = sbr.rel (0) target = $region21
  $region20: #{gnn_policy_forward.8} parent=0 // pred_region
    _
  $region21: #{gnn_policy_forward.8} parent=0 // pred_fallthru
    _
  // Predicated region
  $region22: #{gnn_policy_forward.8} parent=0 // pred_check
    _
  $region23: #{gnn_policy_forward.8} parent=0 // pred_check_branch
    %28 = sbr.rel (0) target = $region25
  $region24: #{gnn_policy_forward.8} parent=0 // pred_region
    _
  $region25: #{gnn_policy_forward.8} parent=0 // pred_fallthru
    _
  // Predicated region
  $region26: #{gnn_policy_forward.8} parent=0 // pred_check
    _
  $region27: #{gnn_policy_forward.8} parent=0 // pred_check_branch
    %30 = sbr.rel (0) target = $region29
  $region28: #{gnn_policy_forward.8} parent=0 // pred_region
    _
  $region29: #{gnn_policy_forward.8} parent=0 // pred_fallthru
    _
  // Predicated region
  $region30: #{gnn_policy_forward.8} parent=0 // pred_check
    _
  $region31: #{gnn_policy_forward.8} parent=0 // pred_check_branch
    %32 = sbr.rel (0) target = $region33
  $region32: #{gnn_policy_forward.8} parent=0 // pred_region
    _
  $region33: #{gnn_policy_forward.8} parent=0 // pred_fallthru
    _
  // Predicated region
  $region34: #{gnn_policy_forward.8} parent=0 // pred_check
    _
  $region35: #{gnn_policy_forward.8} parent=0 // pred_check_branch
    %34 = sbr.rel (0) target = $region37
  $region36: #{gnn_policy_forward.8} parent=0 // pred_region
    _
  $region37: #{gnn_policy_forward.8} parent=0 // pred_fallthru
    _
  // Predicated region
  $region38: #{gnn_policy_forward.8} parent=0 // pred_check
    _
  $region39: #{gnn_policy_forward.8} parent=0 // pred_check_branch
    %36 = sbr.rel (0) target = $region41
  $region40: #{gnn_policy_forward.8} parent=0 // pred_region
    _
  $region41: #{gnn_policy_forward.8} parent=0 // pred_fallthru
    _
  // Predicated region
  $region42: #{gnn_policy_forward.8} parent=0 // pred_check
    _
  $region43: #{gnn_policy_forward.8} parent=0 // pred_check_branch
    %38 = sbr.rel (0) target = $region45
  $region44: #{gnn_policy_forward.8} parent=0 // pred_region
    _
  $region45: #{gnn_policy_forward.8} parent=0 // pred_fallthru
    _
  // Predicated region
  $region46: #{gnn_policy_forward.8} parent=0 // pred_check
    _
  $region47: #{gnn_policy_forward.8} parent=0 // pred_check_branch
    %40 = sbr.rel (0) target = $region49
  $region48: #{gnn_policy_forward.8} parent=0 // pred_region
    _
  $region49: #{gnn_policy_forward.8} parent=0 // pred_fallthru
    _
  %v42 = vld [vmem:[%s0] sm:$0xff]
  %v43 = vld [vmem:[%s0 + $0x8] sm:$0xff]
  %v44 = vld [vmem:[%s2] sm:$0x1]
  %v45 = vld [vmem:[%s3] sm:$0x1]
  %vm46 = vcmask 48128
  %v47 = vsel %vm46, %v42, 0.0
  %48 = vadd.xlane.f32.xlu0 %v47
  %v49 = vpop.xlane.xlu0 %48
  %v50 = vsel %vm46, %v43, 0.0
  %51 = vadd.xlane.f32.xlu0 %v50
  %v52 = vpop.xlane.xlu0 %51
  %v53 = vrcp.pop 6.0
  %v54 = vmul.f32 %v49, %v53
  %v55 = vmul.f32 %v52, %v53
  %v56 = vsub.f32 %v42, %v54
  %v57 = vsub.f32 %v43, %v55
  %v58 = vmul.f32 %v56, %v56
  %v59 = vmul.f32 %v57, %v57
  %v60 = vsel %vm46, %v58, 0.0
  %61 = vadd.xlane.f32.xlu0 %v60
  %v62 = vpop.xlane.xlu0 %61
  %v63 = vsel %vm46, %v59, 0.0
  %64 = vadd.xlane.f32.xlu0 %v63
  %v65 = vpop.xlane.xlu0 %64
  %v66 = vmul.f32 %v62, %v53
  %v67 = vmul.f32 %v65, %v53
  %v68 = vadd.f32 %v66, 1e-05
  %v69 = vadd.f32 %v67, 1e-05
  %v70 = vrsqrt.pop %v68
  %v71 = vrsqrt.pop %v69
  %v72 = vmul.f32 %v56, %v70
  %v73 = vmul.f32 %v57, %v71
  %v75 = vlaneseq
  %v76 = vshrl.u32 %v75, 7
  %v77 = vsub.s32 0, %v76
  %v78 = vrot.slane %v44, %v77
  %v80 = vmul.f32 %v72, %v78
  %v81 = vmul.f32 %v73, %v78
  %v83 = vlaneseq
  %v84 = vshrl.u32 %v83, 7
  %v85 = vsub.s32 0, %v84
  %v86 = vrot.slane %v45, %v85
  %v88 = vadd.f32 %v80, %v86
  %v89 = vadd.f32 %v81, %v86
  %v90 = vld [vmem:[%s4] sm:$0x3f]
  %v91 = vld [vmem:[%s5] sm:$0x1]
  %v93 = vlaneseq
  %v94 = vshrl.u32 %v93, 7
  %v95 = vsub.s32 0, %v94
  %v96 = vrot.slane %v91, %v95
  %v99 = vsel %vm46, %v88, 0
  %v102 = vsel %vm46, %v89, 0
  %vm104 = vcmask 1045504
  %v106 = vsel %vm104, %v90, 0
  %108 = vmatprep.subr.mxu0 0.0
  %109 = vmatpush1.msra.mxu0 %v106
  %110 = vmatprep.subr.mxu0 0.0
  %111 = vmatpush1.msra.mxu0 0.0
  %112 = vmatprep.subr.mxu0 0.0
  %113 = vmatpush1.msra.mxu0 0.0
  %114 = vmatprep.subr.mxu0 0.0
  %115 = vmatpush1.msra.mxu0 0.0
  %116 = vmatprep.subr.mxu0 0.0
  %117 = vmatpush1.msra.mxu0 0.0
  %118 = vmatprep.subr.mxu0 0.0
  %119 = vmatpush1.msra.mxu0 0.0
  %120 = vmatprep.subr.mxu0 0.0
  %121 = vmatpush1.msra.mxu0 0.0
  %122 = vmatprep.subr.mxu0 0.0
  %123 = vmatpush1.msra.mxu0 0.0
  %124 = vmatprep.subr.mxu0 0.0
  %125 = vmatpush1.msra.mxu0 0.0
  %126 = vmatprep.subr.mxu0 0.0
  %127 = vmatpush1.msra.mxu0 0.0
  %128 = vmatprep.subr.mxu0 0.0
  %129 = vmatpush1.msra.mxu0 0.0
  %130 = vmatprep.subr.mxu0 0.0
  %131 = vmatpush1.msra.mxu0 0.0
  %132 = vmatprep.subr.mxu0 0.0
  %133 = vmatpush1.msra.mxu0 0.0
  %134 = vmatprep.subr.mxu0 0.0
  %135 = vmatpush1.msra.mxu0 0.0
  %136 = vmatprep.subr.mxu0 0.0
  %137 = vmatpush1.msra.mxu0 0.0
  %138 = vmatprep.subr.mxu0 0.0
  %139 = vmatpush1.msra.mxu0 0.0
  %140 = vmatprep.subr.mxu0 0.0
  %141 = vmatpush1.msra.mxu0 0.0
  %142 = vmatprep.subr.mxu0 0.0
  %143 = vmatpush1.msra.mxu0 0.0
  %144 = vmatprep.subr.mxu0 0.0
  %145 = vmatpush1.msra.mxu0 0.0
  %146 = vmatprep.subr.mxu0 0.0
  %147 = vmatpush1.msra.mxu0 0.0
  %148 = vmatprep.subr.mxu0 0.0
  %149 = vmatpush1.msra.mxu0 0.0
  %150 = vmatprep.subr.mxu0 0.0
  %151 = vmatpush1.msra.mxu0 0.0
  %152 = vmatprep.subr.mxu0 0.0
  %153 = vmatpush1.msra.mxu0 0.0
  %154 = vmatprep.subr.mxu0 0.0
  %155 = vmatpush1.msra.mxu0 0.0
  %156 = vmatprep.subr.mxu0 0.0
  %157 = vmatpush1.msra.mxu0 0.0
  %158 = vmatprep.subr.mxu0 0.0
  %159 = vmatpush1.msra.mxu0 0.0
  %160 = vmatprep.subr.mxu0 0.0
  %161 = vmatpush1.msra.mxu0 0.0
  %162 = vmatprep.subr.mxu0 0.0
  %163 = vmatpush1.msra.mxu0 0.0
  %164 = vmatprep.subr.mxu0 0.0
  %165 = vmatpush1.msra.mxu0 0.0
  %166 = vmatprep.subr.mxu0 0.0
  %167 = vmatpush1.msra.mxu0 0.0
  %168 = vmatprep.subr.mxu0 0.0
  %169 = vmatpush1.msra.mxu0 0.0
  %170 = vmatprep.subr.mxu0 0.0
  %171 = vmatpush1.msra.mxu0 0.0
  %172 = vmatprep.mubr.f32.mxu0 0.0
  %173 = vmatmul.mubr.f32.gmra.mrb[0].mxu0 %v99
  %v174 = vpop.f32.mrb[0].mxu0
  %v175 = vadd.f32 %v96, %v174
  %v176 = vpop.f32.mrb[0].mxu0
  %177 = vmatprep.mubr.f32.mxu0 0.0
  %178 = vmatmul.mubr.f32.gmra.mrb[0].mxu0 %v102
  %v179 = vpop.f32.mrb[0].mxu0
  %v180 = vadd.f32 %v96, %v179
  %v181 = vpop.f32.mrb[0].mxu0
  %182 = vdwg.mxu0
  %v183 = vmax.f32 %v175, 0.0
  %v184 = vmax.f32 %v180, 0.0
  %v185 = vpack.c.bf16 %v184, %v183
  %v186 = vld [vmem:[%s6] sm:$0xf]
  %v187 = vld [vmem:[%s6 + $0x4] sm:$0xf]
  %v188 = vld [vmem:[%s6 + $0x8] sm:$0xf]
  %v189 = vld [vmem:[%s6 + $0xc] sm:$0xf]
  %v190 = vld [vmem:[%s6 + $0x10] sm:$0xf]
  %v191 = vld [vmem:[%s6 + $0x14] sm:$0xf]
  %v192 = vld [vmem:[%s6 + $0x18] sm:$0xf]
  %v193 = vld [vmem:[%s6 + $0x1c] sm:$0xf]
  %v194 = vld [vmem:[%s7] sm:$0x1]
  %v196 = vlaneseq
  %v197 = vshrl.u32 %v196, 7
  %v198 = vsub.s32 0, %v197
  %v199 = vrot.slane %v194, %v198
  %v209 = vunpack.c.l.b16 %v186
  %v210 = vunpack.c.l.b16 %v187
  %v211 = vunpack.c.l.b16 %v188
  %v212 = vunpack.c.l.b16 %v189
  %v213 = vunpack.c.l.b16 %v190
  %v214 = vunpack.c.l.b16 %v191
  %v215 = vunpack.c.l.b16 %v192
  %v216 = vunpack.c.l.b16 %v193
  %v217 = vpack.c.b16 %v210, %v209
  %v218 = vpack.c.b16 %v212, %v211
  %v219 = vpack.c.b16 %v214, %v213
  %v220 = vpack.c.b16 %v216, %v215
  %vm225 = vcmask 523264
  %v227 = vsel %vm225, %v185, 0
  %229 = vmatprep.subr.bf16.mxu0 0
  %230 = vmatpush1.bf16.msra.mxu0 %v217
  %231 = vmatprep.subr.bf16.mxu0 0
  %232 = vmatpush1.bf16.msra.mxu0 %v218
  %233 = vmatprep.subr.bf16.mxu0 0
  %234 = vmatpush1.bf16.msra.mxu0 %v219
  %235 = vmatprep.subr.bf16.mxu0 0
  %236 = vmatpush1.bf16.msra.mxu0 %v220
  %237 = vmatprep.subr.bf16.mxu0 0
  %238 = vmatpush1.bf16.msra.mxu0 0
  %239 = vmatprep.subr.bf16.mxu0 0
  %240 = vmatpush1.bf16.msra.mxu0 0
  %241 = vmatprep.subr.bf16.mxu0 0
  %242 = vmatpush1.bf16.msra.mxu0 0
  %243 = vmatprep.subr.bf16.mxu0 0
  %244 = vmatpush1.bf16.msra.mxu0 0
  %245 = vmatprep.subr.bf16.mxu0 0
  %246 = vmatpush1.bf16.msra.mxu0 0
  %247 = vmatprep.subr.bf16.mxu0 0
  %248 = vmatpush1.bf16.msra.mxu0 0
  %249 = vmatprep.subr.bf16.mxu0 0
  %250 = vmatpush1.bf16.msra.mxu0 0
  %251 = vmatprep.subr.bf16.mxu0 0
  %252 = vmatpush1.bf16.msra.mxu0 0
  %253 = vmatprep.subr.bf16.mxu0 0
  %254 = vmatpush1.bf16.msra.mxu0 0
  %255 = vmatprep.subr.bf16.mxu0 0
  %256 = vmatpush1.bf16.msra.mxu0 0
  %257 = vmatprep.subr.bf16.mxu0 0
  %258 = vmatpush1.bf16.msra.mxu0 0
  %259 = vmatprep.subr.bf16.mxu0 0
  %260 = vmatpush1.bf16.msra.mxu0 0
  %261 = vmatprep.mubr.bf16.mxu0 0
  %262 = vmatmul.mubr.bf16.gmra.mrb[0].mxu0 %v227
  %v263 = vpop.f32.mrb[0].mxu0
  %v264 = vadd.f32 %v199, %v263
  %v265 = vpop.f32.mrb[0].mxu0
  %v266 = vpop.f32.mrb[0].mxu0
  %v267 = vadd.f32 %v199, %v266
  %v268 = vpop.f32.mrb[0].mxu0
  %269 = vdwg.mxu0
  %v270 = vmax.f32 %v264, 0.0
  %v271 = vmax.f32 %v267, 0.0
  %v272 = vld [vmem:[%s1] sm:$0xff]
  %v273 = vld [vmem:[%s1 + $0x8] sm:$0xff]
  %v274 = vld [vmem:[%s8] sm:$0x1]
  %v275 = vld [vmem:[%s9] sm:$0x1]
  %vm276 = vcmask 39936
  %v277 = vsel %vm276, %v272, 0.0
  %278 = vadd.xlane.f32.xlu0 %v277
  %v279 = vpop.xlane.xlu0 %278
  %v280 = vsel %vm276, %v273, 0.0
  %281 = vadd.xlane.f32.xlu0 %v280
  %v282 = vpop.xlane.xlu0 %281
  %v283 = vrcp.pop 5.0
  %v284 = vmul.f32 %v279, %v283
  %v285 = vmul.f32 %v282, %v283
  %v286 = vsub.f32 %v272, %v284
  %v287 = vsub.f32 %v273, %v285
  %v288 = vmul.f32 %v286, %v286
  %v289 = vmul.f32 %v287, %v287
  %v290 = vsel %vm276, %v288, 0.0
  %291 = vadd.xlane.f32.xlu0 %v290
  %v292 = vpop.xlane.xlu0 %291
  %v293 = vsel %vm276, %v289, 0.0
  %294 = vadd.xlane.f32.xlu0 %v293
  %v295 = vpop.xlane.xlu0 %294
  %v296 = vmul.f32 %v292, %v283
  %v297 = vmul.f32 %v295, %v283
  %v298 = vadd.f32 %v296, 1e-05
  %v299 = vadd.f32 %v297, 1e-05
  %v300 = vrsqrt.pop %v298
  %v301 = vrsqrt.pop %v299
  %v302 = vmul.f32 %v286, %v300
  %v303 = vmul.f32 %v287, %v301
  %v305 = vlaneseq
  %v306 = vshrl.u32 %v305, 7
  %v307 = vsub.s32 0, %v306
  %v308 = vrot.slane %v274, %v307
  %v310 = vmul.f32 %v302, %v308
  %v311 = vmul.f32 %v303, %v308
  %v313 = vlaneseq
  %v314 = vshrl.u32 %v313, 7
  %v315 = vsub.s32 0, %v314
  %v316 = vrot.slane %v275, %v315
  %v318 = vadd.f32 %v310, %v316
  %v319 = vadd.f32 %v311, %v316
  %v320 = vld [vmem:[%s10] sm:$0x1f]
  %v321 = vld [vmem:[%s11] sm:$0x1]
  %v323 = vlaneseq
  %v324 = vshrl.u32 %v323, 7
  %v325 = vsub.s32 0, %v324
  %v326 = vrot.slane %v321, %v325
  %v329 = vsel %vm276, %v318, 0
  %v332 = vsel %vm276, %v319, 0
  %vm334 = vcmask 1044480
  %v336 = vsel %vm334, %v320, 0
  %338 = vmatprep.subr.mxu0 0.0
  %339 = vmatpush1.msra.mxu0 %v336
  %340 = vmatprep.subr.mxu0 0.0
  %341 = vmatpush1.msra.mxu0 0.0
  %342 = vmatprep.subr.mxu0 0.0
  %343 = vmatpush1.msra.mxu0 0.0
  %344 = vmatprep.subr.mxu0 0.0
  %345 = vmatpush1.msra.mxu0 0.0
  %346 = vmatprep.subr.mxu0 0.0
  %347 = vmatpush1.msra.mxu0 0.0
  %348 = vmatprep.subr.mxu0 0.0
  %349 = vmatpush1.msra.mxu0 0.0
  %350 = vmatprep.subr.mxu0 0.0
  %351 = vmatpush1.msra.mxu0 0.0
  %352 = vmatprep.subr.mxu0 0.0
  %353 = vmatpush1.msra.mxu0 0.0
  %354 = vmatprep.subr.mxu0 0.0
  %355 = vmatpush1.msra.mxu0 0.0
  %356 = vmatprep.subr.mxu0 0.0
  %357 = vmatpush1.msra.mxu0 0.0
  %358 = vmatprep.subr.mxu0 0.0
  %359 = vmatpush1.msra.mxu0 0.0
  %360 = vmatprep.subr.mxu0 0.0
  %361 = vmatpush1.msra.mxu0 0.0
  %362 = vmatprep.subr.mxu0 0.0
  %363 = vmatpush1.msra.mxu0 0.0
  %364 = vmatprep.subr.mxu0 0.0
  %365 = vmatpush1.msra.mxu0 0.0
  %366 = vmatprep.subr.mxu0 0.0
  %367 = vmatpush1.msra.mxu0 0.0
  %368 = vmatprep.subr.mxu0 0.0
  %369 = vmatpush1.msra.mxu0 0.0
  %370 = vmatprep.subr.mxu0 0.0
  %371 = vmatpush1.msra.mxu0 0.0
  %372 = vmatprep.subr.mxu0 0.0
  %373 = vmatpush1.msra.mxu0 0.0
  %374 = vmatprep.subr.mxu0 0.0
  %375 = vmatpush1.msra.mxu0 0.0
  %376 = vmatprep.subr.mxu0 0.0
  %377 = vmatpush1.msra.mxu0 0.0
  %378 = vmatprep.subr.mxu0 0.0
  %379 = vmatpush1.msra.mxu0 0.0
  %380 = vmatprep.subr.mxu0 0.0
  %381 = vmatpush1.msra.mxu0 0.0
  %382 = vmatprep.subr.mxu0 0.0
  %383 = vmatpush1.msra.mxu0 0.0
  %384 = vmatprep.subr.mxu0 0.0
  %385 = vmatpush1.msra.mxu0 0.0
  %386 = vmatprep.subr.mxu0 0.0
  %387 = vmatpush1.msra.mxu0 0.0
  %388 = vmatprep.subr.mxu0 0.0
  %389 = vmatpush1.msra.mxu0 0.0
  %390 = vmatprep.subr.mxu0 0.0
  %391 = vmatpush1.msra.mxu0 0.0
  %392 = vmatprep.subr.mxu0 0.0
  %393 = vmatpush1.msra.mxu0 0.0
  %394 = vmatprep.subr.mxu0 0.0
  %395 = vmatpush1.msra.mxu0 0.0
  %396 = vmatprep.subr.mxu0 0.0
  %397 = vmatpush1.msra.mxu0 0.0
  %398 = vmatprep.subr.mxu0 0.0
  %399 = vmatpush1.msra.mxu0 0.0
  %400 = vmatprep.subr.mxu0 0.0
  %401 = vmatpush1.msra.mxu0 0.0
  %402 = vmatprep.mubr.f32.mxu0 0.0
  %403 = vmatmul.mubr.f32.gmra.mrb[0].mxu0 %v329
  %v404 = vpop.f32.mrb[0].mxu0
  %v405 = vadd.f32 %v326, %v404
  %v406 = vpop.f32.mrb[0].mxu0
  %407 = vmatprep.mubr.f32.mxu0 0.0
  %408 = vmatmul.mubr.f32.gmra.mrb[0].mxu0 %v332
  %v409 = vpop.f32.mrb[0].mxu0
  %v410 = vadd.f32 %v326, %v409
  %v411 = vpop.f32.mrb[0].mxu0
  %412 = vdwg.mxu0
  %v413 = vmax.f32 %v405, 0.0
  %v414 = vmax.f32 %v410, 0.0
  %v415 = vadd.f32 %v270, %v413
  %v416 = vadd.f32 %v271, %v414
  %417 = vst.msk [vmem:[%s12] sm:$0xff] %vm225, %v415
  %418 = vst.msk [vmem:[%s12 + $0x8] sm:$0xff] %vm225, %v416
  // Predicated region
  $region50: #{gnn_policy_forward.8} parent=0 // pred_check
    _
  $region51: #{gnn_policy_forward.8} parent=0 // pred_check_branch
    %420 = sbr.rel (0) target = $region53
  $region52: #{gnn_policy_forward.8} parent=0 // pred_region
    _
  $region53: #{gnn_policy_forward.8} parent=0 // pred_fallthru
    _
  // Predicated region
  $region54: #{gnn_policy_forward.8} parent=0 // pred_check
    _
  $region55: #{gnn_policy_forward.8} parent=0 // pred_check_branch
    %422 = sbr.rel (0) target = $region57
  $region56: #{gnn_policy_forward.8} parent=0 // pred_region
    _
  $region57: #{gnn_policy_forward.8} parent=0 // pred_fallthru
    _

// kernel: gnn_policy_forward.9
$region0: #{gnn_policy_forward.9}
  #allocation0 [shape = 'u32[]', space=smem, size = 0x4, offset = 0x4, fixed_abs, tag = 'smem constant byte address 0x4 - core index']
  #allocation1 [shape = 'u32[144,128]{1,0:T(1,128)}', space=vmem, size = 0x12000, scoped, tag = 'internal scratch']
  #allocation2 [shape = 's32[1]{0}', space=sflag, size = 0x4, scoped, tag = 'scoped memory for gnn_policy_forward.9']
  #allocation3 [shape = 'u8[512]{0}', space=smem, size = 0x200, scoped, tag = 'prefetched SMEM operand 0']
  #allocation4 [shape = 'u8[512]{0}', space=smem, size = 0x200, scoped, tag = 'prefetched SMEM operand 1']
  #allocation5 [shape = 'u8[512]{0}', space=smem, size = 0x200, scoped, tag = 'prefetched SMEM operand 2']
  %s0 = inlined_call_operand.vmem [shape: s32[2], index: 0, kind: input, shape index: {}]
  %s1 = inlined_call_operand.vmem [shape: s32[2], index: 1, kind: input, shape index: {}]
  %s2 = inlined_call_operand.vmem [shape: s32[2], index: 2, kind: input, shape index: {}]
  %s3 = inlined_call_operand.vmem [shape: s32[1,256], index: 3, kind: input, shape index: {}]
  %s4 = inlined_call_operand.vmem [shape: f32[256,64], index: 4, kind: input, shape index: {}]
  %s5 = inlined_call_operand.vmem [shape: f32[16,64], index: 5, kind: input, shape index: {}]
  %s6 = inlined_call_operand.vmem [shape: f32[1,64], index: 6, kind: input, shape index: {}]
  %s7 = inlined_call_operand.vmem [shape: f32[1,64], index: 7, kind: input, shape index: {}]
  %s8 = inlined_call_operand.vmem [shape: f32[1,64], index: 8, kind: input, shape index: {}]
  %s9 = inlined_call_operand.vmem [shape: bf16[64,64], index: 9, kind: input, shape index: {}]
  %s10 = inlined_call_operand.vmem [shape: f32[1,64], index: 10, kind: input, shape index: {}]
  %s11 = inlined_call_operand.vmem [shape: f32[1,64], index: 11, kind: input, shape index: {}]
  %s12 = inlined_call_operand.vmem [shape: f32[1,64], index: 12, kind: input, shape index: {}]
  %s13 = inlined_call_operand.vmem [shape: bf16[64,64], index: 13, kind: input, shape index: {}]
  %s14 = inlined_call_operand.vmem [shape: bf16[64,64], index: 14, kind: input, shape index: {}]
  %s15 = inlined_call_operand.vmem [shape: f32[1,64], index: 15, kind: input, shape index: {}]
  %s16 = inlined_call_operand.vmem [shape: bf16[64,64], index: 16, kind: input, shape index: {}]
  %s17 = inlined_call_operand.vmem [shape: f32[1,64], index: 17, kind: input, shape index: {}]
  %s18 = inlined_call_operand.vmem [shape: f32[16,64], index: 18, kind: output, shape index: {}]
  %s19 = sld [smem:[#allocation0]]
  $region101: #{gnn_policy_forward.9} parent=0
    _
  %s21 = ssub.s32 1, %s19
  %s22 = scalar_select 0, %s21, %s19
  %s23 = sshll.u32 %s0, 4
  %s24 = int_to_ptr.vmem [resolvable:$true] %s23
  %26 = dma.vmem_to_smem %s24, 16, [#allocation3], [#allocation2]
  %s27 = sshll.u32 %s1, 4
  %s28 = int_to_ptr.vmem [resolvable:$true] %s27
  %30 = dma.vmem_to_smem %s28, 16, [#allocation4], [#allocation2]
  %s31 = sshll.u32 %s2, 4
  %s32 = int_to_ptr.vmem [resolvable:$true] %s31
  %34 = dma.vmem_to_smem %s32, 16, [#allocation5], [#allocation2]
  %35 = dma.done [#allocation2], 48
  %36 = sfence
  loop: start=0, step=1, limit=4
  $region2: #{gnn_policy_forward.9} parent=0 // loop_pre_header
    _
  $region3: #{gnn_policy_forward.9} parent=0 // loop_header
    %s38 = sphi 0, %s42
    %p39 = scmp.ge.s32.totalorder %s38, 4
    %s48 = sphi 0, %s50
    %s51 = sphi 0, %s48
    %s52 = sphi 0, %s51
    %s68 = sphi 0, %s52
    %s74 = sphi 0, %s76
    %s77 = sphi 0, %s74
    %s78 = sphi 0, %s77
    %s94 = sphi 0, %s78
    %s102 = sphi 0, %s104
    %s105 = sphi 0, %s102
    %s106 = sphi 0, %s105
    %s122 = sphi 0, %s106
    %s126 = sphi 0, %s126
    %s128 = sphi 0, %s126
    %s129 = sphi 0, %s128
    %s143 = sphi 0, %s129
    %s147 = sphi 0, %s147
    %s149 = sphi 0, %s147
    %s150 = sphi 0, %s149
    %s164 = sphi 0, %s150
    %s168 = sphi 0, %s168
    %s170 = sphi 0, %s168
    %s171 = sphi 0, %s170
    %s185 = sphi 0, %s171
    %s189 = sphi 0, %s189
    %s191 = sphi 0, %s189
    %s192 = sphi 0, %s191
    %s206 = sphi 0, %s192
    %s210 = sphi 0, %s210
    %s212 = sphi 0, %s210
    %s213 = sphi 0, %s212
    %s227 = sphi 0, %s213
    %s231 = sphi 0, %s231
    %s233 = sphi 0, %s231
    %s234 = sphi 0, %s233
    %s248 = sphi 0, %s234
    %s252 = sphi 0, %s252
    %s254 = sphi 0, %s252
    %s255 = sphi 0, %s254
    %s269 = sphi 0, %s255
    %s273 = sphi 0, %s273
    %s275 = sphi 0, %s273
    %s276 = sphi 0, %s275
    %s290 = sphi 0, %s276
    %s294 = sphi 0, %s294
    %s296 = sphi 0, %s294
    %s297 = sphi 0, %s296
    %s311 = sphi 0, %s297
    %s315 = sphi 0, %s315
    %s317 = sphi 0, %s315
    %s318 = sphi 0, %s317
    %s332 = sphi 0, %s318
    %s336 = sphi 0, %s336
    %s338 = sphi 0, %s336
    %s339 = sphi 0, %s338
    %s353 = sphi 0, %s339
    %s357 = sphi 0, %s357
    %s359 = sphi 0, %s357
    %s360 = sphi 0, %s359
    %s374 = sphi 0, %s360
    %s382 = sphi 0, %s384
    %s385 = sphi 0, %s382
    %s386 = sphi 0, %s385
    %s402 = sphi 0, %s386
  $region4: #{gnn_policy_forward.9} parent=0 // loop_header_branch
    %41 = sbr.rel (%p39) target = $region8
  $region5: #{gnn_policy_forward.9} parent=0 // loop_body
    %s43 = ssub.s32 %s38, 1
    %s44 = ssub.s32 %s38, 2
    %s45 = sadd.s32 %s38, 1
    %s46 = ssub.s32 %s38, %s45
    %p47 = scmp.eq.s32.totalorder %s46, 0
    %s49 = sadd.s32 %s48, 1
    %s50 = scalar_select %p47, %s48, %s49
    %p53 = pneg %p47
    %p54 = scmp.eq.s32.totalorder %s38, 1
    %p55 = por %p53, %p54
    %p56 = scmp.ne.s32.totalorder %s48, %s51
    %p57 = scmp.eq.s32.totalorder %s38, 0
    %p58 = por %p56, %p57
    %p59 = scmp.ne.s32.totalorder %s48, %s51
    %p60 = scmp.eq.s32.totalorder %s43, 1
    %p61 = por %p59, %p60
    %p62 = scmp.ne.s32.totalorder %s51, %s52
    %p63 = scmp.eq.s32.totalorder %s43, 0
    %p64 = por %p62, %p63
    %p65 = scmp.ne.s32.totalorder %s51, %s52
    %p66 = scmp.eq.s32.totalorder %s44, 1
    %p67 = por %p65, %p66
    %p69 = scmp.ne.s32.totalorder %s52, %s68
    %p70 = scmp.eq.s32.totalorder %s44, 0
    %p71 = por %p69, %p70
    %s72 = ssub.s32 %s38, %s45
    %p73 = scmp.eq.s32.totalorder %s72, 0
    %s75 = sadd.s32 %s74, 1
    %s76 = scalar_select %p73, %s74, %s75
    %p79 = pneg %p73
    %p80 = scmp.eq.s32.totalorder %s38, 1
    %p81 = por %p79, %p80
    %p82 = scmp.ne.s32.totalorder %s74, %s77
    %p83 = scmp.eq.s32.totalorder %s38, 0
    %p84 = por %p82, %p83
    %p85 = scmp.ne.s32.totalorder %s74, %s77
    %p86 = scmp.eq.s32.totalorder %s43, 1
    %p87 = por %p85, %p86
    %p88 = scmp.ne.s32.totalorder %s77, %s78
    %p89 = scmp.eq.s32.totalorder %s43, 0
    %p90 = por %p88, %p89
    %p91 = scmp.ne.s32.totalorder %s77, %s78
    %p92 = scmp.eq.s32.totalorder %s44, 1
    %p93 = por %p91, %p92
    %p95 = scmp.ne.s32.totalorder %s78, %s94
    %p96 = scmp.eq.s32.totalorder %s44, 0
    %p97 = por %p95, %p96
    %s98 = sld [smem:[#allocation3 + %s38]]
    %s99 = sld [smem:[#allocation3 + %s45]]
    %s100 = ssub.s32 %s98, %s99
    %p101 = scmp.eq.s32.totalorder %s100, 0
    %s103 = sadd.s32 %s102, 1
    %s104 = scalar_select %p101, %s102, %s103
    %p107 = pneg %p101
    %p108 = scmp.eq.s32.totalorder %s38, 1
    %p109 = por %p107, %p108
    %p110 = scmp.ne.s32.totalorder %s102, %s105
    %p111 = scmp.eq.s32.totalorder %s38, 0
    %p112 = por %p110, %p111
    %p113 = scmp.ne.s32.totalorder %s102, %s105
    %p114 = scmp.eq.s32.totalorder %s43, 1
    %p115 = por %p113, %p114
    %p116 = scmp.ne.s32.totalorder %s105, %s106
    %p117 = scmp.eq.s32.totalorder %s43, 0
    %p118 = por %p116, %p117
    %p119 = scmp.ne.s32.totalorder %s105, %s106
    %p120 = scmp.eq.s32.totalorder %s44, 1
    %p121 = por %p119, %p120
    %p123 = scmp.ne.s32.totalorder %s106, %s122
    %p124 = scmp.eq.s32.totalorder %s44, 0
    %p125 = por %p123, %p124
    %s127 = sadd.s32 %s126, 1
    %p130 = scmp.eq.s32.totalorder %s38, 1
    %p131 = scmp.ne.s32.totalorder %s126, %s128
    %p132 = scmp.eq.s32.totalorder %s38, 0
    %p133 = por %p131, %p132
    %p134 = scmp.ne.s32.totalorder %s126, %s128
    %p135 = scmp.eq.s32.totalorder %s43, 1
    %p136 = por %p134, %p135
    %p137 = scmp.ne.s32.totalorder %s128, %s129
    %p138 = scmp.eq.s32.totalorder %s43, 0
    %p139 = por %p137, %p138
    %p140 = scmp.ne.s32.totalorder %s128, %s129
    %p141 = scmp.eq.s32.totalorder %s44, 1
    %p142 = por %p140, %p141
    %p144 = scmp.ne.s32.totalorder %s129, %s143
    %p145 = scmp.eq.s32.totalorder %s44, 0
    %p146 = por %p144, %p145
    %s148 = sadd.s32 %s147, 1
    %p151 = scmp.eq.s32.totalorder %s38, 1
    %p152 = scmp.ne.s32.totalorder %s147, %s149
    %p153 = scmp.eq.s32.totalorder %s38, 0
    %p154 = por %p152, %p153
    %p155 = scmp.ne.s32.totalorder %s147, %s149
    %p156 = scmp.eq.s32.totalorder %s43, 1
    %p157 = por %p155, %p156
    %p158 = scmp.ne.s32.totalorder %s149, %s150
    %p159 = scmp.eq.s32.totalorder %s43, 0
    %p160 = por %p158, %p159
    %p161 = scmp.ne.s32.totalorder %s149, %s150
    %p162 = scmp.eq.s32.totalorder %s44, 1
    %p163 = por %p161, %p162
    %p165 = scmp.ne.s32.totalorder %s150, %s164
    %p166 = scmp.eq.s32.totalorder %s44, 0
    %p167 = por %p165, %p166
    %s169 = sadd.s32 %s168, 1
    %p172 = scmp.eq.s32.totalorder %s38, 1
    %p173 = scmp.ne.s32.totalorder %s168, %s170
    %p174 = scmp.eq.s32.totalorder %s38, 0
    %p175 = por %p173, %p174
    %p176 = scmp.ne.s32.totalorder %s168, %s170
    %p177 = scmp.eq.s32.totalorder %s43, 1
    %p178 = por %p176, %p177
    %p179 = scmp.ne.s32.totalorder %s170, %s171
    %p180 = scmp.eq.s32.totalorder %s43, 0
    %p181 = por %p179, %p180
    %p182 = scmp.ne.s32.totalorder %s170, %s171
    %p183 = scmp.eq.s32.totalorder %s44, 1
    %p184 = por %p182, %p183
    %p186 = scmp.ne.s32.totalorder %s171, %s185
    %p187 = scmp.eq.s32.totalorder %s44, 0
    %p188 = por %p186, %p187
    %s190 = sadd.s32 %s189, 1
    %p193 = scmp.eq.s32.totalorder %s38, 1
    %p194 = scmp.ne.s32.totalorder %s189, %s191
    %p195 = scmp.eq.s32.totalorder %s38, 0
    %p196 = por %p194, %p195
    %p197 = scmp.ne.s32.totalorder %s189, %s191
    %p198 = scmp.eq.s32.totalorder %s43, 1
    %p199 = por %p197, %p198
    %p200 = scmp.ne.s32.totalorder %s191, %s192
    %p201 = scmp.eq.s32.totalorder %s43, 0
    %p202 = por %p200, %p201
    %p203 = scmp.ne.s32.totalorder %s191, %s192
    %p204 = scmp.eq.s32.totalorder %s44, 1
    %p205 = por %p203, %p204
    %p207 = scmp.ne.s32.totalorder %s192, %s206
    %p208 = scmp.eq.s32.totalorder %s44, 0
    %p209 = por %p207, %p208
    %s211 = sadd.s32 %s210, 1
    %p214 = scmp.eq.s32.totalorder %s38, 1
    %p215 = scmp.ne.s32.totalorder %s210, %s212
    %p216 = scmp.eq.s32.totalorder %s38, 0
    %p217 = por %p215, %p216
    %p218 = scmp.ne.s32.totalorder %s210, %s212
    %p219 = scmp.eq.s32.totalorder %s43, 1
    %p220 = por %p218, %p219
    %p221 = scmp.ne.s32.totalorder %s212, %s213
    %p222 = scmp.eq.s32.totalorder %s43, 0
    %p223 = por %p221, %p222
    %p224 = scmp.ne.s32.totalorder %s212, %s213
    %p225 = scmp.eq.s32.totalorder %s44, 1
    %p226 = por %p224, %p225
    %p228 = scmp.ne.s32.totalorder %s213, %s227
    %p229 = scmp.eq.s32.totalorder %s44, 0
    %p230 = por %p228, %p229
    %s232 = sadd.s32 %s231, 1
    %p235 = scmp.eq.s32.totalorder %s38, 1
    %p236 = scmp.ne.s32.totalorder %s231, %s233
    %p237 = scmp.eq.s32.totalorder %s38, 0
    %p238 = por %p236, %p237
    %p239 = scmp.ne.s32.totalorder %s231, %s233
    %p240 = scmp.eq.s32.totalorder %s43, 1
    %p241 = por %p239, %p240
    %p242 = scmp.ne.s32.totalorder %s233, %s234
    %p243 = scmp.eq.s32.totalorder %s43, 0
    %p244 = por %p242, %p243
    %p245 = scmp.ne.s32.totalorder %s233, %s234
    %p246 = scmp.eq.s32.totalorder %s44, 1
    %p247 = por %p245, %p246
    %p249 = scmp.ne.s32.totalorder %s234, %s248
    %p250 = scmp.eq.s32.totalorder %s44, 0
    %p251 = por %p249, %p250
    %s253 = sadd.s32 %s252, 1
    %p256 = scmp.eq.s32.totalorder %s38, 1
    %p257 = scmp.ne.s32.totalorder %s252, %s254
    %p258 = scmp.eq.s32.totalorder %s38, 0
    %p259 = por %p257, %p258
    %p260 = scmp.ne.s32.totalorder %s252, %s254
    %p261 = scmp.eq.s32.totalorder %s43, 1
    %p262 = por %p260, %p261
    %p263 = scmp.ne.s32.totalorder %s254, %s255
    %p264 = scmp.eq.s32.totalorder %s43, 0
    %p265 = por %p263, %p264
    %p266 = scmp.ne.s32.totalorder %s254, %s255
    %p267 = scmp.eq.s32.totalorder %s44, 1
    %p268 = por %p266, %p267
    %p270 = scmp.ne.s32.totalorder %s255, %s269
    %p271 = scmp.eq.s32.totalorder %s44, 0
    %p272 = por %p270, %p271
    %s274 = sadd.s32 %s273, 1
    %p277 = scmp.eq.s32.totalorder %s38, 1
    %p278 = scmp.ne.s32.totalorder %s273, %s275
    %p279 = scmp.eq.s32.totalorder %s38, 0
    %p280 = por %p278, %p279
    %p281 = scmp.ne.s32.totalorder %s273, %s275
    %p282 = scmp.eq.s32.totalorder %s43, 1
    %p283 = por %p281, %p282
    %p284 = scmp.ne.s32.totalorder %s275, %s276
    %p285 = scmp.eq.s32.totalorder %s43, 0
    %p286 = por %p284, %p285
    %p287 = scmp.ne.s32.totalorder %s275, %s276
    %p288 = scmp.eq.s32.totalorder %s44, 1
    %p289 = por %p287, %p288
    %p291 = scmp.ne.s32.totalorder %s276, %s290
    %p292 = scmp.eq.s32.totalorder %s44, 0
    %p293 = por %p291, %p292
    %s295 = sadd.s32 %s294, 1
    %p298 = scmp.eq.s32.totalorder %s38, 1
    %p299 = scmp.ne.s32.totalorder %s294, %s296
    %p300 = scmp.eq.s32.totalorder %s38, 0
    %p301 = por %p299, %p300
    %p302 = scmp.ne.s32.totalorder %s294, %s296
    %p303 = scmp.eq.s32.totalorder %s43, 1
    %p304 = por %p302, %p303
    %p305 = scmp.ne.s32.totalorder %s296, %s297
    %p306 = scmp.eq.s32.totalorder %s43, 0
    %p307 = por %p305, %p306
    %p308 = scmp.ne.s32.totalorder %s296, %s297
    %p309 = scmp.eq.s32.totalorder %s44, 1
    %p310 = por %p308, %p309
    %p312 = scmp.ne.s32.totalorder %s297, %s311
    %p313 = scmp.eq.s32.totalorder %s44, 0
    %p314 = por %p312, %p313
    %s316 = sadd.s32 %s315, 1
    %p319 = scmp.eq.s32.totalorder %s38, 1
    %p320 = scmp.ne.s32.totalorder %s315, %s317
    %p321 = scmp.eq.s32.totalorder %s38, 0
    %p322 = por %p320, %p321
    %p323 = scmp.ne.s32.totalorder %s315, %s317
    %p324 = scmp.eq.s32.totalorder %s43, 1
    %p325 = por %p323, %p324
    %p326 = scmp.ne.s32.totalorder %s317, %s318
    %p327 = scmp.eq.s32.totalorder %s43, 0
    %p328 = por %p326, %p327
    %p329 = scmp.ne.s32.totalorder %s317, %s318
    %p330 = scmp.eq.s32.totalorder %s44, 1
    %p331 = por %p329, %p330
    %p333 = scmp.ne.s32.totalorder %s318, %s332
    %p334 = scmp.eq.s32.totalorder %s44, 0
    %p335 = por %p333, %p334
    %s337 = sadd.s32 %s336, 1
    %p340 = scmp.eq.s32.totalorder %s38, 1
    %p341 = scmp.ne.s32.totalorder %s336, %s338
    %p342 = scmp.eq.s32.totalorder %s38, 0
    %p343 = por %p341, %p342
    %p344 = scmp.ne.s32.totalorder %s336, %s338
    %p345 = scmp.eq.s32.totalorder %s43, 1
    %p346 = por %p344, %p345
    %p347 = scmp.ne.s32.totalorder %s338, %s339
    %p348 = scmp.eq.s32.totalorder %s43, 0
    %p349 = por %p347, %p348
    %p350 = scmp.ne.s32.totalorder %s338, %s339
    %p351 = scmp.eq.s32.totalorder %s44, 1
    %p352 = por %p350, %p351
    %p354 = scmp.ne.s32.totalorder %s339, %s353
    %p355 = scmp.eq.s32.totalorder %s44, 0
    %p356 = por %p354, %p355
    %s358 = sadd.s32 %s357, 1
    %p361 = scmp.eq.s32.totalorder %s38, 1
    %p362 = scmp.ne.s32.totalorder %s357, %s359
    %p363 = scmp.eq.s32.totalorder %s38, 0
    %p364 = por %p362, %p363
    %p365 = scmp.ne.s32.totalorder %s357, %s359
    %p366 = scmp.eq.s32.totalorder %s43, 1
    %p367 = por %p365, %p366
    %p368 = scmp.ne.s32.totalorder %s359, %s360
    %p369 = scmp.eq.s32.totalorder %s43, 0
    %p370 = por %p368, %p369
    %p371 = scmp.ne.s32.totalorder %s359, %s360
    %p372 = scmp.eq.s32.totalorder %s44, 1
    %p373 = por %p371, %p372
    %p375 = scmp.ne.s32.totalorder %s360, %s374
    %p376 = scmp.eq.s32.totalorder %s44, 0
    %p377 = por %p375, %p376
    %s378 = sld [smem:[#allocation3 + %s38]]
    %s379 = sld [smem:[#allocation3 + %s45]]
    %s380 = ssub.s32 %s378, %s379
    %p381 = scmp.eq.s32.totalorder %s380, 0
    %s383 = sadd.s32 %s382, 1
    %s384 = scalar_select %p381, %s382, %s383
    %p387 = pneg %p381
    %p388 = scmp.eq.s32.totalorder %s38, 1
    %p389 = por %p387, %p388
    %p390 = scmp.ne.s32.totalorder %s382, %s385
    %p391 = scmp.eq.s32.totalorder %s38, 0
    %p392 = por %p390, %p391
    %p393 = scmp.ne.s32.totalorder %s382, %s385
    %p394 = scmp.eq.s32.totalorder %s43, 1
    %p395 = por %p393, %p394
    %p396 = scmp.ne.s32.totalorder %s385, %s386
    %p397 = scmp.eq.s32.totalorder %s43, 0
    %p398 = por %p396, %p397
    %p399 = scmp.ne.s32.totalorder %s385, %s386
    %p400 = scmp.eq.s32.totalorder %s44, 1
    %p401 = por %p399, %p400
    %p403 = scmp.ne.s32.totalorder %s386, %s402
    %p404 = scmp.eq.s32.totalorder %s44, 0
    %p405 = por %p403, %p404
    %p406 = scmp.le.s32.totalorder 1, %s38
    %p407 = scmp.lt.s32.totalorder %s38, 3
    %p408 = pnand %p406, %p407
    %p409 = pneg %p408
    // Predicated region
    $region9: #{gnn_policy_forward.9} parent=5 // pred_check
      _
    $region10: #{gnn_policy_forward.9} parent=5 // pred_check_branch
      %411 = sbr.rel (%p408) target = $region12
    $region11: #{gnn_policy_forward.9} parent=5 // pred_region
      %s412 = ssub.s32 %s38, 1
      // Predicated region
      $region13: #{gnn_policy_forward.9} parent=11 // pred_check
        %p413 = pneg %p139
      $region14: #{gnn_policy_forward.9} parent=11 // pred_check_branch
        %415 = sbr.rel (%p413) target = $region16
      $region15: #{gnn_policy_forward.9} parent=11 // pred_region
        _
      $region16: #{gnn_policy_forward.9} parent=11 // pred_fallthru
        _
      // Predicated region
      $region17: #{gnn_policy_forward.9} parent=11 // pred_check
        %p416 = pneg %p160
      $region18: #{gnn_policy_forward.9} parent=11 // pred_check_branch
        %418 = sbr.rel (%p416) target = $region20
      $region19: #{gnn_policy_forward.9} parent=11 // pred_region
        _
      $region20: #{gnn_policy_forward.9} parent=11 // pred_fallthru
        _
      // Predicated region
      $region21: #{gnn_policy_forward.9} parent=11 // pred_check
        %p419 = pneg %p181
      $region22: #{gnn_policy_forward.9} parent=11 // pred_check_branch
        %421 = sbr.rel (%p419) target = $region24
      $region23: #{gnn_policy_forward.9} parent=11 // pred_region
        _
      $region24: #{gnn_policy_forward.9} parent=11 // pred_fallthru
        _
      // Predicated region
      $region25: #{gnn_policy_forward.9} parent=11 // pred_check
        %p422 = pneg %p202
      $region26: #{gnn_policy_forward.9} parent=11 // pred_check_branch
        %424 = sbr.rel (%p422) target = $region28
      $region27: #{gnn_policy_forward.9} parent=11 // pred_region
        _
      $region28: #{gnn_policy_forward.9} parent=11 // pred_fallthru
        _
      // Predicated region
      $region29: #{gnn_policy_forward.9} parent=11 // pred_check
        %p425 = pneg %p223
      $region30: #{gnn_policy_forward.9} parent=11 // pred_check_branch
        %427 = sbr.rel (%p425) target = $region32
      $region31: #{gnn_policy_forward.9} parent=11 // pred_region
        _
      $region32: #{gnn_policy_forward.9} parent=11 // pred_fallthru
        _
      // Predicated region
      $region33: #{gnn_policy_forward.9} parent=11 // pred_check
        %p428 = pneg %p244
      $region34: #{gnn_policy_forward.9} parent=11 // pred_check_branch
        %430 = sbr.rel (%p428) target = $region36
      $region35: #{gnn_policy_forward.9} parent=11 // pred_region
        _
      $region36: #{gnn_policy_forward.9} parent=11 // pred_fallthru
        _
      // Predicated region
      $region37: #{gnn_policy_forward.9} parent=11 // pred_check
        %p431 = pneg %p265
      $region38: #{gnn_policy_forward.9} parent=11 // pred_check_branch
        %433 = sbr.rel (%p431) target = $region40
      $region39: #{gnn_policy_forward.9} parent=11 // pred_region
        _
      $region40: #{gnn_policy_forward.9} parent=11 // pred_fallthru
        _
      // Predicated region
      $region41: #{gnn_policy_forward.9} parent=11 // pred_check
        %p434 = pneg %p286
      $region42: #{gnn_policy_forward.9} parent=11 // pred_check_branch
        %436 = sbr.rel (%p434) target = $region44
      $region43: #{gnn_policy_forward.9} parent=11 // pred_region
        _
      $region44: #{gnn_policy_forward.9} parent=11 // pred_fallthru
        _
      // Predicated region
      $region45: #{gnn_policy_forward.9} parent=11 // pred_check
        %p437 = pneg %p307
      $region46: #{gnn_policy_forward.9} parent=11 // pred_check_branch
        %439 = sbr.rel (%p437) target = $region48
      $region47: #{gnn_policy_forward.9} parent=11 // pred_region
        _
      $region48: #{gnn_policy_forward.9} parent=11 // pred_fallthru
        _
      // Predicated region
      $region49: #{gnn_policy_forward.9} parent=11 // pred_check
        %p440 = pneg %p328
      $region50: #{gnn_policy_forward.9} parent=11 // pred_check_branch
        %442 = sbr.rel (%p440) target = $region52
      $region51: #{gnn_policy_forward.9} parent=11 // pred_region
        _
      $region52: #{gnn_policy_forward.9} parent=11 // pred_fallthru
        _
      // Predicated region
      $region53: #{gnn_policy_forward.9} parent=11 // pred_check
        %p443 = pneg %p349
      $region54: #{gnn_policy_forward.9} parent=11 // pred_check_branch
        %445 = sbr.rel (%p443) target = $region56
      $region55: #{gnn_policy_forward.9} parent=11 // pred_region
        _
      $region56: #{gnn_policy_forward.9} parent=11 // pred_fallthru
        _
      // Predicated region
      $region57: #{gnn_policy_forward.9} parent=11 // pred_check
        %p446 = pneg %p370
      $region58: #{gnn_policy_forward.9} parent=11 // pred_check_branch
        %448 = sbr.rel (%p446) target = $region60
      $region59: #{gnn_policy_forward.9} parent=11 // pred_region
        _
      $region60: #{gnn_policy_forward.9} parent=11 // pred_fallthru
        _
    $region12: #{gnn_policy_forward.9} parent=5 // pred_fallthru
      _
    %p449 = scmp.lt.s32.totalorder %s38, 2
    // Predicated region
    $region61: #{gnn_policy_forward.9} parent=5 // pred_check
      %p450 = pneg %p449
    $region62: #{gnn_policy_forward.9} parent=5 // pred_check_branch
      %452 = sbr.rel (%p450) target = $region64
    $region63: #{gnn_policy_forward.9} parent=5 // pred_region
      // Predicated region
      $region65: #{gnn_policy_forward.9} parent=63 // pred_check
        %p453 = pneg %p58
      $region66: #{gnn_policy_forward.9} parent=63 // pred_check_branch
        %455 = sbr.rel (%p453) target = $region68
      $region67: #{gnn_policy_forward.9} parent=63 // pred_region
        %p456 = scmp.lt.s32.totalorder %s38, 1
        %s457 = scalar_select %p456, %s38, 1
        %s458 = scalar_lea.vmem %s3, %s457
      $region68: #{gnn_policy_forward.9} parent=63 // pred_fallthru
        _
      // Predicated region
      $region69: #{gnn_policy_forward.9} parent=63 // pred_check
        %p459 = pneg %p84
      $region70: #{gnn_policy_forward.9} parent=63 // pred_check_branch
        %461 = sbr.rel (%p459) target = $region72
      $region71: #{gnn_policy_forward.9} parent=63 // pred_region
        %s462 = smul.u32 16, %s38
        %p463 = scmp.lt.s32.totalorder %s462, 31
        %s464 = scalar_select %p463, %s462, 31
        %s465 = smul.addr %s464, 8
        %s466 = scalar_lea.vmem %s4, %s465
        %s467 = smul.u32 16, %s38
      $region72: #{gnn_policy_forward.9} parent=63 // pred_fallthru
        _
      // Predicated region
      $region73: #{gnn_policy_forward.9} parent=63 // pred_check
        %p468 = pneg %p112
      $region74: #{gnn_policy_forward.9} parent=63 // pred_check_branch
        %470 = sbr.rel (%p468) target = $region76
      $region75: #{gnn_policy_forward.9} parent=63 // pred_region
        %s471 = sld [smem:[#allocation3 + %s38]]
        %s472 = smul.u32 2, %s471
        %p473 = scmp.lt.s32.totalorder %s472, 1
        %s474 = scalar_select %p473, %s472, 1
        %s475 = smul.addr %s474, 8
        %s476 = scalar_lea.vmem %s5, %s475
        %s477 = sld [smem:[#allocation3 + %s38]]
        %s478 = smul.u32 2, %s477
      $region76: #{gnn_policy_forward.9} parent=63 // pred_fallthru
        _
    $region64: #{gnn_policy_forward.9} parent=5 // pred_fallthru
      _
    %p479 = scmp.le.s32.totalorder 1, %s38
    %p480 = scmp.lt.s32.totalorder %s38, 3
    %p481 = pnand %p479, %p480
    %p482 = pneg %p481
    // Predicated region
    $region77: #{gnn_policy_forward.9} parent=5 // pred_check
      _
    $region78: #{gnn_policy_forward.9} parent=5 // pred_check_branch
      %484 = sbr.rel (%p481) target = $region80
    $region79: #{gnn_policy_forward.9} parent=5 // pred_region
      %s485 = ssub.s32 %s38, 1
      %p486 = scmp.lt.s32.totalorder %s43, 1
      %s487 = scalar_select %p486, %s43, 1
      %s488 = scalar_lea.vmem %s3, %s487
      %p489 = pneg %p64
      %p490 = pneg %p61
      %s491 = smul.u32 16, %s43
      %p492 = scmp.lt.s32.totalorder %s491, 31
      %s493 = scalar_select %p492, %s491, 31
      %s494 = smul.addr %s493, 8
      %s495 = scalar_lea.vmem %s4, %s494
      %p496 = pneg %p90
      %p497 = pneg %p87
      %s498 = sld [smem:[#allocation3 + %s43]]
      %s499 = smul.u32 2, %s498
      %p500 = scmp.lt.s32.totalorder %s499, 1
      %s501 = scalar_select %p500, %s499, 1
      %s502 = smul.addr %s501, 8
      %s503 = scalar_lea.vmem %s5, %s502
      %p504 = pneg %p118
      %p505 = pneg %p115
      %p506 = pneg %p139
      %p507 = pneg %p136
      %p508 = pneg %p160
      %p509 = pneg %p157
      %p510 = pneg %p181
      %p511 = pneg %p178
      %p512 = pneg %p202
      %p513 = pneg %p199
      %p514 = pneg %p223
      %p515 = pneg %p220
      %p516 = pneg %p244
      %p517 = pneg %p241
      %p518 = pneg %p265
      %p519 = pneg %p262
      %p520 = pneg %p286
      %p521 = pneg %p283
      %p522 = pneg %p307
      %p523 = pneg %p304
      %p524 = pneg %p328
      %p525 = pneg %p325
      %p526 = pneg %p349
      %p527 = pneg %p346
      %p528 = pneg %p370
      %p529 = pneg %p367
      %p530 = pneg %p398
      %p531 = pneg %p395
      %s532 = sld [smem:[#allocation3 + %s43]]
      %s533 = smul.u32 2, %s532
      %p534 = scmp.lt.s32.totalorder %s533, 1
      %s535 = scalar_select %p534, %s533, 1
      %s536 = smul.addr %s535, 8
      %s537 = scalar_lea.vmem %s18, %s536
      %p538 = scmp.lt.s32.totalorder %s43, 1
      %s539 = scalar_select %p538, %s43, 1
      %s540 = scalar_lea.vmem %s3, %s539
      %s541 = smul.u32 16, %s43
      %p542 = scmp.lt.s32.totalorder %s541, 31
      %s543 = scalar_select %p542, %s541, 31
      %s544 = smul.addr %s543, 8
      %s545 = scalar_lea.vmem %s4, %s544
      %s546 = smul.u32 16, %s43
      %s547 = sld [smem:[#allocation3 + %s43]]
      %s548 = smul.u32 2, %s547
      %p549 = scmp.lt.s32.totalorder %s548, 1
      %s550 = scalar_select %p549, %s548, 1
      %s551 = smul.addr %s550, 8
      %s552 = scalar_lea.vmem %s5, %s551
      %s553 = sld [smem:[#allocation3 + %s43]]
      %s554 = smul.u32 2, %s553
      %s555 = sld [smem:[#allocation3 + %s43]]
      %s556 = smul.u32 2, %s555
      %p557 = scmp.lt.s32.totalorder %s556, 1
      %s558 = scalar_select %p557, %s556, 1
      %s559 = smul.addr %s558, 8
      %s560 = scalar_lea.vmem %s18, %s559
      %s561 = sld [smem:[#allocation3 + %s43]]
      %s562 = smul.u32 2, %s561
      %s564 = sld [smem:[#allocation3 + %s43]]
      %s565 = sld [smem:[#allocation4 + %s43]]
      %p566 = scmp.eq.s32.totalorder %s565, 1
      // Predicated region
      $region81: #{gnn_policy_forward.9} parent=79 // pred_check
        %p567 = pneg %p566
      $region82: #{gnn_policy_forward.9} parent=79 // pred_check_branch
        %569 = sbr.rel (%p567) target = $region84
      $region83: #{gnn_policy_forward.9} parent=79 // pred_region
        %vm570 = vcmask 523264
        %571 = vst.msk [vmem:[%s560] sm:$0xff] %vm570, 0.0
        %572 = vst.msk [vmem:[%s560 + $0x8] sm:$0xff] %vm570, 0.0
      $region84: #{gnn_policy_forward.9} parent=79 // pred_fallthru
        _
      %v573 = vld [vmem:[%s545] sm:$0xff]
      %v574 = vld [vmem:[%s545 + $0x8] sm:$0xff]
      %v575 = vld [vmem:[%s545 + $0x10] sm:$0xff]
      %v576 = vld [vmem:[%s545 + $0x18] sm:$0xff]
      %v577 = vld [vmem:[%s545 + $0x20] sm:$0xff]
      %v578 = vld [vmem:[%s545 + $0x28] sm:$0xff]
      %v579 = vld [vmem:[%s545 + $0x30] sm:$0xff]
      %v580 = vld [vmem:[%s545 + $0x38] sm:$0xff]
      %v581 = vld [vmem:[%s545 + $0x40] sm:$0xff]
      %v582 = vld [vmem:[%s545 + $0x48] sm:$0xff]
      %v583 = vld [vmem:[%s545 + $0x50] sm:$0xff]
      %v584 = vld [vmem:[%s545 + $0x58] sm:$0xff]
      %v585 = vld [vmem:[%s545 + $0x60] sm:$0xff]
      %v586 = vld [vmem:[%s545 + $0x68] sm:$0xff]
      %v587 = vld [vmem:[%s545 + $0x70] sm:$0xff]
      %v588 = vld [vmem:[%s545 + $0x78] sm:$0xff]
      %v589 = vld [vmem:[%s6] sm:$0x1]
      %v591 = vlaneseq
      %v592 = vshrl.u32 %v591, 7
      %v593 = vsub.s32 0, %v592
      %v594 = vrot.slane %v589, %v593
      %v596 = vadd.f32 %v573, %v594
      %v597 = vadd.f32 %v574, %v594
      %v598 = vadd.f32 %v575, %v594
      %v599 = vadd.f32 %v576, %v594
      %v600 = vadd.f32 %v577, %v594
      %v601 = vadd.f32 %v578, %v594
      %v602 = vadd.f32 %v579, %v594
      %v603 = vadd.f32 %v580, %v594
      %v604 = vadd.f32 %v581, %v594
      %v605 = vadd.f32 %v582, %v594
      %v606 = vadd.f32 %v583, %v594
      %v607 = vadd.f32 %v584, %v594
      %v608 = vadd.f32 %v585, %v594
      %v609 = vadd.f32 %v586, %v594
      %v610 = vadd.f32 %v587, %v594
      %v611 = vadd.f32 %v588, %v594
      %v612 = vld [vmem:[%s7] sm:$0x1]
      %v613 = vld [vmem:[%s8] sm:$0x1]
      %vm614 = vcmask 523264
      %v615 = vsel %vm614, %v596, 0.0
      %616 = vadd.xlane.f32.xlu0 %v615
      %v617 = vpop.xlane.xlu0 %616
      %v618 = vsel %vm614, %v597, 0.0
      %619 = vadd.xlane.f32.xlu0 %v618
      %v620 = vpop.xlane.xlu0 %619
      %v621 = vsel %vm614, %v598, 0.0
      %622 = vadd.xlane.f32.xlu0 %v621
      %v623 = vpop.xlane.xlu0 %622
      %v624 = vsel %vm614, %v599, 0.0
      %625 = vadd.xlane.f32.xlu0 %v624
      %v626 = vpop.xlane.xlu0 %625
      %v627 = vsel %vm614, %v600, 0.0
      %628 = vadd.xlane.f32.xlu0 %v627
      %v629 = vpop.xlane.xlu0 %628
      %v630 = vsel %vm614, %v601, 0.0
      %631 = vadd.xlane.f32.xlu0 %v630
      %v632 = vpop.xlane.xlu0 %631
      %v633 = vsel %vm614, %v602, 0.0
      %634 = vadd.xlane.f32.xlu0 %v633
      %v635 = vpop.xlane.xlu0 %634
      %v636 = vsel %vm614, %v603, 0.0
      %637 = vadd.xlane.f32.xlu0 %v636
      %v638 = vpop.xlane.xlu0 %637
      %v639 = vsel %vm614, %v604, 0.0
      %640 = vadd.xlane.f32.xlu0 %v639
      %v641 = vpop.xlane.xlu0 %640
      %v642 = vsel %vm614, %v605, 0.0
      %643 = vadd.xlane.f32.xlu0 %v642
      %v644 = vpop.xlane.xlu0 %643
      %v645 = vsel %vm614, %v606, 0.0
      %646 = vadd.xlane.f32.xlu0 %v645
      %v647 = vpop.xlane.xlu0 %646
      %v648 = vsel %vm614, %v607, 0.0
      %649 = vadd.xlane.f32.xlu0 %v648
      %v650 = vpop.xlane.xlu0 %649
      %v651 = vsel %vm614, %v608, 0.0
      %652 = vadd.xlane.f32.xlu0 %v651
      %v653 = vpop.xlane.xlu0 %652
      %v654 = vsel %vm614, %v609, 0.0
      %655 = vadd.xlane.f32.xlu0 %v654
      %v656 = vpop.xlane.xlu0 %655
      %v657 = vsel %vm614, %v610, 0.0
      %658 = vadd.xlane.f32.xlu0 %v657
      %v659 = vpop.xlane.xlu0 %658
      %v660 = vsel %vm614, %v611, 0.0
      %661 = vadd.xlane.f32.xlu0 %v660
      %v662 = vpop.xlane.xlu0 %661
      %v663 = vrcp.pop 64.0
      %v664 = vmul.f32 %v617, %v663
      %v665 = vmul.f32 %v620, %v663
      %v666 = vmul.f32 %v623, %v663
      %v667 = vmul.f32 %v626, %v663
      %v668 = vmul.f32 %v629, %v663
      %v669 = vmul.f32 %v632, %v663
      %v670 = vmul.f32 %v635, %v663
      %v671 = vmul.f32 %v638, %v663
      %v672 = vmul.f32 %v641, %v663
      %v673 = vmul.f32 %v644, %v663
      %v674 = vmul.f32 %v647, %v663
      %v675 = vmul.f32 %v650, %v663
      %v676 = vmul.f32 %v653, %v663
      %v677 = vmul.f32 %v656, %v663
      %v678 = vmul.f32 %v659, %v663
      %v679 = vmul.f32 %v662, %v663
      %v680 = vsub.f32 %v596, %v664
      %v681 = vsub.f32 %v597, %v665
      %v682 = vsub.f32 %v598, %v666
      %v683 = vsub.f32 %v599, %v667
      %v684 = vsub.f32 %v600, %v668
      %v685 = vsub.f32 %v601, %v669
      %v686 = vsub.f32 %v602, %v670
      %v687 = vsub.f32 %v603, %v671
      %v688 = vsub.f32 %v604, %v672
      %v689 = vsub.f32 %v605, %v673
      %v690 = vsub.f32 %v606, %v674
      %v691 = vsub.f32 %v607, %v675
      %v692 = vsub.f32 %v608, %v676
      %v693 = vsub.f32 %v609, %v677
      %v694 = vsub.f32 %v610, %v678
      %v695 = vsub.f32 %v611, %v679
      %v696 = vmul.f32 %v680, %v680
      %v697 = vmul.f32 %v681, %v681
      %v698 = vmul.f32 %v682, %v682
      %v699 = vmul.f32 %v683, %v683
      %v700 = vmul.f32 %v684, %v684
      %v701 = vmul.f32 %v685, %v685
      %v702 = vmul.f32 %v686, %v686
      %v703 = vmul.f32 %v687, %v687
      %v704 = vmul.f32 %v688, %v688
      %v705 = vmul.f32 %v689, %v689
      %v706 = vmul.f32 %v690, %v690
      %v707 = vmul.f32 %v691, %v691
      %v708 = vmul.f32 %v692, %v692
      %v709 = vmul.f32 %v693, %v693
      %v710 = vmul.f32 %v694, %v694
      %v711 = vmul.f32 %v695, %v695
      %v712 = vsel %vm614, %v696, 0.0
      %713 = vadd.xlane.f32.xlu0 %v712
      %v714 = vpop.xlane.xlu0 %713
      %v715 = vsel %vm614, %v697, 0.0
      %716 = vadd.xlane.f32.xlu0 %v715
      %v717 = vpop.xlane.xlu0 %716
      %v718 = vsel %vm614, %v698, 0.0
      %719 = vadd.xlane.f32.xlu0 %v718
      %v720 = vpop.xlane.xlu0 %719
      %v721 = vsel %vm614, %v699, 0.0
      %722 = vadd.xlane.f32.xlu0 %v721
      %v723 = vpop.xlane.xlu0 %722
      %v724 = vsel %vm614, %v700, 0.0
      %725 = vadd.xlane.f32.xlu0 %v724
      %v726 = vpop.xlane.xlu0 %725
      %v727 = vsel %vm614, %v701, 0.0
      %728 = vadd.xlane.f32.xlu0 %v727
      %v729 = vpop.xlane.xlu0 %728
      %v730 = vsel %vm614, %v702, 0.0
      %731 = vadd.xlane.f32.xlu0 %v730
      %v732 = vpop.xlane.xlu0 %731
      %v733 = vsel %vm614, %v703, 0.0
      %734 = vadd.xlane.f32.xlu0 %v733
      %v735 = vpop.xlane.xlu0 %734
      %v736 = vsel %vm614, %v704, 0.0
      %737 = vadd.xlane.f32.xlu0 %v736
      %v738 = vpop.xlane.xlu0 %737
      %v739 = vsel %vm614, %v705, 0.0
      %740 = vadd.xlane.f32.xlu0 %v739
      %v741 = vpop.xlane.xlu0 %740
      %v742 = vsel %vm614, %v706, 0.0
      %743 = vadd.xlane.f32.xlu0 %v742
      %v744 = vpop.xlane.xlu0 %743
      %v745 = vsel %vm614, %v707, 0.0
      %746 = vadd.xlane.f32.xlu0 %v745
      %v747 = vpop.xlane.xlu0 %746
      %v748 = vsel %vm614, %v708, 0.0
      %749 = vadd.xlane.f32.xlu0 %v748
      %v750 = vpop.xlane.xlu0 %749
      %v751 = vsel %vm614, %v709, 0.0
      %752 = vadd.xlane.f32.xlu0 %v751
      %v753 = vpop.xlane.xlu0 %752
      %v754 = vsel %vm614, %v710, 0.0
      %755 = vadd.xlane.f32.xlu0 %v754
      %v756 = vpop.xlane.xlu0 %755
      %v757 = vsel %vm614, %v711, 0.0
      %758 = vadd.xlane.f32.xlu0 %v757
      %v759 = vpop.xlane.xlu0 %758
      %v760 = vmul.f32 %v714, %v663
      %v761 = vmul.f32 %v717, %v663
      %v762 = vmul.f32 %v720, %v663
      %v763 = vmul.f32 %v723, %v663
      %v764 = vmul.f32 %v726, %v663
      %v765 = vmul.f32 %v729, %v663
      %v766 = vmul.f32 %v732, %v663
      %v767 = vmul.f32 %v735, %v663
      %v768 = vmul.f32 %v738, %v663
      %v769 = vmul.f32 %v741, %v663
      %v770 = vmul.f32 %v744, %v663
      %v771 = vmul.f32 %v747, %v663
      %v772 = vmul.f32 %v750, %v663
      %v773 = vmul.f32 %v753, %v663
      %v774 = vmul.f32 %v756, %v663
      %v775 = vmul.f32 %v759, %v663
      %v776 = vadd.f32 %v760, 1e-05
      %v777 = vadd.f32 %v761, 1e-05
      %v778 = vadd.f32 %v762, 1e-05
      %v779 = vadd.f32 %v763, 1e-05
      %v780 = vadd.f32 %v764, 1e-05
      %v781 = vadd.f32 %v765, 1e-05
      %v782 = vadd.f32 %v766, 1e-05
      %v783 = vadd.f32 %v767, 1e-05
      %v784 = vadd.f32 %v768, 1e-05
      %v785 = vadd.f32 %v769, 1e-05
      %v786 = vadd.f32 %v770, 1e-05
      %v787 = vadd.f32 %v771, 1e-05
      %v788 = vadd.f32 %v772, 1e-05
      %v789 = vadd.f32 %v773, 1e-05
      %v790 = vadd.f32 %v774, 1e-05
      %v791 = vadd.f32 %v775, 1e-05
      %v792 = vrsqrt.pop %v776
      %v793 = vrsqrt.pop %v777
      %v794 = vrsqrt.pop %v778
      %v795 = vrsqrt.pop %v779
      %v796 = vrsqrt.pop %v780
      %v797 = vrsqrt.pop %v781
      %v798 = vrsqrt.pop %v782
      %v799 = vrsqrt.pop %v783
      %v800 = vrsqrt.pop %v784
      %v801 = vrsqrt.pop %v785
      %v802 = vrsqrt.pop %v786
      %v803 = vrsqrt.pop %v787
      %v804 = vrsqrt.pop %v788
      %v805 = vrsqrt.pop %v789
      %v806 = vrsqrt.pop %v790
      %v807 = vrsqrt.pop %v791
      %v808 = vmul.f32 %v680, %v792
      %v809 = vmul.f32 %v681, %v793
      %v810 = vmul.f32 %v682, %v794
      %v811 = vmul.f32 %v683, %v795
      %v812 = vmul.f32 %v684, %v796
      %v813 = vmul.f32 %v685, %v797
      %v814 = vmul.f32 %v686, %v798
      %v815 = vmul.f32 %v687, %v799
      %v816 = vmul.f32 %v688, %v800
      %v817 = vmul.f32 %v689, %v801
      %v818 = vmul.f32 %v690, %v802
      %v819 = vmul.f32 %v691, %v803
      %v820 = vmul.f32 %v692, %v804
      %v821 = vmul.f32 %v693, %v805
      %v822 = vmul.f32 %v694, %v806
      %v823 = vmul.f32 %v695, %v807
      %v825 = vlaneseq
      %v826 = vshrl.u32 %v825, 7
      %v827 = vsub.s32 0, %v826
      %v828 = vrot.slane %v612, %v827
      %v830 = vmul.f32 %v808, %v828
      %v831 = vmul.f32 %v809, %v828
      %v832 = vmul.f32 %v810, %v828
      %v833 = vmul.f32 %v811, %v828
      %v834 = vmul.f32 %v812, %v828
      %v835 = vmul.f32 %v813, %v828
      %v836 = vmul.f32 %v814, %v828
      %v837 = vmul.f32 %v815, %v828
      %v838 = vmul.f32 %v816, %v828
      %v839 = vmul.f32 %v817, %v828
      %v840 = vmul.f32 %v818, %v828
      %v841 = vmul.f32 %v819, %v828
      %v842 = vmul.f32 %v820, %v828
      %v843 = vmul.f32 %v821, %v828
      %v844 = vmul.f32 %v822, %v828
      %v845 = vmul.f32 %v823, %v828
      %v847 = vlaneseq
      %v848 = vshrl.u32 %v847, 7
      %v849 = vsub.s32 0, %v848
      %v850 = vrot.slane %v613, %v849
      %v852 = vadd.f32 %v830, %v850
      %v853 = vadd.f32 %v831, %v850
      %v854 = vadd.f32 %v832, %v850
      %v855 = vadd.f32 %v833, %v850
      %v856 = vadd.f32 %v834, %v850
      %v857 = vadd.f32 %v835, %v850
      %v858 = vadd.f32 %v836, %v850
      %v859 = vadd.f32 %v837, %v850
      %v860 = vadd.f32 %v838, %v850
      %v861 = vadd.f32 %v839, %v850
      %v862 = vadd.f32 %v840, %v850
      %v863 = vadd.f32 %v841, %v850
      %v864 = vadd.f32 %v842, %v850
      %v865 = vadd.f32 %v843, %v850
      %v866 = vadd.f32 %v844, %v850
      %v867 = vadd.f32 %v845, %v850
      %v868 = vmax.f32 %v852, 0.0
      %v869 = vmax.f32 %v853, 0.0
      %v870 = vmax.f32 %v854, 0.0
      %v871 = vmax.f32 %v855, 0.0
      %v872 = vmax.f32 %v856, 0.0
      %v873 = vmax.f32 %v857, 0.0
      %v874 = vmax.f32 %v858, 0.0
      %v875 = vmax.f32 %v859, 0.0
      %v876 = vmax.f32 %v860, 0.0
      %v877 = vmax.f32 %v861, 0.0
      %v878 = vmax.f32 %v862, 0.0
      %v879 = vmax.f32 %v863, 0.0
      %v880 = vmax.f32 %v864, 0.0
      %v881 = vmax.f32 %v865, 0.0
      %v882 = vmax.f32 %v866, 0.0
      %v883 = vmax.f32 %v867, 0.0
      %v884 = vpack.c.bf16 %v869, %v868
      %v885 = vpack.c.bf16 %v871, %v870
      %v886 = vpack.c.bf16 %v873, %v872
      %v887 = vpack.c.bf16 %v875, %v874
      %v888 = vpack.c.bf16 %v877, %v876
      %v889 = vpack.c.bf16 %v879, %v878
      %v890 = vpack.c.bf16 %v881, %v880
      %v891 = vpack.c.bf16 %v883, %v882
      %v892 = vld [vmem:[%s9] sm:$0xf]
      %v893 = vld [vmem:[%s9 + $0x4] sm:$0xf]
      %v894 = vld [vmem:[%s9 + $0x8] sm:$0xf]
      %v895 = vld [vmem:[%s9 + $0xc] sm:$0xf]
      %v896 = vld [vmem:[%s9 + $0x10] sm:$0xf]
      %v897 = vld [vmem:[%s9 + $0x14] sm:$0xf]
      %v898 = vld [vmem:[%s9 + $0x18] sm:$0xf]
      %v899 = vld [vmem:[%s9 + $0x1c] sm:$0xf]
      %v900 = vld [vmem:[%s10] sm:$0x1]
      %v902 = vlaneseq
      %v903 = vshrl.u32 %v902, 7
      %v904 = vsub.s32 0, %v903
      %v905 = vrot.slane %v900, %v904
      %v915 = vunpack.c.l.b16 %v892
      %v916 = vunpack.c.l.b16 %v893
      %v917 = vunpack.c.l.b16 %v894
      %v918 = vunpack.c.l.b16 %v895
      %v919 = vunpack.c.l.b16 %v896
      %v920 = vunpack.c.l.b16 %v897
      %v921 = vunpack.c.l.b16 %v898
      %v922 = vunpack.c.l.b16 %v899
      %v923 = vpack.c.b16 %v916, %v915
      %v924 = vpack.c.b16 %v918, %v917
      %v925 = vpack.c.b16 %v920, %v919
      %v926 = vpack.c.b16 %v922, %v921
      %v932 = vsel %vm614, %v884, 0
      %v935 = vsel %vm614, %v885, 0
      %v938 = vsel %vm614, %v886, 0
      %v941 = vsel %vm614, %v887, 0
      %v944 = vsel %vm614, %v888, 0
      %v947 = vsel %vm614, %v889, 0
      %v950 = vsel %vm614, %v890, 0
      %v953 = vsel %vm614, %v891, 0
      %955 = vmatprep.subr.bf16.mxu0 0
      %956 = vmatpush1.bf16.msra.mxu0 %v923
      %957 = vmatprep.subr.bf16.mxu0 0
      %958 = vmatpush1.bf16.msra.mxu0 %v924
      %959 = vmatprep.subr.bf16.mxu0 0
      %960 = vmatpush1.bf16.msra.mxu0 %v925
      %961 = vmatprep.subr.bf16.mxu0 0
      %962 = vmatpush1.bf16.msra.mxu0 %v926
      %963 = vmatprep.subr.bf16.mxu0 0
      %964 = vmatpush1.bf16.msra.mxu0 0
      %965 = vmatprep.subr.bf16.mxu0 0
      %966 = vmatpush1.bf16.msra.mxu0 0
      %967 = vmatprep.subr.bf16.mxu0 0
      %968 = vmatpush1.bf16.msra.mxu0 0
      %969 = vmatprep.subr.bf16.mxu0 0
      %970 = vmatpush1.bf16.msra.mxu0 0
      %971 = vmatprep.subr.bf16.mxu0 0
      %972 = vmatpush1.bf16.msra.mxu0 0
      %973 = vmatprep.subr.bf16.mxu0 0
      %974 = vmatpush1.bf16.msra.mxu0 0
      %975 = vmatprep.subr.bf16.mxu0 0
      %976 = vmatpush1.bf16.msra.mxu0 0
      %977 = vmatprep.subr.bf16.mxu0 0
      %978 = vmatpush1.bf16.msra.mxu0 0
      %979 = vmatprep.subr.bf16.mxu0 0
      %980 = vmatpush1.bf16.msra.mxu0 0
      %981 = vmatprep.subr.bf16.mxu0 0
      %982 = vmatpush1.bf16.msra.mxu0 0
      %983 = vmatprep.subr.bf16.mxu0 0
      %984 = vmatpush1.bf16.msra.mxu0 0
      %985 = vmatprep.subr.bf16.mxu0 0
      %986 = vmatpush1.bf16.msra.mxu0 0
      %987 = vmatprep.mubr.bf16.mxu0 0
      %988 = vmatmul.mubr.bf16.gmra.mrb[0].mxu0 %v932
      %v989 = vpop.f32.mrb[0].mxu0
      %v990 = vadd.f32 %v905, %v989
      %v991 = vpop.f32.mrb[0].mxu0
      %v992 = vpop.f32.mrb[0].mxu0
      %v993 = vadd.f32 %v905, %v992
      %v994 = vpop.f32.mrb[0].mxu0
      %995 = vmatprep.mubr.bf16.mxu0 0
      %996 = vmatmul.mubr.bf16.gmra.mrb[0].mxu0 %v935
      %v997 = vpop.f32.mrb[0].mxu0
      %v998 = vadd.f32 %v905, %v997
      %v999 = vpop.f32.mrb[0].mxu0
      %v1000 = vpop.f32.mrb[0].mxu0
      %v1001 = vadd.f32 %v905, %v1000
      %v1002 = vpop.f32.mrb[0].mxu0
      %1003 = vmatprep.mubr.bf16.mxu0 0
      %1004 = vmatmul.mubr.bf16.gmra.mrb[0].mxu0 %v938
      %v1005 = vpop.f32.mrb[0].mxu0
      %v1006 = vadd.f32 %v905, %v1005
      %v1007 = vpop.f32.mrb[0].mxu0
      %v1008 = vpop.f32.mrb[0].mxu0
      %v1009 = vadd.f32 %v905, %v1008
      %v1010 = vpop.f32.mrb[0].mxu0
      %1011 = vmatprep.mubr.bf16.mxu0 0
      %1012 = vmatmul.mubr.bf16.gmra.mrb[0].mxu0 %v941
      %v1013 = vpop.f32.mrb[0].mxu0
      %v1014 = vadd.f32 %v905, %v1013
      %v1015 = vpop.f32.mrb[0].mxu0
      %v1016 = vpop.f32.mrb[0].mxu0
      %v1017 = vadd.f32 %v905, %v1016
      %v1018 = vpop.f32.mrb[0].mxu0
      %1019 = vmatprep.mubr.bf16.mxu0 0
      %1020 = vmatmul.mubr.bf16.gmra.mrb[0].mxu0 %v944
      %v1021 = vpop.f32.mrb[0].mxu0
      %v1022 = vadd.f32 %v905, %v1021
      %v1023 = vpop.f32.mrb[0].mxu0
      %v1024 = vpop.f32.mrb[0].mxu0
      %v1025 = vadd.f32 %v905, %v1024
      %v1026 = vpop.f32.mrb[0].mxu0
      %1027 = vmatprep.mubr.bf16.mxu0 0
      %1028 = vmatmul.mubr.bf16.gmra.mrb[0].mxu0 %v947
      %v1029 = vpop.f32.mrb[0].mxu0
      %v1030 = vadd.f32 %v905, %v1029
      %v1031 = vpop.f32.mrb[0].mxu0
      %v1032 = vpop.f32.mrb[0].mxu0
      %v1033 = vadd.f32 %v905, %v1032
      %v1034 = vpop.f32.mrb[0].mxu0
      %1035 = vmatprep.mubr.bf16.mxu0 0
      %1036 = vmatmul.mubr.bf16.gmra.mrb[0].mxu0 %v950
      %v1037 = vpop.f32.mrb[0].mxu0
      %v1038 = vadd.f32 %v905, %v1037
      %v1039 = vpop.f32.mrb[0].mxu0
      %v1040 = vpop.f32.mrb[0].mxu0
      %v1041 = vadd.f32 %v905, %v1040
      %v1042 = vpop.f32.mrb[0].mxu0
      %1043 = vmatprep.mubr.bf16.mxu0 0
      %1044 = vmatmul.mubr.bf16.gmra.mrb[0].mxu0 %v953
      %v1045 = vpop.f32.mrb[0].mxu0
      %v1046 = vadd.f32 %v905, %v1045
      %v1047 = vpop.f32.mrb[0].mxu0
      %v1048 = vpop.f32.mrb[0].mxu0
      %v1049 = vadd.f32 %v905, %v1048
      %v1050 = vpop.f32.mrb[0].mxu0
      %1051 = vdwg.mxu0
      %v1052 = vlaneseq
      %v1053 = vshrl.u32 %v1052, 7
      %v1054 = vadd.s32 %v1053, 8
      %s1055 = smul.u32 %s564, 16
      %v1056 = vstv %s1055
      %v1057 = vadd.s32 %v1053, %v1056
      %v1058 = vadd.s32 %v1054, %v1056
      %v1059 = vld [vmem:[%s540] sm:$0x1]
      %v1060 = vlaneseq
      %v1061 = vshrl.u32 %v1060, 7
      %v1062 = vsub.s32 0, %v1061
      %v1063 = vrot.slane %v1059, %v1062
      %vm1064 = vcmp.eq.s32.totalorder %v1057, %v1063
      %vm1065 = vcmp.eq.s32.totalorder %v1058, %v1063
      %v1066 = vsel %vm1064, 1, 0
      %v1067 = vsel %vm1065, 1, 0
      %v1068 = vcvt.s32.f32 %v1066
      %v1069 = vcvt.s32.f32 %v1067
      %v1070 = vpack.c.bf16 %v1069, %v1068
      %v1071 = vld [vmem:[%s560] sm:$0xff]
      %v1072 = vld [vmem:[%s560 + $0x8] sm:$0xff]
      %v1073 = vpack.c.bf16 %v993, %v990
      %v1074 = vpack.c.bf16 %v1001, %v998
      %v1075 = vpack.c.bf16 %v1009, %v1006
      %v1076 = vpack.c.bf16 %v1017, %v1014
      %v1077 = vpack.c.bf16 %v1025, %v1022
      %v1078 = vpack.c.bf16 %v1033, %v1030
      %v1079 = vpack.c.bf16 %v1041, %v1038
      %v1080 = vpack.c.bf16 %v1049, %v1046
      %1081 = vmatprep.subr.bf16.mxu0 0
      %1082 = vmatpush1.bf16.msra.mxu0 %v1073
      %1083 = vmatprep.subr.bf16.mxu0 0
      %1084 = vmatpush1.bf16.msra.mxu0 %v1074
      %1085 = vmatprep.subr.bf16.mxu0 0
      %1086 = vmatpush1.bf16.msra.mxu0 %v1075
      %1087 = vmatprep.subr.bf16.mxu0 0
      %1088 = vmatpush1.bf16.msra.mxu0 %v1076
      %1089 = vmatprep.subr.bf16.mxu0 0
      %1090 = vmatpush1.bf16.msra.mxu0 %v1077
      %1091 = vmatprep.subr.bf16.mxu0 0
      %1092 = vmatpush1.bf16.msra.mxu0 %v1078
      %1093 = vmatprep.subr.bf16.mxu0 0
      %1094 = vmatpush1.bf16.msra.mxu0 %v1079
      %1095 = vmatprep.subr.bf16.mxu0 0
      %1096 = vmatpush1.bf16.msra.mxu0 %v1080
      %1097 = vmatprep.subr.bf16.mxu0 0
      %1098 = vmatpush1.bf16.msra.mxu0 0
      %1099 = vmatprep.subr.bf16.mxu0 0
      %1100 = vmatpush1.bf16.msra.mxu0 0
      %1101 = vmatprep.subr.bf16.mxu0 0
      %1102 = vmatpush1.bf16.msra.mxu0 0
      %1103 = vmatprep.subr.bf16.mxu0 0
      %1104 = vmatpush1.bf16.msra.mxu0 0
      %1105 = vmatprep.subr.bf16.mxu0 0
      %1106 = vmatpush1.bf16.msra.mxu0 0
      %1107 = vmatprep.subr.bf16.mxu0 0
      %1108 = vmatpush1.bf16.msra.mxu0 0
      %1109 = vmatprep.subr.bf16.mxu0 0
      %1110 = vmatpush1.bf16.msra.mxu0 0
      %1111 = vmatprep.subr.bf16.mxu0 0
      %1112 = vmatpush1.bf16.msra.mxu0 0
      %1113 = vmatprep.mubr.bf16.mxu0 0
      %1114 = vmatmul.mubr.bf16.gmra.mrb[0].mxu0 %v1070
      %v1115 = vpop.f32.mrb[0].mxu0
      %v1116 = vadd.f32 0.0, %v1115
      %v1117 = vpop.f32.mrb[0].mxu0
      %v1118 = vpop.f32.mrb[0].mxu0
      %v1119 = vadd.f32 0.0, %v1118
      %v1120 = vpop.f32.mrb[0].mxu0
      %1121 = vdwg.mxu0
      %v1122 = vadd.f32 %v1071, %v1116
      %v1123 = vadd.f32 %v1072, %v1119
      %1124 = vst.msk [vmem:[%s560] sm:$0xff] %vm614, %v1122
      %1125 = vst.msk [vmem:[%s560 + $0x8] sm:$0xff] %vm614, %v1123
      %s1126 = sld [smem:[#allocation5 + %s43]]
      %p1127 = scmp.eq.s32.totalorder %s1126, 1
      // Predicated region
      $region85: #{gnn_policy_forward.9} parent=79 // pred_check
        %p1128 = pneg %p1127
      $region86: #{gnn_policy_forward.9} parent=79 // pred_check_branch
        %1130 = sbr.rel (%p1128) target = $region88
      $region87: #{gnn_policy_forward.9} parent=79 // pred_region
        %v1131 = vld [vmem:[%s560] sm:$0xff]
        %v1132 = vld [vmem:[%s560 + $0x8] sm:$0xff]
        %v1133 = vld [vmem:[%s11] sm:$0x1]
        %v1134 = vld [vmem:[%s12] sm:$0x1]
        %v1135 = vsel %vm614, %v1131, 0.0
        %1136 = vadd.xlane.f32.xlu0 %v1135
        %v1137 = vpop.xlane.xlu0 %1136
        %v1138 = vsel %vm614, %v1132, 0.0
        %1139 = vadd.xlane.f32.xlu0 %v1138
        %v1140 = vpop.xlane.xlu0 %1139
        %v1141 = vmul.f32 %v1137, %v663
        %v1142 = vmul.f32 %v1140, %v663
        %v1143 = vsub.f32 %v1131, %v1141
        %v1144 = vsub.f32 %v1132, %v1142
        %v1145 = vmul.f32 %v1143, %v1143
        %v1146 = vmul.f32 %v1144, %v1144
        %v1147 = vsel %vm614, %v1145, 0.0
        %1148 = vadd.xlane.f32.xlu0 %v1147
        %v1149 = vpop.xlane.xlu0 %1148
        %v1150 = vsel %vm614, %v1146, 0.0
        %1151 = vadd.xlane.f32.xlu0 %v1150
        %v1152 = vpop.xlane.xlu0 %1151
        %v1153 = vmul.f32 %v1149, %v663
        %v1154 = vmul.f32 %v1152, %v663
        %v1155 = vadd.f32 %v1153, 1e-05
        %v1156 = vadd.f32 %v1154, 1e-05
        %v1157 = vrsqrt.pop %v1155
        %v1158 = vrsqrt.pop %v1156
        %v1159 = vmul.f32 %v1143, %v1157
        %v1160 = vmul.f32 %v1144, %v1158
        %v1162 = vlaneseq
        %v1163 = vshrl.u32 %v1162, 7
        %v1164 = vsub.s32 0, %v1163
        %v1165 = vrot.slane %v1133, %v1164
        %v1167 = vmul.f32 %v1159, %v1165
        %v1168 = vmul.f32 %v1160, %v1165
        %v1170 = vlaneseq
        %v1171 = vshrl.u32 %v1170, 7
        %v1172 = vsub.s32 0, %v1171
        %v1173 = vrot.slane %v1134, %v1172
        %v1175 = vadd.f32 %v1167, %v1173
        %v1176 = vadd.f32 %v1168, %v1173
        %v1177 = vpack.c.bf16 %v1176, %v1175
        %v1178 = vld [vmem:[%s13] sm:$0xf]
        %v1179 = vld [vmem:[%s13 + $0x4] sm:$0xf]
        %v1180 = vld [vmem:[%s13 + $0x8] sm:$0xf]
        %v1181 = vld [vmem:[%s13 + $0xc] sm:$0xf]
        %v1182 = vld [vmem:[%s13 + $0x10] sm:$0xf]
        %v1183 = vld [vmem:[%s13 + $0x14] sm:$0xf]
        %v1184 = vld [vmem:[%s13 + $0x18] sm:$0xf]
        %v1185 = vld [vmem:[%s13 + $0x1c] sm:$0xf]
        %v1186 = vld [vmem:[%s552] sm:$0xff]
        %v1187 = vld [vmem:[%s552 + $0x8] sm:$0xff]
        %v1188 = vpack.c.bf16 %v1187, %v1186
        %v1189 = vld [vmem:[%s14] sm:$0xf]
        %v1190 = vld [vmem:[%s14 + $0x4] sm:$0xf]
        %v1191 = vld [vmem:[%s14 + $0x8] sm:$0xf]
        %v1192 = vld [vmem:[%s14 + $0xc] sm:$0xf]
        %v1193 = vld [vmem:[%s14 + $0x10] sm:$0xf]
        %v1194 = vld [vmem:[%s14 + $0x14] sm:$0xf]
        %v1195 = vld [vmem:[%s14 + $0x18] sm:$0xf]
        %v1196 = vld [vmem:[%s14 + $0x1c] sm:$0xf]
        %v1205 = vunpack.c.l.b16 %v1189
        %v1206 = vunpack.c.l.b16 %v1190
        %v1207 = vunpack.c.l.b16 %v1191
        %v1208 = vunpack.c.l.b16 %v1192
        %v1209 = vunpack.c.l.b16 %v1193
        %v1210 = vunpack.c.l.b16 %v1194
        %v1211 = vunpack.c.l.b16 %v1195
        %v1212 = vunpack.c.l.b16 %v1196
        %v1213 = vpack.c.b16 %v1206, %v1205
        %v1214 = vpack.c.b16 %v1208, %v1207
        %v1215 = vpack.c.b16 %v1210, %v1209
        %v1216 = vpack.c.b16 %v1212, %v1211
        %v1222 = vsel %vm614, %v1188, 0
        %1224 = vmatprep.subr.bf16.mxu0 0
        %1225 = vmatpush1.bf16.msra.mxu0 %v1213
        %1226 = vmatprep.subr.bf16.mxu0 0
        %1227 = vmatpush1.bf16.msra.mxu0 %v1214
        %1228 = vmatprep.subr.bf16.mxu0 0
        %1229 = vmatpush1.bf16.msra.mxu0 %v1215
        %1230 = vmatprep.subr.bf16.mxu0 0
        %1231 = vmatpush1.bf16.msra.mxu0 %v1216
        %1232 = vmatprep.subr.bf16.mxu0 0
        %1233 = vmatpush1.bf16.msra.mxu0 0
        %1234 = vmatprep.subr.bf16.mxu0 0
        %1235 = vmatpush1.bf16.msra.mxu0 0
        %1236 = vmatprep.subr.bf16.mxu0 0
        %1237 = vmatpush1.bf16.msra.mxu0 0
        %1238 = vmatprep.subr.bf16.mxu0 0
        %1239 = vmatpush1.bf16.msra.mxu0 0
        %1240 = vmatprep.subr.bf16.mxu0 0
        %1241 = vmatpush1.bf16.msra.mxu0 0
        %1242 = vmatprep.subr.bf16.mxu0 0
        %1243 = vmatpush1.bf16.msra.mxu0 0
        %1244 = vmatprep.subr.bf16.mxu0 0
        %1245 = vmatpush1.bf16.msra.mxu0 0
        %1246 = vmatprep.subr.bf16.mxu0 0
        %1247 = vmatpush1.bf16.msra.mxu0 0
        %1248 = vmatprep.subr.bf16.mxu0 0
        %1249 = vmatpush1.bf16.msra.mxu0 0
        %1250 = vmatprep.subr.bf16.mxu0 0
        %1251 = vmatpush1.bf16.msra.mxu0 0
        %1252 = vmatprep.subr.bf16.mxu0 0
        %1253 = vmatpush1.bf16.msra.mxu0 0
        %1254 = vmatprep.subr.bf16.mxu0 0
        %1255 = vmatpush1.bf16.msra.mxu0 0
        %1256 = vmatprep.mubr.bf16.mxu0 0
        %1257 = vmatmul.mubr.bf16.gmra.mrb[0].mxu0 %v1222
        %v1258 = vpop.f32.mrb[0].mxu0
        %v1259 = vadd.f32 0.0, %v1258
        %v1260 = vpop.f32.mrb[0].mxu0
        %v1261 = vpop.f32.mrb[0].mxu0
        %v1262 = vadd.f32 0.0, %v1261
        %v1263 = vpop.f32.mrb[0].mxu0
        %1264 = vdwg.mxu0
        %v1273 = vunpack.c.l.b16 %v1178
        %v1274 = vunpack.c.l.b16 %v1179
        %v1275 = vunpack.c.l.b16 %v1180
        %v1276 = vunpack.c.l.b16 %v1181
        %v1277 = vunpack.c.l.b16 %v1182
        %v1278 = vunpack.c.l.b16 %v1183
        %v1279 = vunpack.c.l.b16 %v1184
        %v1280 = vunpack.c.l.b16 %v1185
        %v1281 = vpack.c.b16 %v1274, %v1273
        %v1282 = vpack.c.b16 %v1276, %v1275
        %v1283 = vpack.c.b16 %v1278, %v1277
        %v1284 = vpack.c.b16 %v1280, %v1279
        %v1290 = vsel %vm614, %v1177, 0
        %1292 = vmatprep.subr.bf16.mxu0 0
        %1293 = vmatpush1.bf16.msra.mxu0 %v1281
        %1294 = vmatprep.subr.bf16.mxu0 0
        %1295 = vmatpush1.bf16.msra.mxu0 %v1282
        %1296 = vmatprep.subr.bf16.mxu0 0
        %1297 = vmatpush1.bf16.msra.mxu0 %v1283
        %1298 = vmatprep.subr.bf16.mxu0 0
        %1299 = vmatpush1.bf16.msra.mxu0 %v1284
        %1300 = vmatprep.subr.bf16.mxu0 0
        %1301 = vmatpush1.bf16.msra.mxu0 0
        %1302 = vmatprep.subr.bf16.mxu0 0
        %1303 = vmatpush1.bf16.msra.mxu0 0
        %1304 = vmatprep.subr.bf16.mxu0 0
        %1305 = vmatpush1.bf16.msra.mxu0 0
        %1306 = vmatprep.subr.bf16.mxu0 0
        %1307 = vmatpush1.bf16.msra.mxu0 0
        %1308 = vmatprep.subr.bf16.mxu0 0
        %1309 = vmatpush1.bf16.msra.mxu0 0
        %1310 = vmatprep.subr.bf16.mxu0 0
        %1311 = vmatpush1.bf16.msra.mxu0 0
        %1312 = vmatprep.subr.bf16.mxu0 0
        %1313 = vmatpush1.bf16.msra.mxu0 0
        %1314 = vmatprep.subr.bf16.mxu0 0
        %1315 = vmatpush1.bf16.msra.mxu0 0
        %1316 = vmatprep.subr.bf16.mxu0 0
        %1317 = vmatpush1.bf16.msra.mxu0 0
        %1318 = vmatprep.subr.bf16.mxu0 0
        %1319 = vmatpush1.bf16.msra.mxu0 0
        %1320 = vmatprep.subr.bf16.mxu0 0
        %1321 = vmatpush1.bf16.msra.mxu0 0
        %1322 = vmatprep.subr.bf16.mxu0 0
        %1323 = vmatpush1.bf16.msra.mxu0 0
        %1324 = vmatprep.mubr.bf16.mxu0 0
        %1325 = vmatmul.mubr.bf16.gmra.mrb[0].mxu0 %v1290
        %v1326 = vpop.f32.mrb[0].mxu0
        %v1327 = vadd.f32 %v1259, %v1326
        %v1328 = vpop.f32.mrb[0].mxu0
        %v1329 = vpop.f32.mrb[0].mxu0
        %v1330 = vadd.f32 %v1262, %v1329
        %v1331 = vpop.f32.mrb[0].mxu0
        %1332 = vdwg.mxu0
        %v1333 = vld [vmem:[%s15] sm:$0x1]
        %v1335 = vlaneseq
        %v1336 = vshrl.u32 %v1335, 7
        %v1337 = vsub.s32 0, %v1336
        %v1338 = vrot.slane %v1333, %v1337
        %v1340 = vadd.f32 %v1327, %v1338
        %v1341 = vadd.f32 %v1330, %v1338
        %v1342 = vmax.f32 %v1340, 0.0
        %v1343 = vmax.f32 %v1341, 0.0
        %v1344 = vpack.c.bf16 %v1343, %v1342
        %v1345 = vld [vmem:[%s16] sm:$0xf]
        %v1346 = vld [vmem:[%s16 + $0x4] sm:$0xf]
        %v1347 = vld [vmem:[%s16 + $0x8] sm:$0xf]
        %v1348 = vld [vmem:[%s16 + $0xc] sm:$0xf]
        %v1349 = vld [vmem:[%s16 + $0x10] sm:$0xf]
        %v1350 = vld [vmem:[%s16 + $0x14] sm:$0xf]
        %v1351 = vld [vmem:[%s16 + $0x18] sm:$0xf]
        %v1352 = vld [vmem:[%s16 + $0x1c] sm:$0xf]
        %v1353 = vld [vmem:[%s17] sm:$0x1]
        %v1355 = vlaneseq
        %v1356 = vshrl.u32 %v1355, 7
        %v1357 = vsub.s32 0, %v1356
        %v1358 = vrot.slane %v1353, %v1357
        %v1368 = vunpack.c.l.b16 %v1345
        %v1369 = vunpack.c.l.b16 %v1346
        %v1370 = vunpack.c.l.b16 %v1347
        %v1371 = vunpack.c.l.b16 %v1348
        %v1372 = vunpack.c.l.b16 %v1349
        %v1373 = vunpack.c.l.b16 %v1350
        %v1374 = vunpack.c.l.b16 %v1351
        %v1375 = vunpack.c.l.b16 %v1352
        %v1376 = vpack.c.b16 %v1369, %v1368
        %v1377 = vpack.c.b16 %v1371, %v1370
        %v1378 = vpack.c.b16 %v1373, %v1372
        %v1379 = vpack.c.b16 %v1375, %v1374
        %v1385 = vsel %vm614, %v1344, 0
        %1387 = vmatprep.subr.bf16.mxu0 0
        %1388 = vmatpush1.bf16.msra.mxu0 %v1376
        %1389 = vmatprep.subr.bf16.mxu0 0
        %1390 = vmatpush1.bf16.msra.mxu0 %v1377
        %1391 = vmatprep.subr.bf16.mxu0 0
        %1392 = vmatpush1.bf16.msra.mxu0 %v1378
        %1393 = vmatprep.subr.bf16.mxu0 0
        %1394 = vmatpush1.bf16.msra.mxu0 %v1379
        %1395 = vmatprep.subr.bf16.mxu0 0
        %1396 = vmatpush1.bf16.msra.mxu0 0
        %1397 = vmatprep.subr.bf16.mxu0 0
        %1398 = vmatpush1.bf16.msra.mxu0 0
        %1399 = vmatprep.subr.bf16.mxu0 0
        %1400 = vmatpush1.bf16.msra.mxu0 0
        %1401 = vmatprep.subr.bf16.mxu0 0
        %1402 = vmatpush1.bf16.msra.mxu0 0
        %1403 = vmatprep.subr.bf16.mxu0 0
        %1404 = vmatpush1.bf16.msra.mxu0 0
        %1405 = vmatprep.subr.bf16.mxu0 0
        %1406 = vmatpush1.bf16.msra.mxu0 0
        %1407 = vmatprep.subr.bf16.mxu0 0
        %1408 = vmatpush1.bf16.msra.mxu0 0
        %1409 = vmatprep.subr.bf16.mxu0 0
        %1410 = vmatpush1.bf16.msra.mxu0 0
        %1411 = vmatprep.subr.bf16.mxu0 0
        %1412 = vmatpush1.bf16.msra.mxu0 0
        %1413 = vmatprep.subr.bf16.mxu0 0
        %1414 = vmatpush1.bf16.msra.mxu0 0
        %1415 = vmatprep.subr.bf16.mxu0 0
        %1416 = vmatpush1.bf16.msra.mxu0 0
        %1417 = vmatprep.subr.bf16.mxu0 0
        %1418 = vmatpush1.bf16.msra.mxu0 0
        %1419 = vmatprep.mubr.bf16.mxu0 0
        %1420 = vmatmul.mubr.bf16.gmra.mrb[0].mxu0 %v1385
        %v1421 = vpop.f32.mrb[0].mxu0
        %v1422 = vadd.f32 %v1358, %v1421
        %v1423 = vpop.f32.mrb[0].mxu0
        %v1424 = vpop.f32.mrb[0].mxu0
        %v1425 = vadd.f32 %v1358, %v1424
        %v1426 = vpop.f32.mrb[0].mxu0
        %1427 = vdwg.mxu0
        %1428 = vst.msk [vmem:[%s560] sm:$0xff] %vm614, %v1422
        %1429 = vst.msk [vmem:[%s560 + $0x8] sm:$0xff] %vm614, %v1425
      $region88: #{gnn_policy_forward.9} parent=79 // pred_fallthru
        _
      %s1430 = sld [smem:[#allocation3 + %s43]]
      %s1431 = smul.u32 2, %s1430
      %p1432 = scmp.lt.s32.totalorder %s1431, 1
      %s1433 = scalar_select %p1432, %s1431, 1
      %s1434 = smul.addr %s1433, 8
      %s1435 = scalar_lea.vmem %s18, %s1434
      // Predicated region
      $region89: #{gnn_policy_forward.9} parent=79 // pred_check
        %p1436 = pneg %p395
      $region90: #{gnn_policy_forward.9} parent=79 // pred_check_branch
        %1438 = sbr.rel (%p1436) target = $region92
      $region91: #{gnn_policy_forward.9} parent=79 // pred_region
        %s1439 = sld [smem:[#allocation3 + %s43]]
        %s1440 = smul.u32 2, %s1439
      $region92: #{gnn_policy_forward.9} parent=79 // pred_fallthru
        _
    $region80: #{gnn_policy_forward.9} parent=5 // pred_fallthru
      _
    %p1441 = scmp.le.s32.totalorder 2, %s38
    // Predicated region
    $region93: #{gnn_policy_forward.9} parent=5 // pred_check
      %p1442 = pneg %p1441
    $region94: #{gnn_policy_forward.9} parent=5 // pred_check_branch
      %1444 = sbr.rel (%p1442) target = $region96
    $region95: #{gnn_policy_forward.9} parent=5 // pred_region
      %s1445 = ssub.s32 %s38, 2
      // Predicated region
      $region97: #{gnn_policy_forward.9} parent=95 // pred_check
        %p1446 = pneg %p401
      $region98: #{gnn_policy_forward.9} parent=95 // pred_check_branch
        %1448 = sbr.rel (%p1446) target = $region100
      $region99: #{gnn_policy_forward.9} parent=95 // pred_region
        %s1449 = sld [smem:[#allocation3 + %s44]]
        %s1450 = smul.u32 2, %s1449
        %p1451 = scmp.lt.s32.totalorder %s1450, 1
        %s1452 = scalar_select %p1451, %s1450, 1
        %s1453 = smul.addr %s1452, 8
        %s1454 = scalar_lea.vmem %s18, %s1453
      $region100: #{gnn_policy_forward.9} parent=95 // pred_fallthru
        _
    $region96: #{gnn_policy_forward.9} parent=5 // pred_fallthru
      _
  $region6: #{gnn_policy_forward.9} parent=0 // loop_footer
    %s42 = sadd.s32 1, %s38
  $region7: #{gnn_policy_forward.9} parent=0 // loop_footer_branch
    %37 = sbr.rel target = $region3
  $region8: #{gnn_policy_forward.9} parent=0 // loop_exit
    _

// kernel: gnn_policy_forward.13
$region0: #{gnn_policy_forward.13}
  #allocation0 [shape = 'u32[]', space=smem, size = 0x4, offset = 0x4, fixed_abs, tag = 'smem constant byte address 0x4 - core index']
  #allocation1 [shape = 'u32[144,128]{1,0:T(1,128)}', space=vmem, size = 0x12000, scoped, tag = 'internal scratch']
  %s0 = inlined_call_operand.vmem [shape: f32[16,64], index: 0, kind: input, shape index: {}]
  %s1 = inlined_call_operand.vmem [shape: bf16[64,64], index: 1, kind: input, shape index: {}]
  %s2 = inlined_call_operand.vmem [shape: f32[1,64], index: 2, kind: input, shape index: {}]
  %s3 = inlined_call_operand.vmem [shape: f32[1,64], index: 3, kind: input, shape index: {}]
  %s4 = inlined_call_operand.vmem [shape: f32[16,1], index: 4, kind: output, shape index: {}]
  %s5 = sld [smem:[#allocation0]]
  $region26: #{gnn_policy_forward.13} parent=0
    _
  %s7 = ssub.s32 1, %s5
  %s8 = scalar_select 0, %s7, %s5
  // Predicated region
  $region2: #{gnn_policy_forward.13} parent=0 // pred_check
    _
  $region3: #{gnn_policy_forward.13} parent=0 // pred_check_branch
    %10 = sbr.rel (0) target = $region5
  $region4: #{gnn_policy_forward.13} parent=0 // pred_region
    _
  $region5: #{gnn_policy_forward.13} parent=0 // pred_fallthru
    _
  // Predicated region
  $region6: #{gnn_policy_forward.13} parent=0 // pred_check
    _
  $region7: #{gnn_policy_forward.13} parent=0 // pred_check_branch
    %12 = sbr.rel (0) target = $region9
  $region8: #{gnn_policy_forward.13} parent=0 // pred_region
    _
  $region9: #{gnn_policy_forward.13} parent=0 // pred_fallthru
    _
  // Predicated region
  $region10: #{gnn_policy_forward.13} parent=0 // pred_check
    _
  $region11: #{gnn_policy_forward.13} parent=0 // pred_check_branch
    %14 = sbr.rel (0) target = $region13
  $region12: #{gnn_policy_forward.13} parent=0 // pred_region
    _
  $region13: #{gnn_policy_forward.13} parent=0 // pred_fallthru
    _
  // Predicated region
  $region14: #{gnn_policy_forward.13} parent=0 // pred_check
    _
  $region15: #{gnn_policy_forward.13} parent=0 // pred_check_branch
    %16 = sbr.rel (0) target = $region17
  $region16: #{gnn_policy_forward.13} parent=0 // pred_region
    _
  $region17: #{gnn_policy_forward.13} parent=0 // pred_fallthru
    _
  %v18 = vld [vmem:[%s0] sm:$0xff]
  %v19 = vld [vmem:[%s0 + $0x8] sm:$0xff]
  %v20 = vpack.c.bf16 %v19, %v18
  %v21 = vld [vmem:[%s1] sm:$0xf]
  %v22 = vld [vmem:[%s1 + $0x4] sm:$0xf]
  %v23 = vld [vmem:[%s1 + $0x8] sm:$0xf]
  %v24 = vld [vmem:[%s1 + $0xc] sm:$0xf]
  %v25 = vld [vmem:[%s1 + $0x10] sm:$0xf]
  %v26 = vld [vmem:[%s1 + $0x14] sm:$0xf]
  %v27 = vld [vmem:[%s1 + $0x18] sm:$0xf]
  %v28 = vld [vmem:[%s1 + $0x1c] sm:$0xf]
  %v29 = vld [vmem:[%s2] sm:$0x1]
  %v31 = vlaneseq
  %v32 = vshrl.u32 %v31, 7
  %v33 = vsub.s32 0, %v32
  %v34 = vrot.slane %v29, %v33
  %v44 = vunpack.c.l.b16 %v21
  %v45 = vunpack.c.l.b16 %v22
  %v46 = vunpack.c.l.b16 %v23
  %v47 = vunpack.c.l.b16 %v24
  %v48 = vunpack.c.l.b16 %v25
  %v49 = vunpack.c.l.b16 %v26
  %v50 = vunpack.c.l.b16 %v27
  %v51 = vunpack.c.l.b16 %v28
  %v52 = vpack.c.b16 %v45, %v44
  %v53 = vpack.c.b16 %v47, %v46
  %v54 = vpack.c.b16 %v49, %v48
  %v55 = vpack.c.b16 %v51, %v50
  %vm60 = vcmask 523264
  %v62 = vsel %vm60, %v20, 0
  %64 = vmatprep.subr.bf16.mxu0 0
  %65 = vmatpush1.bf16.msra.mxu0 %v52
  %66 = vmatprep.subr.bf16.mxu0 0
  %67 = vmatpush1.bf16.msra.mxu0 %v53
  %68 = vmatprep.subr.bf16.mxu0 0
  %69 = vmatpush1.bf16.msra.mxu0 %v54
  %70 = vmatprep.subr.bf16.mxu0 0
  %71 = vmatpush1.bf16.msra.mxu0 %v55
  %72 = vmatprep.subr.bf16.mxu0 0
  %73 = vmatpush1.bf16.msra.mxu0 0
  %74 = vmatprep.subr.bf16.mxu0 0
  %75 = vmatpush1.bf16.msra.mxu0 0
  %76 = vmatprep.subr.bf16.mxu0 0
  %77 = vmatpush1.bf16.msra.mxu0 0
  %78 = vmatprep.subr.bf16.mxu0 0
  %79 = vmatpush1.bf16.msra.mxu0 0
  %80 = vmatprep.subr.bf16.mxu0 0
  %81 = vmatpush1.bf16.msra.mxu0 0
  %82 = vmatprep.subr.bf16.mxu0 0
  %83 = vmatpush1.bf16.msra.mxu0 0
  %84 = vmatprep.subr.bf16.mxu0 0
  %85 = vmatpush1.bf16.msra.mxu0 0
  %86 = vmatprep.subr.bf16.mxu0 0
  %87 = vmatpush1.bf16.msra.mxu0 0
  %88 = vmatprep.subr.bf16.mxu0 0
  %89 = vmatpush1.bf16.msra.mxu0 0
  %90 = vmatprep.subr.bf16.mxu0 0
  %91 = vmatpush1.bf16.msra.mxu0 0
  %92 = vmatprep.subr.bf16.mxu0 0
  %93 = vmatpush1.bf16.msra.mxu0 0
  %94 = vmatprep.subr.bf16.mxu0 0
  %95 = vmatpush1.bf16.msra.mxu0 0
  %96 = vmatprep.mubr.bf16.mxu0 0
  %97 = vmatmul.mubr.bf16.gmra.mrb[0].mxu0 %v62
  %v98 = vpop.f32.mrb[0].mxu0
  %v99 = vadd.f32 %v34, %v98
  %v100 = vpop.f32.mrb[0].mxu0
  %v101 = vpop.f32.mrb[0].mxu0
  %v102 = vadd.f32 %v34, %v101
  %v103 = vpop.f32.mrb[0].mxu0
  %104 = vdwg.mxu0
  %v105 = vmax.f32 %v99, 0.0
  %v106 = vmax.f32 %v102, 0.0
  %v107 = vld [vmem:[%s3] sm:$0x1]
  %v109 = vlaneseq
  %v110 = vshrl.u32 %v109, 7
  %v111 = vsub.s32 0, %v110
  %v112 = vrot.slane %v107, %v111
  %v114 = vmul.f32 %v105, %v112
  %v115 = vmul.f32 %v106, %v112
  %v116 = vsel %vm60, %v114, 0.0
  %117 = vadd.xlane.f32.xlu0 %v116
  %v118 = vpop.xlane.xlu0 %117
  %v119 = vsel %vm60, %v115, 0.0
  %120 = vadd.xlane.f32.xlu0 %v119
  %v121 = vpop.xlane.xlu0 %120
  %vm122 = vcmask 7168
  %123 = vst.msk [vmem:[%s4] sm:$0xff] %vm122, %v118
  %124 = vst.msk [vmem:[%s4 + $0x8] sm:$0xff] %vm122, %v121
  // Predicated region
  $region18: #{gnn_policy_forward.13} parent=0 // pred_check
    _
  $region19: #{gnn_policy_forward.13} parent=0 // pred_check_branch
    %126 = sbr.rel (0) target = $region21
  $region20: #{gnn_policy_forward.13} parent=0 // pred_region
    _
  $region21: #{gnn_policy_forward.13} parent=0 // pred_fallthru
    _
  // Predicated region
  $region22: #{gnn_policy_forward.13} parent=0 // pred_check
    _
  $region23: #{gnn_policy_forward.13} parent=0 // pred_check_branch
    %128 = sbr.rel (0) target = $region25
  $region24: #{gnn_policy_forward.13} parent=0 // pred_region
    _
  $region25: #{gnn_policy_forward.13} parent=0 // pred_fallthru
    _

</llo_original>
